<compile_context>
chip_gen: v5e
topology: v5e:2x2
jax: 0.10.0
libtpu: 0.0.40
codegen_flags: <defaults>
</compile_context>

<pallas_src>
import math
from functools import partial

import jax
import jax.numpy as jnp
from jax.experimental import pallas as pl
from jax.experimental.pallas import tpu as pltpu


def _round_up(x, m):
    return (x + m - 1) // m * m


# ----------------------------- fused Pallas kernel ---------------------------

def _bottleneck_kernel(x_ref, mask_ref, w1_ref, b1_ref, w2_ref, b2_ref,
                       w3_ref, b3_ref, o_ref, y1p_ref, col_ref, *, wp):
    """One grid step = one image, spatially padded & flattened to (Np, C).

    Np = (H+2)*(W+2).  Valid outputs live at interior positions; border rows
    are junk and cropped by the wrapper.  All intermediates stay in VMEM.
    """
    np_pix = x_ref.shape[1]            # (H+2)*(W+2)
    c1 = w1_ref.shape[1]
    shift = wp + 1                     # row offset of y1 inside the slack-padded buffer
    nb = y1p_ref.shape[0]

    # ---- conv1 (1x1, BN scale pre-folded into w1) + bias + ReLU -------------
    x = x_ref[0]                                                 # (Np, Cin) bf16
    y1 = jnp.dot(x, w1_ref[...], preferred_element_type=jnp.float32)
    # mask re-zeroes the spatial padding ring: bias+ReLU would otherwise make it
    # non-zero and it would leak into conv2's 3x3 window.
    y1 = jnp.maximum(y1 + b1_ref[...], 0.0) * mask_ref[...]

    # ---- stash y1 in the flat padded buffer (one contiguous store) ----------
    # Slack (halo) rows are only read while computing junk border rows, but we
    # clear them every step anyway (tiny) so no step depends on stale VMEM and
    # all grid steps stay order-independent under "parallel" semantics.
    y1p_ref[0:shift, :] = jnp.zeros((shift, c1), y1p_ref.dtype)
    y1p_ref[shift + np_pix:nb, :] = jnp.zeros((nb - shift - np_pix, c1),
                                              y1p_ref.dtype)
    y1p_ref[shift:shift + np_pix, :] = y1.astype(y1p_ref.dtype)

    # ---- conv2 (3x3, stride=1, pad=1, groups=1) as ONE K=9*C1 MXU matmul ----
    # Tap (kh, kw) of the padded image is just the flat buffer shifted by
    # kh*(W+2)+kw rows: build the (Np, 9*C1) im2col slab with 9 contiguous
    # row-slab copies, then a single big-K matmul.
    for kh in range(3):
        for kw in range(3):
            t = kh * 3 + kw
            off = kh * wp + kw
            col_ref[:, t * c1:(t + 1) * c1] = y1p_ref[off:off + np_pix, :]
    y2 = jnp.dot(col_ref[...], w2_ref[...], preferred_element_type=jnp.float32)
    y2 = jnp.maximum(y2 + b2_ref[...], 0.0)

    # ---- conv3 (1x1) + bias + identity residual + ReLU ----------------------
    y3 = jnp.dot(y2.astype(w3_ref.dtype), w3_ref[...],
                 preferred_element_type=jnp.float32)
    out = jnp.maximum(y3 + b3_ref[...] + x.astype(jnp.float32), 0.0)
    o_ref[0] = out.astype(o_ref.dtype)


# --------------------------------- wrappers ----------------------------------

def _derived_vmem_limit(np_pix, nb, cin, c1, c2, cout):
    """Per-step VMEM footprint -> compiler limit (cap < v7x 64 MiB physical)."""
    bf, f4 = 2, 4
    act_io = 2 * np_pix * (cin + cout) * bf                       # 2x in + 2x out tiles
    weights = ((cin * c1 + 9 * c1 * c2 + c2 * cout) * bf
               + (c1 + c2 + cout) * f4 + np_pix * f4)             # resident weights/mask
    scratch = (nb * c1 + 9 * np_pix * c1) * bf                    # y1p + im2col slab
    temps = np_pix * (c1 + c2 + cout) * f4                        # f32 matmul results
    need = act_io + weights + scratch + temps
    return int(min(max(int(1.5 * need) + (4 << 20), 32 << 20), 56 << 20))


def bottleneck_forward_nhwc(x_nhwc, params, *, vmem_limit_bytes=None):
    """Fused Bottleneck forward, NHWC in / NHWC out (bf16).

    Assumes stride=1, dilation=1, cardinality=1, no downsample (module defaults)
    and inplanes == planes * expansion (identity residual).
    """
    N, H, W, c_in = x_nhwc.shape
    w1, w2, w3 = params["w1"], params["w2"], params["w3"]
    c1 = w1.shape[1]
    c2 = w2.shape[1]
    c_out = w3.shape[1]
    assert w2.shape[0] == 9 * c1, "w2 must be pre-flattened to (9*C1, C2)"
    assert c_in == c_out, "identity residual requires inplanes == planes*expansion"

    wp, hp = W + 2, H + 2
    np_pix = hp * wp
    shift = wp + 1
    nb = _round_up(np_pix + 2 * shift, 8)

    # Spatially pre-pad + flatten ONCE at the HBM level; the kernel then only
    # touches contiguous (rows, channels) slabs.  In a full network the
    # producing layer would emit this layout directly.
    x_pad = jnp.pad(x_nhwc.astype(jnp.bfloat16), ((0, 0), (1, 1), (1, 1), (0, 0)))
    x_flat = x_pad.reshape(N, np_pix, c_in)

    row_ok = (jnp.arange(hp) >= 1) & (jnp.arange(hp) <= H)
    col_ok = (jnp.arange(wp) >= 1) & (jnp.arange(wp) <= W)
    mask = (row_ok[:, None] & col_ok[None, :]).astype(jnp.float32).reshape(np_pix, 1)

    if vmem_limit_bytes is None:
        vmem_limit_bytes = _derived_vmem_limit(np_pix, nb, c_in, c1, c2, c_out)

    # Weights / biases / mask: whole-array VMEM residents (not pipelined, so no
    # double-buffered weight copies eating VMEM).
    def resident():
        return pl.BlockSpec(memory_space=pltpu.MemorySpace.VMEM)

    kernel = partial(_bottleneck_kernel, wp=wp)
    out_flat = pl.pallas_call(
        kernel,
        out_shape=jax.ShapeDtypeStruct((N, np_pix, c_out), jnp.bfloat16),
        grid_spec=pltpu.PrefetchScalarGridSpec(
            num_scalar_prefetch=0,
            grid=(N,),
            in_specs=[
                pl.BlockSpec((1, np_pix, c_in), lambda b: (b, 0, 0)),   # x tile
                resident(),                                             # pad mask
                resident(), resident(),                                 # w1, b1
                resident(), resident(),                                 # w2, b2
                resident(), resident(),                                 # w3, b3
            ],
            out_specs=pl.BlockSpec((1, np_pix, c_out), lambda b: (b, 0, 0)),
            scratch_shapes=[
                pltpu.VMEM((nb, c1), jnp.bfloat16),          # slack-padded y1
                pltpu.VMEM((np_pix, 9 * c1), jnp.bfloat16),  # im2col slab
            ],
        ),
        compiler_params=pltpu.CompilerParams(
            dimension_semantics=("parallel",),      # megacore-shard over batch
            vmem_limit_bytes=vmem_limit_bytes),
    )(x_flat, mask, w1, params["b1"], w2, params["b2"], w3, params["b3"])

    out = out_flat.reshape(N, hp, wp, c_out)[:, 1:H + 1, 1:W + 1, :]
    return out


def bottleneck_forward_nchw(x_nchw, params):
    """PyTorch-layout convenience wrapper (two extra HBM layout passes;
    prefer the NHWC entry point)."""
    x = jnp.transpose(x_nchw, (0, 2, 3, 1))
    y = bottleneck_forward_nhwc(x, params)
    return jnp.transpose(y, (0, 3, 1, 2))


# --------------------------- reference (plain JAX) ----------------------------

def reference_forward_nhwc(x_nhwc, params):
    x = x_nhwc.astype(jnp.float32)
    c1 = params["b1"].shape[-1]
    c2 = params["b2"].shape[-1]
    y = jnp.einsum("nhwc,cd->nhwd", x, params["w1"].astype(jnp.float32))
    y = jnp.maximum(y + params["b1"], 0.0)
    w2_hwio = params["w2"].astype(jnp.float32).reshape(3, 3, c1, c2)
    y = jax.lax.conv_general_dilated(
        y, w2_hwio, window_strides=(1, 1), padding=((1, 1), (1, 1)),
        dimension_numbers=("NHWC", "HWIO", "NHWC"))
    y = jnp.maximum(y + params["b2"], 0.0)
    y = jnp.einsum("nhwc,cd->nhwd", y, params["w3"].astype(jnp.float32))
    return jnp.maximum(y + params["b3"] + x, 0.0)


# --------------------------------- params ------------------------------------

def make_params(key, inplanes, planes, cardinality=1, base_width=64,
                reduce_first=1, eps=1e-5):
    """Random conv weights + BatchNorm stats, with the BN scale folded into the
    conv weight columns (f32 fold, single bf16 cast) and BN bias kept separate."""
    expansion = 4
    width = int(math.floor(planes * (base_width / 64)) * cardinality)
    first_planes = width // reduce_first
    outplanes = planes * expansion
    ks = jax.random.split(key, 15)

    def bn(kg, kb, km, kv, c):
        gamma = 0.5 + jax.random.uniform(kg, (c,), jnp.float32)
        beta = 0.1 * jax.random.normal(kb, (c,), jnp.float32)
        mean = 0.1 * jax.random.normal(km, (c,), jnp.float32)
        var = 0.5 + jax.random.uniform(kv, (c,), jnp.float32)
        scale = gamma / jnp.sqrt(var + eps)
        bias = beta - mean * scale
        return scale, bias

    w1_raw = 0.1 * jax.random.normal(ks[0], (inplanes, first_planes), jnp.float32)
    w2_oihw = 0.1 * jax.random.normal(ks[1], (width, first_planes, 3, 3), jnp.float32)
    w3_raw = 0.1 * jax.random.normal(ks[2], (width, outplanes), jnp.float32)

    s1, b1 = bn(ks[3], ks[4], ks[5], ks[6], first_planes)
    s2, b2 = bn(ks[7], ks[8], ks[9], ks[10], width)
    s3, b3 = bn(ks[11], ks[12], ks[13], ks[14], outplanes)

    w1 = (w1_raw * s1[None, :]).astype(jnp.bfloat16)
    # (O,I,KH,KW) -> (KH,KW,I,O) -> (9*I, O): row (kh*3+kw)*C1 + i matches the
    # in-kernel im2col slab column ordering.
    w2_scaled = w2_oihw * s2[:, None, None, None]
    w2 = jnp.transpose(w2_scaled, (2, 3, 1, 0)).reshape(
        9 * first_planes, width).astype(jnp.bfloat16)
    w3 = (w3_raw * s3[None, :]).astype(jnp.bfloat16)

    return dict(w1=w1, w2=w2, w3=w3,
                b1=b1.reshape(1, -1), b2=b2.reshape(1, -1), b3=b3.reshape(1, -1))


# ---------------------------------- main --------------------------------------

if __name__ == "__main__":
    # Small test shapes (inplanes must equal planes * expansion for the identity
    # residual).  NOTE: benchmark/tune with production channel counts
    # (Cin/Cout >= 256, C1/C2 >= 64) -- with Cout=32 every output store is a
    # masked partial store, unlike real ResNet stages.
    N, H, W = 2, 16, 16
    planes = 8
    inplanes = planes * 4          # 32

    key = jax.random.PRNGKey(0)
    kx, kp = jax.random.split(key)
    x = jax.random.normal(kx, (N, H, W, inplanes), jnp.float32).astype(jnp.bfloat16)
    params = make_params(kp, inplanes, planes)

    out = jax.block_until_ready(bottleneck_forward_nhwc(x, params))
    ref = jax.block_until_ready(reference_forward_nhwc(x, params))
    assert out.shape == (N, H, W, inplanes)
    max_err = float(jnp.max(jnp.abs(out.astype(jnp.float32) - ref)))
    assert max_err < 6e-2, f"max abs error {max_err}"   # bf16 MXU inputs / bf16 out

    # PyTorch-layout wrapper parity check
    out_nchw = jax.block_until_ready(
        bottleneck_forward_nchw(jnp.transpose(x, (0, 3, 1, 2)), params))
    assert bool(jnp.array_equal(out_nchw, jnp.transpose(out, (0, 3, 1, 2))))

    print("KERNEL_OK")
</pallas_src>

<mosaic_0001>
module attributes {stable_mosaic.version = 11 : i64} {
  func.func @_bottleneck_kernel(%arg0: i32, %arg1: memref<1x324x32xbf16, #tpu.memory_space<vmem>>, %arg2: memref<324x1xf32, #tpu.memory_space<vmem>>, %arg3: memref<32x8xbf16, #tpu.memory_space<vmem>>, %arg4: memref<1x8xf32, #tpu.memory_space<vmem>>, %arg5: memref<72x8xbf16, #tpu.memory_space<vmem>>, %arg6: memref<1x8xf32, #tpu.memory_space<vmem>>, %arg7: memref<8x32xbf16, #tpu.memory_space<vmem>>, %arg8: memref<1x32xf32, #tpu.memory_space<vmem>>, %arg9: memref<1x324x32xbf16, #tpu.memory_space<vmem>>, %arg10: memref<368x8xbf16, #tpu.memory_space<vmem>>, %arg11: memref<324x72xbf16, #tpu.memory_space<vmem>>) attributes {dimension_semantics = [#tpu.dimension_semantics<parallel>], iteration_bounds = array<i64: 2>, scalar_prefetch = 0 : i64, scratch_operands = 2 : i64, tpu.core_type = #tpu.core_type<tc>, window_params = [{transform_indices = @transform_0, window_bounds = array<i64: 1, 324, 32>}, {pipeline_mode = #tpu.pipeline_mode<synchronous>, transform_indices = @transform_1, window_bounds = array<i64: 324, 1>}, {pipeline_mode = #tpu.pipeline_mode<synchronous>, transform_indices = @transform_2, window_bounds = array<i64: 32, 8>}, {pipeline_mode = #tpu.pipeline_mode<synchronous>, transform_indices = @transform_3, window_bounds = array<i64: 1, 8>}, {pipeline_mode = #tpu.pipeline_mode<synchronous>, transform_indices = @transform_4, window_bounds = array<i64: 72, 8>}, {pipeline_mode = #tpu.pipeline_mode<synchronous>, transform_indices = @transform_5, window_bounds = array<i64: 1, 8>}, {pipeline_mode = #tpu.pipeline_mode<synchronous>, transform_indices = @transform_6, window_bounds = array<i64: 8, 32>}, {pipeline_mode = #tpu.pipeline_mode<synchronous>, transform_indices = @transform_7, window_bounds = array<i64: 1, 32>}, {transform_indices = @transform_8, window_bounds = array<i64: 1, 324, 32>}]} {
    %c0 = arith.constant 0 : index
    %c0_0 = arith.constant 0 : index
    %c0_1 = arith.constant 0 : index
    %0 = vector.load %arg1[%c0, %c0_0, %c0_1] : memref<1x324x32xbf16, #tpu.memory_space<vmem>>, vector<1x324x32xbf16>
    %1 = vector.shape_cast %0 : vector<1x324x32xbf16> to vector<324x32xbf16>
    %c0_2 = arith.constant 0 : index
    %c0_3 = arith.constant 0 : index
    %2 = vector.load %arg3[%c0_2, %c0_3] : memref<32x8xbf16, #tpu.memory_space<vmem>>, vector<32x8xbf16>
    %cst = arith.constant dense<0.000000e+00> : vector<324x8xf32>
    %3 = tpu.matmul %1, %2, %cst {dimension_numbers = #tpu.dot_dimension_numbers<[1], [0], [0], [1], [0, 0, 1, 1], [], []>} : vector<324x32xbf16>, vector<32x8xbf16>, vector<324x8xf32> -> vector<324x8xf32>
    %c0_4 = arith.constant 0 : index
    %c0_5 = arith.constant 0 : index
    %4 = vector.load %arg4[%c0_4, %c0_5] : memref<1x8xf32, #tpu.memory_space<vmem>>, vector<1x8xf32>
    %5 = vector.broadcast %4 : vector<1x8xf32> to vector<324x8xf32>
    %6 = arith.addf %3, %5 : vector<324x8xf32>
    %cst_6 = arith.constant 0.000000e+00 : f32
    %7 = vector.broadcast %cst_6 : f32 to vector<324x8xf32>
    %8 = arith.maximumf %6, %7 : vector<324x8xf32>
    %c0_7 = arith.constant 0 : index
    %c0_8 = arith.constant 0 : index
    %9 = vector.load %arg2[%c0_7, %c0_8] : memref<324x1xf32, #tpu.memory_space<vmem>>, vector<324x1xf32>
    %10 = vector.broadcast %9 : vector<324x1xf32> to vector<324x8xf32>
    %11 = arith.mulf %8, %10 : vector<324x8xf32>
    %cst_9 = arith.constant 0.000000e+00 : bf16
    %12 = vector.broadcast %cst_9 : bf16 to vector<19x8xbf16>
    %c0_10 = arith.constant 0 : index
    %c0_11 = arith.constant 0 : index
    %13 = vector.load %arg10[%c0_10, %c0_11] : memref<368x8xbf16, #tpu.memory_space<vmem>>, vector<19x8xbf16>
    tpu.vector_store %arg10[%c0_10, %c0_11], %12 {strides = array<i32>} : memref<368x8xbf16, #tpu.memory_space<vmem>>, vector<19x8xbf16>,
    %cst_12 = arith.constant 0.000000e+00 : bf16
    %14 = vector.broadcast %cst_12 : bf16 to vector<25x8xbf16>
    %c343 = arith.constant 343 : index
    %c0_13 = arith.constant 0 : index
    %15 = vector.load %arg10[%c343, %c0_13] : memref<368x8xbf16, #tpu.memory_space<vmem>>, vector<25x8xbf16>
    tpu.vector_store %arg10[%c343, %c0_13], %14 {strides = array<i32>} : memref<368x8xbf16, #tpu.memory_space<vmem>>, vector<25x8xbf16>,
    %16 = arith.truncf %11 : vector<324x8xf32> to vector<324x8xbf16>
    %c19 = arith.constant 19 : index
    %c0_14 = arith.constant 0 : index
    %17 = vector.load %arg10[%c19, %c0_14] : memref<368x8xbf16, #tpu.memory_space<vmem>>, vector<324x8xbf16>
    tpu.vector_store %arg10[%c19, %c0_14], %16 {strides = array<i32>} : memref<368x8xbf16, #tpu.memory_space<vmem>>, vector<324x8xbf16>,
    %c0_15 = arith.constant 0 : index
    %c0_16 = arith.constant 0 : index
    %18 = vector.load %arg10[%c0_15, %c0_16] : memref<368x8xbf16, #tpu.memory_space<vmem>>, vector<324x8xbf16>
    %c0_17 = arith.constant 0 : index
    %c0_18 = arith.constant 0 : index
    %19 = vector.load %arg11[%c0_17, %c0_18] : memref<324x72xbf16, #tpu.memory_space<vmem>>, vector<324x8xbf16>
    tpu.vector_store %arg11[%c0_17, %c0_18], %18 {strides = array<i32>} : memref<324x72xbf16, #tpu.memory_space<vmem>>, vector<324x8xbf16>,
    %c1 = arith.constant 1 : index
    %c0_19 = arith.constant 0 : index
    %20 = vector.load %arg10[%c1, %c0_19] : memref<368x8xbf16, #tpu.memory_space<vmem>>, vector<324x8xbf16>
    %c0_20 = arith.constant 0 : index
    %c8 = arith.constant 8 : index
    %21 = vector.load %arg11[%c0_20, %c8] : memref<324x72xbf16, #tpu.memory_space<vmem>>, vector<324x8xbf16>
    tpu.vector_store %arg11[%c0_20, %c8], %20 {strides = array<i32>} : memref<324x72xbf16, #tpu.memory_space<vmem>>, vector<324x8xbf16>,
    %c2 = arith.constant 2 : index
    %c0_21 = arith.constant 0 : index
    %22 = vector.load %arg10[%c2, %c0_21] : memref<368x8xbf16, #tpu.memory_space<vmem>>, vector<324x8xbf16>
    %c0_22 = arith.constant 0 : index
    %c16 = arith.constant 16 : index
    %23 = vector.load %arg11[%c0_22, %c16] : memref<324x72xbf16, #tpu.memory_space<vmem>>, vector<324x8xbf16>
    tpu.vector_store %arg11[%c0_22, %c16], %22 {strides = array<i32>} : memref<324x72xbf16, #tpu.memory_space<vmem>>, vector<324x8xbf16>,
    %c18 = arith.constant 18 : index
    %c0_23 = arith.constant 0 : index
    %24 = vector.load %arg10[%c18, %c0_23] : memref<368x8xbf16, #tpu.memory_space<vmem>>, vector<324x8xbf16>
    %c0_24 = arith.constant 0 : index
    %c24 = arith.constant 24 : index
    %25 = vector.load %arg11[%c0_24, %c24] : memref<324x72xbf16, #tpu.memory_space<vmem>>, vector<324x8xbf16>
    tpu.vector_store %arg11[%c0_24, %c24], %24 {strides = array<i32>} : memref<324x72xbf16, #tpu.memory_space<vmem>>, vector<324x8xbf16>,
    %c19_25 = arith.constant 19 : index
    %c0_26 = arith.constant 0 : index
    %26 = vector.load %arg10[%c19_25, %c0_26] : memref<368x8xbf16, #tpu.memory_space<vmem>>, vector<324x8xbf16>
    %c0_27 = arith.constant 0 : index
    %c32 = arith.constant 32 : index
    %27 = vector.load %arg11[%c0_27, %c32] : memref<324x72xbf16, #tpu.memory_space<vmem>>, vector<324x8xbf16>
    tpu.vector_store %arg11[%c0_27, %c32], %26 {strides = array<i32>} : memref<324x72xbf16, #tpu.memory_space<vmem>>, vector<324x8xbf16>,
    %c20 = arith.constant 20 : index
    %c0_28 = arith.constant 0 : index
    %28 = vector.load %arg10[%c20, %c0_28] : memref<368x8xbf16, #tpu.memory_space<vmem>>, vector<324x8xbf16>
    %c0_29 = arith.constant 0 : index
    %c40 = arith.constant 40 : index
    %29 = vector.load %arg11[%c0_29, %c40] : memref<324x72xbf16, #tpu.memory_space<vmem>>, vector<324x8xbf16>
    tpu.vector_store %arg11[%c0_29, %c40], %28 {strides = array<i32>} : memref<324x72xbf16, #tpu.memory_space<vmem>>, vector<324x8xbf16>,
    %c36 = arith.constant 36 : index
    %c0_30 = arith.constant 0 : index
    %30 = vector.load %arg10[%c36, %c0_30] : memref<368x8xbf16, #tpu.memory_space<vmem>>, vector<324x8xbf16>
    %c0_31 = arith.constant 0 : index
    %c48 = arith.constant 48 : index
    %31 = vector.load %arg11[%c0_31, %c48] : memref<324x72xbf16, #tpu.memory_space<vmem>>, vector<324x8xbf16>
    tpu.vector_store %arg11[%c0_31, %c48], %30 {strides = array<i32>} : memref<324x72xbf16, #tpu.memory_space<vmem>>, vector<324x8xbf16>,
    %c37 = arith.constant 37 : index
    %c0_32 = arith.constant 0 : index
    %32 = vector.load %arg10[%c37, %c0_32] : memref<368x8xbf16, #tpu.memory_space<vmem>>, vector<324x8xbf16>
    %c0_33 = arith.constant 0 : index
    %c56 = arith.constant 56 : index
    %33 = vector.load %arg11[%c0_33, %c56] : memref<324x72xbf16, #tpu.memory_space<vmem>>, vector<324x8xbf16>
    tpu.vector_store %arg11[%c0_33, %c56], %32 {strides = array<i32>} : memref<324x72xbf16, #tpu.memory_space<vmem>>, vector<324x8xbf16>,
    %c38 = arith.constant 38 : index
    %c0_34 = arith.constant 0 : index
    %34 = vector.load %arg10[%c38, %c0_34] : memref<368x8xbf16, #tpu.memory_space<vmem>>, vector<324x8xbf16>
    %c0_35 = arith.constant 0 : index
    %c64 = arith.constant 64 : index
    %35 = vector.load %arg11[%c0_35, %c64] : memref<324x72xbf16, #tpu.memory_space<vmem>>, vector<324x8xbf16>
    tpu.vector_store %arg11[%c0_35, %c64], %34 {strides = array<i32>} : memref<324x72xbf16, #tpu.memory_space<vmem>>, vector<324x8xbf16>,
    %c0_36 = arith.constant 0 : index
    %c0_37 = arith.constant 0 : index
    %36 = vector.load %arg11[%c0_36, %c0_37] : memref<324x72xbf16, #tpu.memory_space<vmem>>, vector<324x72xbf16>
    %c0_38 = arith.constant 0 : index
    %c0_39 = arith.constant 0 : index
    %37 = vector.load %arg5[%c0_38, %c0_39] : memref<72x8xbf16, #tpu.memory_space<vmem>>, vector<72x8xbf16>
    %cst_40 = arith.constant dense<0.000000e+00> : vector<324x8xf32>
    %38 = tpu.matmul %36, %37, %cst_40 {dimension_numbers = #tpu.dot_dimension_numbers<[1], [0], [0], [1], [0, 0, 1, 1], [], []>} : vector<324x72xbf16>, vector<72x8xbf16>, vector<324x8xf32> -> vector<324x8xf32>
    %c0_41 = arith.constant 0 : index
    %c0_42 = arith.constant 0 : index
    %39 = vector.load %arg6[%c0_41, %c0_42] : memref<1x8xf32, #tpu.memory_space<vmem>>, vector<1x8xf32>
    %40 = vector.broadcast %39 : vector<1x8xf32> to vector<324x8xf32>
    %41 = arith.addf %38, %40 : vector<324x8xf32>
    %cst_43 = arith.constant 0.000000e+00 : f32
    %42 = vector.broadcast %cst_43 : f32 to vector<324x8xf32>
    %43 = arith.maximumf %41, %42 : vector<324x8xf32>
    %44 = arith.truncf %43 : vector<324x8xf32> to vector<324x8xbf16>
    %c0_44 = arith.constant 0 : index
    %c0_45 = arith.constant 0 : index
    %45 = vector.load %arg7[%c0_44, %c0_45] : memref<8x32xbf16, #tpu.memory_space<vmem>>, vector<8x32xbf16>
    %cst_46 = arith.constant dense<0.000000e+00> : vector<324x32xf32>
    %46 = tpu.matmul %44, %45, %cst_46 {dimension_numbers = #tpu.dot_dimension_numbers<[1], [0], [0], [1], [0, 0, 1, 1], [], []>} : vector<324x8xbf16>, vector<8x32xbf16>, vector<324x32xf32> -> vector<324x32xf32>
    %c0_47 = arith.constant 0 : index
    %c0_48 = arith.constant 0 : index
    %47 = vector.load %arg8[%c0_47, %c0_48] : memref<1x32xf32, #tpu.memory_space<vmem>>, vector<1x32xf32>
    %48 = vector.broadcast %47 : vector<1x32xf32> to vector<324x32xf32>
    %49 = arith.addf %46, %48 : vector<324x32xf32>
    %50 = arith.extf %1 : vector<324x32xbf16> to vector<324x32xf32>
    %51 = arith.addf %49, %50 : vector<324x32xf32>
    %cst_49 = arith.constant 0.000000e+00 : f32
    %52 = vector.broadcast %cst_49 : f32 to vector<324x32xf32>
    %53 = arith.maximumf %51, %52 : vector<324x32xf32>
    %54 = arith.truncf %53 : vector<324x32xf32> to vector<324x32xbf16>
    %c0_50 = arith.constant 0 : index
    %c0_51 = arith.constant 0 : index
    %c0_52 = arith.constant 0 : index
    %55 = vector.load %arg9[%c0_50, %c0_51, %c0_52] : memref<1x324x32xbf16, #tpu.memory_space<vmem>>, vector<1x324x32xbf16>
    %56 = vector.shape_cast %55 : vector<1x324x32xbf16> to vector<324x32xbf16>
    %57 = vector.shape_cast %54 : vector<324x32xbf16> to vector<1x324x32xbf16>
    tpu.vector_store %arg9[%c0_50, %c0_51, %c0_52], %57 {strides = array<i32>} : memref<1x324x32xbf16, #tpu.memory_space<vmem>>, vector<1x324x32xbf16>,
    return
  }
  func.func @transform_0(%arg0: i32) -> (i32, i32, i32) {
    %c0_i32 = arith.constant 0 : i32
    %c0_i32_0 = arith.constant 0 : i32
    %c0_i32_1 = arith.constant 0 : i32
    return %arg0, %c0_i32, %c0_i32_0 : i32, i32, i32
  }
  func.func @transform_1(%arg0: i32) -> (i32, i32) {
    %c0_i32 = arith.constant 0 : i32
    %c0_i32_0 = arith.constant 0 : i32
    %c0_i32_1 = arith.constant 0 : i32
    return %c0_i32, %c0_i32_0 : i32, i32
  }
  func.func @transform_2(%arg0: i32) -> (i32, i32) {
    %c0_i32 = arith.constant 0 : i32
    %c0_i32_0 = arith.constant 0 : i32
    %c0_i32_1 = arith.constant 0 : i32
    return %c0_i32, %c0_i32_0 : i32, i32
  }
  func.func @transform_3(%arg0: i32) -> (i32, i32) {
    %c0_i32 = arith.constant 0 : i32
    %c0_i32_0 = arith.constant 0 : i32
    %c0_i32_1 = arith.constant 0 : i32
    return %c0_i32, %c0_i32_0 : i32, i32
  }
  func.func @transform_4(%arg0: i32) -> (i32, i32) {
    %c0_i32 = arith.constant 0 : i32
    %c0_i32_0 = arith.constant 0 : i32
    %c0_i32_1 = arith.constant 0 : i32
    return %c0_i32, %c0_i32_0 : i32, i32
  }
  func.func @transform_5(%arg0: i32) -> (i32, i32) {
    %c0_i32 = arith.constant 0 : i32
    %c0_i32_0 = arith.constant 0 : i32
    %c0_i32_1 = arith.constant 0 : i32
    return %c0_i32, %c0_i32_0 : i32, i32
  }
  func.func @transform_6(%arg0: i32) -> (i32, i32) {
    %c0_i32 = arith.constant 0 : i32
    %c0_i32_0 = arith.constant 0 : i32
    %c0_i32_1 = arith.constant 0 : i32
    return %c0_i32, %c0_i32_0 : i32, i32
  }
  func.func @transform_7(%arg0: i32) -> (i32, i32) {
    %c0_i32 = arith.constant 0 : i32
    %c0_i32_0 = arith.constant 0 : i32
    %c0_i32_1 = arith.constant 0 : i32
    return %c0_i32, %c0_i32_0 : i32, i32
  }
  func.func @transform_8(%arg0: i32) -> (i32, i32, i32) {
    %c0_i32 = arith.constant 0 : i32
    %c0_i32_0 = arith.constant 0 : i32
    %c0_i32_1 = arith.constant 0 : i32
    return %arg0, %c0_i32, %c0_i32_0 : i32, i32, i32
  }
}

</mosaic_0001>

<llo_original>
// kernel: tpu_custom_call.1
$region0: #{tpu_custom_call.1}
  #allocation0 [shape = 'u32[]', space=smem, size = 0x4, offset = 0x4, fixed_abs, tag = 'smem constant byte address 0x4 - core index']
  #allocation1 [shape = 'u32[72,128]{1,0:T(1,128)}', space=vmem, size = 0x9000, scoped, tag = 'internal scratch']
  #allocation2 [shape = 'bf16[368,8]{1,0:T(8,128)(2,1)}', space=vmem, size = 0x17000, scoped, tag = 'scratch operand']
  #allocation3 [shape = 'bf16[324,72]{1,0:T(8,128)(2,1)}', space=vmem, size = 0x14800, scoped, tag = 'scratch operand']
  %s0 = inlined_call_operand.vmem [shape: bf16[2,324,32], index: 0, kind: input, shape index: {}]
  %s1 = inlined_call_operand.vmem [shape: f32[324,1], index: 1, kind: input, shape index: {}]
  %s2 = inlined_call_operand.vmem [shape: bf16[32,8], index: 2, kind: input, shape index: {}]
  %s3 = inlined_call_operand.vmem [shape: f32[1,8], index: 3, kind: input, shape index: {}]
  %s4 = inlined_call_operand.vmem [shape: bf16[72,8], index: 4, kind: input, shape index: {}]
  %s5 = inlined_call_operand.vmem [shape: f32[1,8], index: 5, kind: input, shape index: {}]
  %s6 = inlined_call_operand.vmem [shape: bf16[8,32], index: 6, kind: input, shape index: {}]
  %s7 = inlined_call_operand.vmem [shape: f32[1,32], index: 7, kind: input, shape index: {}]
  %s8 = inlined_call_operand.vmem [shape: bf16[2,324,32], index: 8, kind: output, shape index: {}]
  %s9 = sld [smem:[#allocation0]]
  $region65: #{tpu_custom_call.1} parent=0
    _
  %s11 = ssub.s32 1, %s9
  %s12 = scalar_select 0, %s11, %s9
  loop: start=0, step=1, limit=4
  $region2: #{tpu_custom_call.1} parent=0 // loop_pre_header
    _
  $region3: #{tpu_custom_call.1} parent=0 // loop_header
    %s14 = sphi 0, %s18
    %p15 = scmp.ge.s32.totalorder %s14, 4
    %s24 = sphi 0, %s26
    %s27 = sphi 0, %s24
    %s28 = sphi 0, %s27
    %s44 = sphi 0, %s28
    %s48 = sphi 0, %s48
    %s50 = sphi 0, %s48
    %s51 = sphi 0, %s50
    %s65 = sphi 0, %s51
    %s69 = sphi 0, %s69
    %s71 = sphi 0, %s69
    %s72 = sphi 0, %s71
    %s86 = sphi 0, %s72
    %s90 = sphi 0, %s90
    %s92 = sphi 0, %s90
    %s93 = sphi 0, %s92
    %s107 = sphi 0, %s93
    %s111 = sphi 0, %s111
    %s113 = sphi 0, %s111
    %s114 = sphi 0, %s113
    %s128 = sphi 0, %s114
    %s132 = sphi 0, %s132
    %s134 = sphi 0, %s132
    %s135 = sphi 0, %s134
    %s149 = sphi 0, %s135
    %s153 = sphi 0, %s153
    %s155 = sphi 0, %s153
    %s156 = sphi 0, %s155
    %s170 = sphi 0, %s156
    %s174 = sphi 0, %s174
    %s176 = sphi 0, %s174
    %s177 = sphi 0, %s176
    %s191 = sphi 0, %s177
    %s197 = sphi 0, %s199
    %s200 = sphi 0, %s197
    %s201 = sphi 0, %s200
    %s217 = sphi 0, %s201
  $region4: #{tpu_custom_call.1} parent=0 // loop_header_branch
    %17 = sbr.rel (%p15) target = $region8
  $region5: #{tpu_custom_call.1} parent=0 // loop_body
    %s19 = ssub.s32 %s14, 1
    %s20 = ssub.s32 %s14, 2
    %s21 = sadd.s32 %s14, 1
    %s22 = ssub.s32 %s14, %s21
    %p23 = scmp.eq.s32.totalorder %s22, 0
    %s25 = sadd.s32 %s24, 1
    %s26 = scalar_select %p23, %s24, %s25
    %p29 = pneg %p23
    %p30 = scmp.eq.s32.totalorder %s14, 1
    %p31 = por %p29, %p30
    %p32 = scmp.ne.s32.totalorder %s24, %s27
    %p33 = scmp.eq.s32.totalorder %s14, 0
    %p34 = por %p32, %p33
    %p35 = scmp.ne.s32.totalorder %s24, %s27
    %p36 = scmp.eq.s32.totalorder %s19, 1
    %p37 = por %p35, %p36
    %p38 = scmp.ne.s32.totalorder %s27, %s28
    %p39 = scmp.eq.s32.totalorder %s19, 0
    %p40 = por %p38, %p39
    %p41 = scmp.ne.s32.totalorder %s27, %s28
    %p42 = scmp.eq.s32.totalorder %s20, 1
    %p43 = por %p41, %p42
    %p45 = scmp.ne.s32.totalorder %s28, %s44
    %p46 = scmp.eq.s32.totalorder %s20, 0
    %p47 = por %p45, %p46
    %s49 = sadd.s32 %s48, 1
    %p52 = scmp.eq.s32.totalorder %s14, 1
    %p53 = scmp.ne.s32.totalorder %s48, %s50
    %p54 = scmp.eq.s32.totalorder %s14, 0
    %p55 = por %p53, %p54
    %p56 = scmp.ne.s32.totalorder %s48, %s50
    %p57 = scmp.eq.s32.totalorder %s19, 1
    %p58 = por %p56, %p57
    %p59 = scmp.ne.s32.totalorder %s50, %s51
    %p60 = scmp.eq.s32.totalorder %s19, 0
    %p61 = por %p59, %p60
    %p62 = scmp.ne.s32.totalorder %s50, %s51
    %p63 = scmp.eq.s32.totalorder %s20, 1
    %p64 = por %p62, %p63
    %p66 = scmp.ne.s32.totalorder %s51, %s65
    %p67 = scmp.eq.s32.totalorder %s20, 0
    %p68 = por %p66, %p67
    %s70 = sadd.s32 %s69, 1
    %p73 = scmp.eq.s32.totalorder %s14, 1
    %p74 = scmp.ne.s32.totalorder %s69, %s71
    %p75 = scmp.eq.s32.totalorder %s14, 0
    %p76 = por %p74, %p75
    %p77 = scmp.ne.s32.totalorder %s69, %s71
    %p78 = scmp.eq.s32.totalorder %s19, 1
    %p79 = por %p77, %p78
    %p80 = scmp.ne.s32.totalorder %s71, %s72
    %p81 = scmp.eq.s32.totalorder %s19, 0
    %p82 = por %p80, %p81
    %p83 = scmp.ne.s32.totalorder %s71, %s72
    %p84 = scmp.eq.s32.totalorder %s20, 1
    %p85 = por %p83, %p84
    %p87 = scmp.ne.s32.totalorder %s72, %s86
    %p88 = scmp.eq.s32.totalorder %s20, 0
    %p89 = por %p87, %p88
    %s91 = sadd.s32 %s90, 1
    %p94 = scmp.eq.s32.totalorder %s14, 1
    %p95 = scmp.ne.s32.totalorder %s90, %s92
    %p96 = scmp.eq.s32.totalorder %s14, 0
    %p97 = por %p95, %p96
    %p98 = scmp.ne.s32.totalorder %s90, %s92
    %p99 = scmp.eq.s32.totalorder %s19, 1
    %p100 = por %p98, %p99
    %p101 = scmp.ne.s32.totalorder %s92, %s93
    %p102 = scmp.eq.s32.totalorder %s19, 0
    %p103 = por %p101, %p102
    %p104 = scmp.ne.s32.totalorder %s92, %s93
    %p105 = scmp.eq.s32.totalorder %s20, 1
    %p106 = por %p104, %p105
    %p108 = scmp.ne.s32.totalorder %s93, %s107
    %p109 = scmp.eq.s32.totalorder %s20, 0
    %p110 = por %p108, %p109
    %s112 = sadd.s32 %s111, 1
    %p115 = scmp.eq.s32.totalorder %s14, 1
    %p116 = scmp.ne.s32.totalorder %s111, %s113
    %p117 = scmp.eq.s32.totalorder %s14, 0
    %p118 = por %p116, %p117
    %p119 = scmp.ne.s32.totalorder %s111, %s113
    %p120 = scmp.eq.s32.totalorder %s19, 1
    %p121 = por %p119, %p120
    %p122 = scmp.ne.s32.totalorder %s113, %s114
    %p123 = scmp.eq.s32.totalorder %s19, 0
    %p124 = por %p122, %p123
    %p125 = scmp.ne.s32.totalorder %s113, %s114
    %p126 = scmp.eq.s32.totalorder %s20, 1
    %p127 = por %p125, %p126
    %p129 = scmp.ne.s32.totalorder %s114, %s128
    %p130 = scmp.eq.s32.totalorder %s20, 0
    %p131 = por %p129, %p130
    %s133 = sadd.s32 %s132, 1
    %p136 = scmp.eq.s32.totalorder %s14, 1
    %p137 = scmp.ne.s32.totalorder %s132, %s134
    %p138 = scmp.eq.s32.totalorder %s14, 0
    %p139 = por %p137, %p138
    %p140 = scmp.ne.s32.totalorder %s132, %s134
    %p141 = scmp.eq.s32.totalorder %s19, 1
    %p142 = por %p140, %p141
    %p143 = scmp.ne.s32.totalorder %s134, %s135
    %p144 = scmp.eq.s32.totalorder %s19, 0
    %p145 = por %p143, %p144
    %p146 = scmp.ne.s32.totalorder %s134, %s135
    %p147 = scmp.eq.s32.totalorder %s20, 1
    %p148 = por %p146, %p147
    %p150 = scmp.ne.s32.totalorder %s135, %s149
    %p151 = scmp.eq.s32.totalorder %s20, 0
    %p152 = por %p150, %p151
    %s154 = sadd.s32 %s153, 1
    %p157 = scmp.eq.s32.totalorder %s14, 1
    %p158 = scmp.ne.s32.totalorder %s153, %s155
    %p159 = scmp.eq.s32.totalorder %s14, 0
    %p160 = por %p158, %p159
    %p161 = scmp.ne.s32.totalorder %s153, %s155
    %p162 = scmp.eq.s32.totalorder %s19, 1
    %p163 = por %p161, %p162
    %p164 = scmp.ne.s32.totalorder %s155, %s156
    %p165 = scmp.eq.s32.totalorder %s19, 0
    %p166 = por %p164, %p165
    %p167 = scmp.ne.s32.totalorder %s155, %s156
    %p168 = scmp.eq.s32.totalorder %s20, 1
    %p169 = por %p167, %p168
    %p171 = scmp.ne.s32.totalorder %s156, %s170
    %p172 = scmp.eq.s32.totalorder %s20, 0
    %p173 = por %p171, %p172
    %s175 = sadd.s32 %s174, 1
    %p178 = scmp.eq.s32.totalorder %s14, 1
    %p179 = scmp.ne.s32.totalorder %s174, %s176
    %p180 = scmp.eq.s32.totalorder %s14, 0
    %p181 = por %p179, %p180
    %p182 = scmp.ne.s32.totalorder %s174, %s176
    %p183 = scmp.eq.s32.totalorder %s19, 1
    %p184 = por %p182, %p183
    %p185 = scmp.ne.s32.totalorder %s176, %s177
    %p186 = scmp.eq.s32.totalorder %s19, 0
    %p187 = por %p185, %p186
    %p188 = scmp.ne.s32.totalorder %s176, %s177
    %p189 = scmp.eq.s32.totalorder %s20, 1
    %p190 = por %p188, %p189
    %p192 = scmp.ne.s32.totalorder %s177, %s191
    %p193 = scmp.eq.s32.totalorder %s20, 0
    %p194 = por %p192, %p193
    %s195 = ssub.s32 %s14, %s21
    %p196 = scmp.eq.s32.totalorder %s195, 0
    %s198 = sadd.s32 %s197, 1
    %s199 = scalar_select %p196, %s197, %s198
    %p202 = pneg %p196
    %p203 = scmp.eq.s32.totalorder %s14, 1
    %p204 = por %p202, %p203
    %p205 = scmp.ne.s32.totalorder %s197, %s200
    %p206 = scmp.eq.s32.totalorder %s14, 0
    %p207 = por %p205, %p206
    %p208 = scmp.ne.s32.totalorder %s197, %s200
    %p209 = scmp.eq.s32.totalorder %s19, 1
    %p210 = por %p208, %p209
    %p211 = scmp.ne.s32.totalorder %s200, %s201
    %p212 = scmp.eq.s32.totalorder %s19, 0
    %p213 = por %p211, %p212
    %p214 = scmp.ne.s32.totalorder %s200, %s201
    %p215 = scmp.eq.s32.totalorder %s20, 1
    %p216 = por %p214, %p215
    %p218 = scmp.ne.s32.totalorder %s201, %s217
    %p219 = scmp.eq.s32.totalorder %s20, 0
    %p220 = por %p218, %p219
    %p221 = scmp.le.s32.totalorder 1, %s14
    %p222 = scmp.lt.s32.totalorder %s14, 3
    %p223 = pnand %p221, %p222
    %p224 = pneg %p223
    // Predicated region
    $region9: #{tpu_custom_call.1} parent=5 // pred_check
      _
    $region10: #{tpu_custom_call.1} parent=5 // pred_check_branch
      %226 = sbr.rel (%p223) target = $region12
    $region11: #{tpu_custom_call.1} parent=5 // pred_region
      %s227 = ssub.s32 %s14, 1
      // Predicated region
      $region13: #{tpu_custom_call.1} parent=11 // pred_check
        %p228 = pneg %p61
      $region14: #{tpu_custom_call.1} parent=11 // pred_check_branch
        %230 = sbr.rel (%p228) target = $region16
      $region15: #{tpu_custom_call.1} parent=11 // pred_region
        _
      $region16: #{tpu_custom_call.1} parent=11 // pred_fallthru
        _
      // Predicated region
      $region17: #{tpu_custom_call.1} parent=11 // pred_check
        %p231 = pneg %p82
      $region18: #{tpu_custom_call.1} parent=11 // pred_check_branch
        %233 = sbr.rel (%p231) target = $region20
      $region19: #{tpu_custom_call.1} parent=11 // pred_region
        _
      $region20: #{tpu_custom_call.1} parent=11 // pred_fallthru
        _
      // Predicated region
      $region21: #{tpu_custom_call.1} parent=11 // pred_check
        %p234 = pneg %p103
      $region22: #{tpu_custom_call.1} parent=11 // pred_check_branch
        %236 = sbr.rel (%p234) target = $region24
      $region23: #{tpu_custom_call.1} parent=11 // pred_region
        _
      $region24: #{tpu_custom_call.1} parent=11 // pred_fallthru
        _
      // Predicated region
      $region25: #{tpu_custom_call.1} parent=11 // pred_check
        %p237 = pneg %p124
      $region26: #{tpu_custom_call.1} parent=11 // pred_check_branch
        %239 = sbr.rel (%p237) target = $region28
      $region27: #{tpu_custom_call.1} parent=11 // pred_region
        _
      $region28: #{tpu_custom_call.1} parent=11 // pred_fallthru
        _
      // Predicated region
      $region29: #{tpu_custom_call.1} parent=11 // pred_check
        %p240 = pneg %p145
      $region30: #{tpu_custom_call.1} parent=11 // pred_check_branch
        %242 = sbr.rel (%p240) target = $region32
      $region31: #{tpu_custom_call.1} parent=11 // pred_region
        _
      $region32: #{tpu_custom_call.1} parent=11 // pred_fallthru
        _
      // Predicated region
      $region33: #{tpu_custom_call.1} parent=11 // pred_check
        %p243 = pneg %p166
      $region34: #{tpu_custom_call.1} parent=11 // pred_check_branch
        %245 = sbr.rel (%p243) target = $region36
      $region35: #{tpu_custom_call.1} parent=11 // pred_region
        _
      $region36: #{tpu_custom_call.1} parent=11 // pred_fallthru
        _
      // Predicated region
      $region37: #{tpu_custom_call.1} parent=11 // pred_check
        %p246 = pneg %p187
      $region38: #{tpu_custom_call.1} parent=11 // pred_check_branch
        %248 = sbr.rel (%p246) target = $region40
      $region39: #{tpu_custom_call.1} parent=11 // pred_region
        _
      $region40: #{tpu_custom_call.1} parent=11 // pred_fallthru
        _
    $region12: #{tpu_custom_call.1} parent=5 // pred_fallthru
      _
    %p249 = scmp.lt.s32.totalorder %s14, 2
    // Predicated region
    $region41: #{tpu_custom_call.1} parent=5 // pred_check
      %p250 = pneg %p249
    $region42: #{tpu_custom_call.1} parent=5 // pred_check_branch
      %252 = sbr.rel (%p250) target = $region44
    $region43: #{tpu_custom_call.1} parent=5 // pred_region
      // Predicated region
      $region45: #{tpu_custom_call.1} parent=43 // pred_check
        %p253 = pneg %p34
      $region46: #{tpu_custom_call.1} parent=43 // pred_check_branch
        %255 = sbr.rel (%p253) target = $region48
      $region47: #{tpu_custom_call.1} parent=43 // pred_region
        %p256 = scmp.lt.s32.totalorder %s14, 1
        %s257 = scalar_select %p256, %s14, 1
        %s258 = smul.addr %s257, 41
        %s259 = smul.addr %s258, 4
        %s260 = scalar_lea.vmem %s0, %s259
      $region48: #{tpu_custom_call.1} parent=43 // pred_fallthru
        _
    $region44: #{tpu_custom_call.1} parent=5 // pred_fallthru
      _
    %p261 = scmp.le.s32.totalorder 1, %s14
    %p262 = scmp.lt.s32.totalorder %s14, 3
    %p263 = pnand %p261, %p262
    %p264 = pneg %p263
    // Predicated region
    $region49: #{tpu_custom_call.1} parent=5 // pred_check
      _
    $region50: #{tpu_custom_call.1} parent=5 // pred_check_branch
      %266 = sbr.rel (%p263) target = $region52
    $region51: #{tpu_custom_call.1} parent=5 // pred_region
      %s267 = ssub.s32 %s14, 1
      %p268 = scmp.lt.s32.totalorder %s19, 1
      %s269 = scalar_select %p268, %s19, 1
      %s270 = smul.addr %s269, 41
      %s271 = smul.addr %s270, 4
      %s272 = scalar_lea.vmem %s0, %s271
      %p273 = pneg %p40
      %p274 = pneg %p37
      %p275 = pneg %p61
      %p276 = pneg %p58
      %p277 = pneg %p82
      %p278 = pneg %p79
      %p279 = pneg %p103
      %p280 = pneg %p100
      %p281 = pneg %p124
      %p282 = pneg %p121
      %p283 = pneg %p145
      %p284 = pneg %p142
      %p285 = pneg %p166
      %p286 = pneg %p163
      %p287 = pneg %p187
      %p288 = pneg %p184
      %p289 = pneg %p213
      %p290 = pneg %p210
      %p291 = scmp.lt.s32.totalorder %s19, 1
      %s292 = scalar_select %p291, %s19, 1
      %s293 = smul.addr %s292, 41
      %s294 = smul.addr %s293, 4
      %s295 = scalar_lea.vmem %s8, %s294
      %p296 = scmp.lt.s32.totalorder %s19, 1
      %s297 = scalar_select %p296, %s19, 1
      %s298 = smul.addr %s297, 41
      %s299 = smul.addr %s298, 4
      %s300 = scalar_lea.vmem %s0, %s299
      %p301 = scmp.lt.s32.totalorder %s19, 1
      %s302 = scalar_select %p301, %s19, 1
      %s303 = smul.addr %s302, 41
      %s304 = smul.addr %s303, 4
      %s305 = scalar_lea.vmem %s8, %s304
      %v307 = vld [vmem:[%s300] sm:$0xf]
      %v308 = vld [vmem:[%s300 + $0x4] sm:$0xf]
      %v309 = vld [vmem:[%s300 + $0x8] sm:$0xf]
      %v310 = vld [vmem:[%s300 + $0xc] sm:$0xf]
      %v311 = vld [vmem:[%s300 + $0x10] sm:$0xf]
      %v312 = vld [vmem:[%s300 + $0x14] sm:$0xf]
      %v313 = vld [vmem:[%s300 + $0x18] sm:$0xf]
      %v314 = vld [vmem:[%s300 + $0x1c] sm:$0xf]
      %v315 = vld [vmem:[%s300 + $0x20] sm:$0xf]
      %v316 = vld [vmem:[%s300 + $0x24] sm:$0xf]
      %v317 = vld [vmem:[%s300 + $0x28] sm:$0xf]
      %v318 = vld [vmem:[%s300 + $0x2c] sm:$0xf]
      %v319 = vld [vmem:[%s300 + $0x30] sm:$0xf]
      %v320 = vld [vmem:[%s300 + $0x34] sm:$0xf]
      %v321 = vld [vmem:[%s300 + $0x38] sm:$0xf]
      %v322 = vld [vmem:[%s300 + $0x3c] sm:$0xf]
      %v323 = vld [vmem:[%s300 + $0x40] sm:$0xf]
      %v324 = vld [vmem:[%s300 + $0x44] sm:$0xf]
      %v325 = vld [vmem:[%s300 + $0x48] sm:$0xf]
      %v326 = vld [vmem:[%s300 + $0x4c] sm:$0xf]
      %v327 = vld [vmem:[%s300 + $0x50] sm:$0xf]
      %v328 = vld [vmem:[%s300 + $0x54] sm:$0xf]
      %v329 = vld [vmem:[%s300 + $0x58] sm:$0xf]
      %v330 = vld [vmem:[%s300 + $0x5c] sm:$0xf]
      %v331 = vld [vmem:[%s300 + $0x60] sm:$0xf]
      %v332 = vld [vmem:[%s300 + $0x64] sm:$0xf]
      %v333 = vld [vmem:[%s300 + $0x68] sm:$0xf]
      %v334 = vld [vmem:[%s300 + $0x6c] sm:$0xf]
      %v335 = vld [vmem:[%s300 + $0x70] sm:$0xf]
      %v336 = vld [vmem:[%s300 + $0x74] sm:$0xf]
      %v337 = vld [vmem:[%s300 + $0x78] sm:$0xf]
      %v338 = vld [vmem:[%s300 + $0x7c] sm:$0xf]
      %v339 = vld [vmem:[%s300 + $0x80] sm:$0xf]
      %v340 = vld [vmem:[%s300 + $0x84] sm:$0xf]
      %v341 = vld [vmem:[%s300 + $0x88] sm:$0xf]
      %v342 = vld [vmem:[%s300 + $0x8c] sm:$0xf]
      %v343 = vld [vmem:[%s300 + $0x90] sm:$0xf]
      %v344 = vld [vmem:[%s300 + $0x94] sm:$0xf]
      %v345 = vld [vmem:[%s300 + $0x98] sm:$0xf]
      %v346 = vld [vmem:[%s300 + $0x9c] sm:$0xf]
      %v347 = vld [vmem:[%s300 + $0xa0] sm:$0x3]
      %v348 = vld [vmem:[%s2] sm:$0xf]
      %v349 = vld [vmem:[%s2 + $0x4] sm:$0xf]
      %v350 = vld [vmem:[%s2 + $0x8] sm:$0xf]
      %v351 = vld [vmem:[%s2 + $0xc] sm:$0xf]
      %v352 = vld [vmem:[%s3] sm:$0x1]
      %v354 = vperm.slane %v352, 0
      %v397 = vunpack.c.l.b16 %v307
      %v398 = vunpack.c.l.b16 %v308
      %v399 = vunpack.c.l.b16 %v309
      %v400 = vunpack.c.l.b16 %v310
      %v401 = vunpack.c.l.b16 %v311
      %v402 = vunpack.c.l.b16 %v312
      %v403 = vunpack.c.l.b16 %v313
      %v404 = vunpack.c.l.b16 %v314
      %v405 = vunpack.c.l.b16 %v315
      %v406 = vunpack.c.l.b16 %v316
      %v407 = vunpack.c.l.b16 %v317
      %v408 = vunpack.c.l.b16 %v318
      %v409 = vunpack.c.l.b16 %v319
      %v410 = vunpack.c.l.b16 %v320
      %v411 = vunpack.c.l.b16 %v321
      %v412 = vunpack.c.l.b16 %v322
      %v413 = vunpack.c.l.b16 %v323
      %v414 = vunpack.c.l.b16 %v324
      %v415 = vunpack.c.l.b16 %v325
      %v416 = vunpack.c.l.b16 %v326
      %v417 = vunpack.c.l.b16 %v327
      %v418 = vunpack.c.l.b16 %v328
      %v419 = vunpack.c.l.b16 %v329
      %v420 = vunpack.c.l.b16 %v330
      %v421 = vunpack.c.l.b16 %v331
      %v422 = vunpack.c.l.b16 %v332
      %v423 = vunpack.c.l.b16 %v333
      %v424 = vunpack.c.l.b16 %v334
      %v425 = vunpack.c.l.b16 %v335
      %v426 = vunpack.c.l.b16 %v336
      %v427 = vunpack.c.l.b16 %v337
      %v428 = vunpack.c.l.b16 %v338
      %v429 = vunpack.c.l.b16 %v339
      %v430 = vunpack.c.l.b16 %v340
      %v431 = vunpack.c.l.b16 %v341
      %v432 = vunpack.c.l.b16 %v342
      %v433 = vunpack.c.l.b16 %v343
      %v434 = vunpack.c.l.b16 %v344
      %v435 = vunpack.c.l.b16 %v345
      %v436 = vunpack.c.l.b16 %v346
      %v437 = vunpack.c.l.b16 %v347
      %v438 = vpack.c.b16 %v398, %v397
      %v439 = vpack.c.b16 %v400, %v399
      %v440 = vpack.c.b16 %v402, %v401
      %v441 = vpack.c.b16 %v404, %v403
      %v442 = vpack.c.b16 %v406, %v405
      %v443 = vpack.c.b16 %v408, %v407
      %v444 = vpack.c.b16 %v410, %v409
      %v445 = vpack.c.b16 %v412, %v411
      %v446 = vpack.c.b16 %v414, %v413
      %v447 = vpack.c.b16 %v416, %v415
      %v448 = vpack.c.b16 %v418, %v417
      %v449 = vpack.c.b16 %v420, %v419
      %v450 = vpack.c.b16 %v422, %v421
      %v451 = vpack.c.b16 %v424, %v423
      %v452 = vpack.c.b16 %v426, %v425
      %v453 = vpack.c.b16 %v428, %v427
      %v454 = vpack.c.b16 %v430, %v429
      %v455 = vpack.c.b16 %v432, %v431
      %v456 = vpack.c.b16 %v434, %v433
      %v457 = vpack.c.b16 %v436, %v435
      %v458 = vpack.c.b16 %v437, %v437
      %v463 = vunpack.c.l.b16 %v348
      %v464 = vunpack.c.l.b16 %v349
      %v465 = vunpack.c.l.b16 %v350
      %v466 = vunpack.c.l.b16 %v351
      %v467 = vpack.c.b16 %v464, %v463
      %v468 = vpack.c.b16 %v466, %v465
      %vm471 = vcmask 261120
      %v473 = vsel %vm471, %v438, 0
      %v476 = vsel %vm471, %v439, 0
      %v479 = vsel %vm471, %v440, 0
      %v482 = vsel %vm471, %v441, 0
      %v485 = vsel %vm471, %v442, 0
      %v488 = vsel %vm471, %v443, 0
      %v491 = vsel %vm471, %v444, 0
      %v494 = vsel %vm471, %v445, 0
      %v497 = vsel %vm471, %v446, 0
      %v500 = vsel %vm471, %v447, 0
      %v503 = vsel %vm471, %v448, 0
      %v506 = vsel %vm471, %v449, 0
      %v509 = vsel %vm471, %v450, 0
      %v512 = vsel %vm471, %v451, 0
      %v515 = vsel %vm471, %v452, 0
      %v518 = vsel %vm471, %v453, 0
      %v521 = vsel %vm471, %v454, 0
      %v524 = vsel %vm471, %v455, 0
      %v527 = vsel %vm471, %v456, 0
      %v530 = vsel %vm471, %v457, 0
      %v533 = vsel %vm471, %v458, 0
      %535 = vmatpush.bf16.msra.mxu0 0
      %536 = vmatpush.bf16.msra.mxu0 0
      %537 = vmatpush.bf16.msra.mxu0 0
      %538 = vmatpush.bf16.msra.mxu0 0
      %539 = vmatpush.bf16.msra.mxu0 0
      %540 = vmatpush.bf16.msra.mxu0 0
      %541 = vmatpush.bf16.msra.mxu0 %v468
      %542 = vmatpush.bf16.msra.mxu0 %v467
      %543 = vmatmul.bf16.gmra.mxu0 %v473
      %v544 = vpop.f32.mrf.mxu0
      %v545 = vadd.f32 %v354, %v544
      %v546 = vpop.f32.mrf.mxu0
      %v547 = vadd.f32 %v354, %v546
      %548 = vmatmul.bf16.gmra.mxu0 %v476
      %v549 = vpop.f32.mrf.mxu0
      %v550 = vadd.f32 %v354, %v549
      %v551 = vpop.f32.mrf.mxu0
      %v552 = vadd.f32 %v354, %v551
      %553 = vmatmul.bf16.gmra.mxu0 %v479
      %v554 = vpop.f32.mrf.mxu0
      %v555 = vadd.f32 %v354, %v554
      %v556 = vpop.f32.mrf.mxu0
      %v557 = vadd.f32 %v354, %v556
      %558 = vmatmul.bf16.gmra.mxu0 %v482
      %v559 = vpop.f32.mrf.mxu0
      %v560 = vadd.f32 %v354, %v559
      %v561 = vpop.f32.mrf.mxu0
      %v562 = vadd.f32 %v354, %v561
      %563 = vmatmul.bf16.gmra.mxu0 %v485
      %v564 = vpop.f32.mrf.mxu0
      %v565 = vadd.f32 %v354, %v564
      %v566 = vpop.f32.mrf.mxu0
      %v567 = vadd.f32 %v354, %v566
      %568 = vmatmul.bf16.gmra.mxu0 %v488
      %v569 = vpop.f32.mrf.mxu0
      %v570 = vadd.f32 %v354, %v569
      %v571 = vpop.f32.mrf.mxu0
      %v572 = vadd.f32 %v354, %v571
      %573 = vmatmul.bf16.gmra.mxu0 %v491
      %v574 = vpop.f32.mrf.mxu0
      %v575 = vadd.f32 %v354, %v574
      %v576 = vpop.f32.mrf.mxu0
      %v577 = vadd.f32 %v354, %v576
      %578 = vmatmul.bf16.gmra.mxu0 %v494
      %v579 = vpop.f32.mrf.mxu0
      %v580 = vadd.f32 %v354, %v579
      %v581 = vpop.f32.mrf.mxu0
      %v582 = vadd.f32 %v354, %v581
      %583 = vmatmul.bf16.gmra.mxu0 %v497
      %v584 = vpop.f32.mrf.mxu0
      %v585 = vadd.f32 %v354, %v584
      %v586 = vpop.f32.mrf.mxu0
      %v587 = vadd.f32 %v354, %v586
      %588 = vmatmul.bf16.gmra.mxu0 %v500
      %v589 = vpop.f32.mrf.mxu0
      %v590 = vadd.f32 %v354, %v589
      %v591 = vpop.f32.mrf.mxu0
      %v592 = vadd.f32 %v354, %v591
      %593 = vmatmul.bf16.gmra.mxu0 %v503
      %v594 = vpop.f32.mrf.mxu0
      %v595 = vadd.f32 %v354, %v594
      %v596 = vpop.f32.mrf.mxu0
      %v597 = vadd.f32 %v354, %v596
      %598 = vmatmul.bf16.gmra.mxu0 %v506
      %v599 = vpop.f32.mrf.mxu0
      %v600 = vadd.f32 %v354, %v599
      %v601 = vpop.f32.mrf.mxu0
      %v602 = vadd.f32 %v354, %v601
      %603 = vmatmul.bf16.gmra.mxu0 %v509
      %v604 = vpop.f32.mrf.mxu0
      %v605 = vadd.f32 %v354, %v604
      %v606 = vpop.f32.mrf.mxu0
      %v607 = vadd.f32 %v354, %v606
      %608 = vmatmul.bf16.gmra.mxu0 %v512
      %v609 = vpop.f32.mrf.mxu0
      %v610 = vadd.f32 %v354, %v609
      %v611 = vpop.f32.mrf.mxu0
      %v612 = vadd.f32 %v354, %v611
      %613 = vmatmul.bf16.gmra.mxu0 %v515
      %v614 = vpop.f32.mrf.mxu0
      %v615 = vadd.f32 %v354, %v614
      %v616 = vpop.f32.mrf.mxu0
      %v617 = vadd.f32 %v354, %v616
      %618 = vmatmul.bf16.gmra.mxu0 %v518
      %v619 = vpop.f32.mrf.mxu0
      %v620 = vadd.f32 %v354, %v619
      %v621 = vpop.f32.mrf.mxu0
      %v622 = vadd.f32 %v354, %v621
      %623 = vmatmul.bf16.gmra.mxu0 %v521
      %v624 = vpop.f32.mrf.mxu0
      %v625 = vadd.f32 %v354, %v624
      %v626 = vpop.f32.mrf.mxu0
      %v627 = vadd.f32 %v354, %v626
      %628 = vmatmul.bf16.gmra.mxu0 %v524
      %v629 = vpop.f32.mrf.mxu0
      %v630 = vadd.f32 %v354, %v629
      %v631 = vpop.f32.mrf.mxu0
      %v632 = vadd.f32 %v354, %v631
      %633 = vmatmul.bf16.gmra.mxu0 %v527
      %v634 = vpop.f32.mrf.mxu0
      %v635 = vadd.f32 %v354, %v634
      %v636 = vpop.f32.mrf.mxu0
      %v637 = vadd.f32 %v354, %v636
      %638 = vmatmul.bf16.gmra.mxu0 %v530
      %v639 = vpop.f32.mrf.mxu0
      %v640 = vadd.f32 %v354, %v639
      %v641 = vpop.f32.mrf.mxu0
      %v642 = vadd.f32 %v354, %v641
      %643 = vmatmul.bf16.gmra.mxu0 %v533
      %v644 = vpop.f32.mrf.mxu0
      %v645 = vadd.f32 %v354, %v644
      %v646 = vpop.f32.mrf.mxu0
      %647 = vdwg.mxu0
      %v648 = vmax.f32 %v545, 0.0
      %v649 = vmax.f32 %v547, 0.0
      %v650 = vmax.f32 %v550, 0.0
      %v651 = vmax.f32 %v552, 0.0
      %v652 = vmax.f32 %v555, 0.0
      %v653 = vmax.f32 %v557, 0.0
      %v654 = vmax.f32 %v560, 0.0
      %v655 = vmax.f32 %v562, 0.0
      %v656 = vmax.f32 %v565, 0.0
      %v657 = vmax.f32 %v567, 0.0
      %v658 = vmax.f32 %v570, 0.0
      %v659 = vmax.f32 %v572, 0.0
      %v660 = vmax.f32 %v575, 0.0
      %v661 = vmax.f32 %v577, 0.0
      %v662 = vmax.f32 %v580, 0.0
      %v663 = vmax.f32 %v582, 0.0
      %v664 = vmax.f32 %v585, 0.0
      %v665 = vmax.f32 %v587, 0.0
      %v666 = vmax.f32 %v590, 0.0
      %v667 = vmax.f32 %v592, 0.0
      %v668 = vmax.f32 %v595, 0.0
      %v669 = vmax.f32 %v597, 0.0
      %v670 = vmax.f32 %v600, 0.0
      %v671 = vmax.f32 %v602, 0.0
      %v672 = vmax.f32 %v605, 0.0
      %v673 = vmax.f32 %v607, 0.0
      %v674 = vmax.f32 %v610, 0.0
      %v675 = vmax.f32 %v612, 0.0
      %v676 = vmax.f32 %v615, 0.0
      %v677 = vmax.f32 %v617, 0.0
      %v678 = vmax.f32 %v620, 0.0
      %v679 = vmax.f32 %v622, 0.0
      %v680 = vmax.f32 %v625, 0.0
      %v681 = vmax.f32 %v627, 0.0
      %v682 = vmax.f32 %v630, 0.0
      %v683 = vmax.f32 %v632, 0.0
      %v684 = vmax.f32 %v635, 0.0
      %v685 = vmax.f32 %v637, 0.0
      %v686 = vmax.f32 %v640, 0.0
      %v687 = vmax.f32 %v642, 0.0
      %v688 = vmax.f32 %v645, 0.0
      %v689 = vld [vmem:[%s1] sm:$0xff]
      %v690 = vld [vmem:[%s1 + $0x8] sm:$0xff]
      %v691 = vld [vmem:[%s1 + $0x10] sm:$0xff]
      %v692 = vld [vmem:[%s1 + $0x18] sm:$0xff]
      %v693 = vld [vmem:[%s1 + $0x20] sm:$0xff]
      %v694 = vld [vmem:[%s1 + $0x28] sm:$0xff]
      %v695 = vld [vmem:[%s1 + $0x30] sm:$0xff]
      %v696 = vld [vmem:[%s1 + $0x38] sm:$0xff]
      %v697 = vld [vmem:[%s1 + $0x40] sm:$0xff]
      %v698 = vld [vmem:[%s1 + $0x48] sm:$0xff]
      %v699 = vld [vmem:[%s1 + $0x50] sm:$0xff]
      %v700 = vld [vmem:[%s1 + $0x58] sm:$0xff]
      %v701 = vld [vmem:[%s1 + $0x60] sm:$0xff]
      %v702 = vld [vmem:[%s1 + $0x68] sm:$0xff]
      %v703 = vld [vmem:[%s1 + $0x70] sm:$0xff]
      %v704 = vld [vmem:[%s1 + $0x78] sm:$0xff]
      %v705 = vld [vmem:[%s1 + $0x80] sm:$0xff]
      %v706 = vld [vmem:[%s1 + $0x88] sm:$0xff]
      %v707 = vld [vmem:[%s1 + $0x90] sm:$0xff]
      %v708 = vld [vmem:[%s1 + $0x98] sm:$0xff]
      %v709 = vld [vmem:[%s1 + $0xa0] sm:$0xff]
      %v710 = vld [vmem:[%s1 + $0xa8] sm:$0xff]
      %v711 = vld [vmem:[%s1 + $0xb0] sm:$0xff]
      %v712 = vld [vmem:[%s1 + $0xb8] sm:$0xff]
      %v713 = vld [vmem:[%s1 + $0xc0] sm:$0xff]
      %v714 = vld [vmem:[%s1 + $0xc8] sm:$0xff]
      %v715 = vld [vmem:[%s1 + $0xd0] sm:$0xff]
      %v716 = vld [vmem:[%s1 + $0xd8] sm:$0xff]
      %v717 = vld [vmem:[%s1 + $0xe0] sm:$0xff]
      %v718 = vld [vmem:[%s1 + $0xe8] sm:$0xff]
      %v719 = vld [vmem:[%s1 + $0xf0] sm:$0xff]
      %v720 = vld [vmem:[%s1 + $0xf8] sm:$0xff]
      %v721 = vld [vmem:[%s1 + $0x100] sm:$0xff]
      %v722 = vld [vmem:[%s1 + $0x108] sm:$0xff]
      %v723 = vld [vmem:[%s1 + $0x110] sm:$0xff]
      %v724 = vld [vmem:[%s1 + $0x118] sm:$0xff]
      %v725 = vld [vmem:[%s1 + $0x120] sm:$0xff]
      %v726 = vld [vmem:[%s1 + $0x128] sm:$0xff]
      %v727 = vld [vmem:[%s1 + $0x130] sm:$0xff]
      %v728 = vld [vmem:[%s1 + $0x138] sm:$0xff]
      %v729 = vld [vmem:[%s1 + $0x140] sm:$0xf]
      %731 = vset.pattern.permute.xlu0 0
      %732 = vperm.xlu0 %731, %v689
      %v733 = vpop.permute.xlu0 %732
      %736 = vset.pattern.permute.xlu0 0
      %737 = vperm.xlu0 %736, %v690
      %v738 = vpop.permute.xlu0 %737
      %741 = vset.pattern.permute.xlu0 0
      %742 = vperm.xlu0 %741, %v691
      %v743 = vpop.permute.xlu0 %742
      %746 = vset.pattern.permute.xlu0 0
      %747 = vperm.xlu0 %746, %v692
      %v748 = vpop.permute.xlu0 %747
      %751 = vset.pattern.permute.xlu0 0
      %752 = vperm.xlu0 %751, %v693
      %v753 = vpop.permute.xlu0 %752
      %756 = vset.pattern.permute.xlu0 0
      %757 = vperm.xlu0 %756, %v694
      %v758 = vpop.permute.xlu0 %757
      %761 = vset.pattern.permute.xlu0 0
      %762 = vperm.xlu0 %761, %v695
      %v763 = vpop.permute.xlu0 %762
      %766 = vset.pattern.permute.xlu0 0
      %767 = vperm.xlu0 %766, %v696
      %v768 = vpop.permute.xlu0 %767
      %771 = vset.pattern.permute.xlu0 0
      %772 = vperm.xlu0 %771, %v697
      %v773 = vpop.permute.xlu0 %772
      %776 = vset.pattern.permute.xlu0 0
      %777 = vperm.xlu0 %776, %v698
      %v778 = vpop.permute.xlu0 %777
      %781 = vset.pattern.permute.xlu0 0
      %782 = vperm.xlu0 %781, %v699
      %v783 = vpop.permute.xlu0 %782
      %786 = vset.pattern.permute.xlu0 0
      %787 = vperm.xlu0 %786, %v700
      %v788 = vpop.permute.xlu0 %787
      %791 = vset.pattern.permute.xlu0 0
      %792 = vperm.xlu0 %791, %v701
      %v793 = vpop.permute.xlu0 %792
      %796 = vset.pattern.permute.xlu0 0
      %797 = vperm.xlu0 %796, %v702
      %v798 = vpop.permute.xlu0 %797
      %801 = vset.pattern.permute.xlu0 0
      %802 = vperm.xlu0 %801, %v703
      %v803 = vpop.permute.xlu0 %802
      %806 = vset.pattern.permute.xlu0 0
      %807 = vperm.xlu0 %806, %v704
      %v808 = vpop.permute.xlu0 %807
      %811 = vset.pattern.permute.xlu0 0
      %812 = vperm.xlu0 %811, %v705
      %v813 = vpop.permute.xlu0 %812
      %816 = vset.pattern.permute.xlu0 0
      %817 = vperm.xlu0 %816, %v706
      %v818 = vpop.permute.xlu0 %817
      %821 = vset.pattern.permute.xlu0 0
      %822 = vperm.xlu0 %821, %v707
      %v823 = vpop.permute.xlu0 %822
      %826 = vset.pattern.permute.xlu0 0
      %827 = vperm.xlu0 %826, %v708
      %v828 = vpop.permute.xlu0 %827
      %831 = vset.pattern.permute.xlu0 0
      %832 = vperm.xlu0 %831, %v709
      %v833 = vpop.permute.xlu0 %832
      %836 = vset.pattern.permute.xlu0 0
      %837 = vperm.xlu0 %836, %v710
      %v838 = vpop.permute.xlu0 %837
      %841 = vset.pattern.permute.xlu0 0
      %842 = vperm.xlu0 %841, %v711
      %v843 = vpop.permute.xlu0 %842
      %846 = vset.pattern.permute.xlu0 0
      %847 = vperm.xlu0 %846, %v712
      %v848 = vpop.permute.xlu0 %847
      %851 = vset.pattern.permute.xlu0 0
      %852 = vperm.xlu0 %851, %v713
      %v853 = vpop.permute.xlu0 %852
      %856 = vset.pattern.permute.xlu0 0
      %857 = vperm.xlu0 %856, %v714
      %v858 = vpop.permute.xlu0 %857
      %861 = vset.pattern.permute.xlu0 0
      %862 = vperm.xlu0 %861, %v715
      %v863 = vpop.permute.xlu0 %862
      %866 = vset.pattern.permute.xlu0 0
      %867 = vperm.xlu0 %866, %v716
      %v868 = vpop.permute.xlu0 %867
      %871 = vset.pattern.permute.xlu0 0
      %872 = vperm.xlu0 %871, %v717
      %v873 = vpop.permute.xlu0 %872
      %876 = vset.pattern.permute.xlu0 0
      %877 = vperm.xlu0 %876, %v718
      %v878 = vpop.permute.xlu0 %877
      %881 = vset.pattern.permute.xlu0 0
      %882 = vperm.xlu0 %881, %v719
      %v883 = vpop.permute.xlu0 %882
      %886 = vset.pattern.permute.xlu0 0
      %887 = vperm.xlu0 %886, %v720
      %v888 = vpop.permute.xlu0 %887
      %891 = vset.pattern.permute.xlu0 0
      %892 = vperm.xlu0 %891, %v721
      %v893 = vpop.permute.xlu0 %892
      %896 = vset.pattern.permute.xlu0 0
      %897 = vperm.xlu0 %896, %v722
      %v898 = vpop.permute.xlu0 %897
      %901 = vset.pattern.permute.xlu0 0
      %902 = vperm.xlu0 %901, %v723
      %v903 = vpop.permute.xlu0 %902
      %906 = vset.pattern.permute.xlu0 0
      %907 = vperm.xlu0 %906, %v724
      %v908 = vpop.permute.xlu0 %907
      %911 = vset.pattern.permute.xlu0 0
      %912 = vperm.xlu0 %911, %v725
      %v913 = vpop.permute.xlu0 %912
      %916 = vset.pattern.permute.xlu0 0
      %917 = vperm.xlu0 %916, %v726
      %v918 = vpop.permute.xlu0 %917
      %921 = vset.pattern.permute.xlu0 0
      %922 = vperm.xlu0 %921, %v727
      %v923 = vpop.permute.xlu0 %922
      %926 = vset.pattern.permute.xlu0 0
      %927 = vperm.xlu0 %926, %v728
      %v928 = vpop.permute.xlu0 %927
      %931 = vset.pattern.permute.xlu0 0
      %932 = vperm.xlu0 %931, %v729
      %v933 = vpop.permute.xlu0 %932
      %v935 = vmul.f32 %v648, %v733
      %v936 = vmul.f32 %v649, %v738
      %v937 = vmul.f32 %v650, %v743
      %v938 = vmul.f32 %v651, %v748
      %v939 = vmul.f32 %v652, %v753
      %v940 = vmul.f32 %v653, %v758
      %v941 = vmul.f32 %v654, %v763
      %v942 = vmul.f32 %v655, %v768
      %v943 = vmul.f32 %v656, %v773
      %v944 = vmul.f32 %v657, %v778
      %v945 = vmul.f32 %v658, %v783
      %v946 = vmul.f32 %v659, %v788
      %v947 = vmul.f32 %v660, %v793
      %v948 = vmul.f32 %v661, %v798
      %v949 = vmul.f32 %v662, %v803
      %v950 = vmul.f32 %v663, %v808
      %v951 = vmul.f32 %v664, %v813
      %v952 = vmul.f32 %v665, %v818
      %v953 = vmul.f32 %v666, %v823
      %v954 = vmul.f32 %v667, %v828
      %v955 = vmul.f32 %v668, %v833
      %v956 = vmul.f32 %v669, %v838
      %v957 = vmul.f32 %v670, %v843
      %v958 = vmul.f32 %v671, %v848
      %v959 = vmul.f32 %v672, %v853
      %v960 = vmul.f32 %v673, %v858
      %v961 = vmul.f32 %v674, %v863
      %v962 = vmul.f32 %v675, %v868
      %v963 = vmul.f32 %v676, %v873
      %v964 = vmul.f32 %v677, %v878
      %v965 = vmul.f32 %v678, %v883
      %v966 = vmul.f32 %v679, %v888
      %v967 = vmul.f32 %v680, %v893
      %v968 = vmul.f32 %v681, %v898
      %v969 = vmul.f32 %v682, %v903
      %v970 = vmul.f32 %v683, %v908
      %v971 = vmul.f32 %v684, %v913
      %v972 = vmul.f32 %v685, %v918
      %v973 = vmul.f32 %v686, %v923
      %v974 = vmul.f32 %v687, %v928
      %v975 = vmul.f32 %v688, %v933
      %vm976 = vcmask 60416
      %977 = vst.msk [vmem:[#allocation2] sm:$0xf] %vm976, 0
      %978 = vst.msk [vmem:[#allocation2 + $0x4] sm:$0xf] %vm976, 0
      %vm979 = vcmask 58368
      %vm980 = vsmask.f32 1280
      %vm981 = vmand %vm979, %vm980
      %v982 = vld [vmem:[#allocation2 + $0x8] sm:$0x3]
      %v983 = vsel %vm981, 0, %v982
      %984 = vst [vmem:[#allocation2 + $0x8] sm:$0x3] %v983
      %vm985 = vcmask 60419
      %vm986 = vsmask.f32 7950
      %vm987 = vmand %vm985, %vm986
      %v988 = vld [vmem:[#allocation2 + $0xa8] sm:$0x8]
      %v989 = vsel %vm987, 0, %v988
      %990 = vst [vmem:[#allocation2 + $0xa8] sm:$0x8] %v989
      %991 = vst.msk [vmem:[#allocation2 + $0xac] sm:$0xf] %vm976, 0
      %992 = vst.msk [vmem:[#allocation2 + $0xb0] sm:$0xf] %vm976, 0
      %993 = vst.msk [vmem:[#allocation2 + $0xb4] sm:$0xf] %vm976, 0
      %v994 = vpack.c.bf16 %v935, %v935
      %v995 = vpack.c.bf16 %v936, %v936
      %v996 = vpack.c.bf16 %v937, %v937
      %v997 = vpack.c.bf16 %v938, %v938
      %v998 = vpack.c.bf16 %v939, %v939
      %v999 = vpack.c.bf16 %v940, %v940
      %v1000 = vpack.c.bf16 %v941, %v941
      %v1001 = vpack.c.bf16 %v942, %v942
      %v1002 = vpack.c.bf16 %v943, %v943
      %v1003 = vpack.c.bf16 %v944, %v944
      %v1004 = vpack.c.bf16 %v945, %v945
      %v1005 = vpack.c.bf16 %v946, %v946
      %v1006 = vpack.c.bf16 %v947, %v947
      %v1007 = vpack.c.bf16 %v948, %v948
      %v1008 = vpack.c.bf16 %v949, %v949
      %v1009 = vpack.c.bf16 %v950, %v950
      %v1010 = vpack.c.bf16 %v951, %v951
      %v1011 = vpack.c.bf16 %v952, %v952
      %v1012 = vpack.c.bf16 %v953, %v953
      %v1013 = vpack.c.bf16 %v954, %v954
      %v1014 = vpack.c.bf16 %v955, %v955
      %v1015 = vpack.c.bf16 %v956, %v956
      %v1016 = vpack.c.bf16 %v957, %v957
      %v1017 = vpack.c.bf16 %v958, %v958
      %v1018 = vpack.c.bf16 %v959, %v959
      %v1019 = vpack.c.bf16 %v960, %v960
      %v1020 = vpack.c.bf16 %v961, %v961
      %v1021 = vpack.c.bf16 %v962, %v962
      %v1022 = vpack.c.bf16 %v963, %v963
      %v1023 = vpack.c.bf16 %v964, %v964
      %v1024 = vpack.c.bf16 %v965, %v965
      %v1025 = vpack.c.bf16 %v966, %v966
      %v1026 = vpack.c.bf16 %v967, %v967
      %v1027 = vpack.c.bf16 %v968, %v968
      %v1028 = vpack.c.bf16 %v969, %v969
      %v1029 = vpack.c.bf16 %v970, %v970
      %v1030 = vpack.c.bf16 %v971, %v971
      %v1031 = vpack.c.bf16 %v972, %v972
      %v1032 = vpack.c.bf16 %v973, %v973
      %v1033 = vpack.c.bf16 %v974, %v974
      %v1034 = vpack.c.bf16 %v975, %v975
      %vm1035 = vsmask.f32 5392
      %vm1036 = vmor %vm980, %vm1035
      %v1038 = vshrl.u32 %v994, 16
      %v1040 = vrot.slane %v1038, 6
      %v1041 = vshll.u32 %v994, 16
      %v1043 = vrot.slane %v1041, 7
      %v1044 = vor.u32 %v1040, %v1043
      %v1045 = vrot.slane %v1044, 4
      %v1047 = vshrl.u32 %v995, 16
      %v1049 = vrot.slane %v1047, 6
      %v1050 = vshll.u32 %v995, 16
      %v1052 = vrot.slane %v1050, 7
      %v1053 = vor.u32 %v1049, %v1052
      %v1054 = vsel %vm1036, %v1045, %v1053
      %v1055 = vrot.slane %v1053, 4
      %v1057 = vshrl.u32 %v996, 16
      %v1059 = vrot.slane %v1057, 6
      %v1060 = vshll.u32 %v996, 16
      %v1062 = vrot.slane %v1060, 7
      %v1063 = vor.u32 %v1059, %v1062
      %v1064 = vsel %vm1036, %v1055, %v1063
      %v1065 = vrot.slane %v1063, 4
      %v1067 = vshrl.u32 %v997, 16
      %v1069 = vrot.slane %v1067, 6
      %v1070 = vshll.u32 %v997, 16
      %v1072 = vrot.slane %v1070, 7
      %v1073 = vor.u32 %v1069, %v1072
      %v1074 = vsel %vm1036, %v1065, %v1073
      %v1075 = vrot.slane %v1073, 4
      %v1077 = vshrl.u32 %v998, 16
      %v1079 = vrot.slane %v1077, 6
      %v1080 = vshll.u32 %v998, 16
      %v1082 = vrot.slane %v1080, 7
      %v1083 = vor.u32 %v1079, %v1082
      %v1084 = vsel %vm1036, %v1075, %v1083
      %v1085 = vrot.slane %v1083, 4
      %v1087 = vshrl.u32 %v999, 16
      %v1089 = vrot.slane %v1087, 6
      %v1090 = vshll.u32 %v999, 16
      %v1092 = vrot.slane %v1090, 7
      %v1093 = vor.u32 %v1089, %v1092
      %v1094 = vsel %vm1036, %v1085, %v1093
      %v1095 = vrot.slane %v1093, 4
      %v1097 = vshrl.u32 %v1000, 16
      %v1099 = vrot.slane %v1097, 6
      %v1100 = vshll.u32 %v1000, 16
      %v1102 = vrot.slane %v1100, 7
      %v1103 = vor.u32 %v1099, %v1102
      %v1104 = vsel %vm1036, %v1095, %v1103
      %v1105 = vrot.slane %v1103, 4
      %v1107 = vshrl.u32 %v1001, 16
      %v1109 = vrot.slane %v1107, 6
      %v1110 = vshll.u32 %v1001, 16
      %v1112 = vrot.slane %v1110, 7
      %v1113 = vor.u32 %v1109, %v1112
      %v1114 = vsel %vm1036, %v1105, %v1113
      %v1115 = vrot.slane %v1113, 4
      %v1117 = vshrl.u32 %v1002, 16
      %v1119 = vrot.slane %v1117, 6
      %v1120 = vshll.u32 %v1002, 16
      %v1122 = vrot.slane %v1120, 7
      %v1123 = vor.u32 %v1119, %v1122
      %v1124 = vsel %vm1036, %v1115, %v1123
      %v1125 = vrot.slane %v1123, 4
      %v1127 = vshrl.u32 %v1003, 16
      %v1129 = vrot.slane %v1127, 6
      %v1130 = vshll.u32 %v1003, 16
      %v1132 = vrot.slane %v1130, 7
      %v1133 = vor.u32 %v1129, %v1132
      %v1134 = vsel %vm1036, %v1125, %v1133
      %v1135 = vrot.slane %v1133, 4
      %v1137 = vshrl.u32 %v1004, 16
      %v1139 = vrot.slane %v1137, 6
      %v1140 = vshll.u32 %v1004, 16
      %v1142 = vrot.slane %v1140, 7
      %v1143 = vor.u32 %v1139, %v1142
      %v1144 = vsel %vm1036, %v1135, %v1143
      %v1145 = vrot.slane %v1143, 4
      %v1147 = vshrl.u32 %v1005, 16
      %v1149 = vrot.slane %v1147, 6
      %v1150 = vshll.u32 %v1005, 16
      %v1152 = vrot.slane %v1150, 7
      %v1153 = vor.u32 %v1149, %v1152
      %v1154 = vsel %vm1036, %v1145, %v1153
      %v1155 = vrot.slane %v1153, 4
      %v1157 = vshrl.u32 %v1006, 16
      %v1159 = vrot.slane %v1157, 6
      %v1160 = vshll.u32 %v1006, 16
      %v1162 = vrot.slane %v1160, 7
      %v1163 = vor.u32 %v1159, %v1162
      %v1164 = vsel %vm1036, %v1155, %v1163
      %v1165 = vrot.slane %v1163, 4
      %v1167 = vshrl.u32 %v1007, 16
      %v1169 = vrot.slane %v1167, 6
      %v1170 = vshll.u32 %v1007, 16
      %v1172 = vrot.slane %v1170, 7
      %v1173 = vor.u32 %v1169, %v1172
      %v1174 = vsel %vm1036, %v1165, %v1173
      %v1175 = vrot.slane %v1173, 4
      %v1177 = vshrl.u32 %v1008, 16
      %v1179 = vrot.slane %v1177, 6
      %v1180 = vshll.u32 %v1008, 16
      %v1182 = vrot.slane %v1180, 7
      %v1183 = vor.u32 %v1179, %v1182
      %v1184 = vsel %vm1036, %v1175, %v1183
      %v1185 = vrot.slane %v1183, 4
      %v1187 = vshrl.u32 %v1009, 16
      %v1189 = vrot.slane %v1187, 6
      %v1190 = vshll.u32 %v1009, 16
      %v1192 = vrot.slane %v1190, 7
      %v1193 = vor.u32 %v1189, %v1192
      %v1194 = vsel %vm1036, %v1185, %v1193
      %v1195 = vrot.slane %v1193, 4
      %v1197 = vshrl.u32 %v1010, 16
      %v1199 = vrot.slane %v1197, 6
      %v1200 = vshll.u32 %v1010, 16
      %v1202 = vrot.slane %v1200, 7
      %v1203 = vor.u32 %v1199, %v1202
      %v1204 = vsel %vm1036, %v1195, %v1203
      %v1205 = vrot.slane %v1203, 4
      %v1207 = vshrl.u32 %v1011, 16
      %v1209 = vrot.slane %v1207, 6
      %v1210 = vshll.u32 %v1011, 16
      %v1212 = vrot.slane %v1210, 7
      %v1213 = vor.u32 %v1209, %v1212
      %v1214 = vsel %vm1036, %v1205, %v1213
      %v1215 = vrot.slane %v1213, 4
      %v1217 = vshrl.u32 %v1012, 16
      %v1219 = vrot.slane %v1217, 6
      %v1220 = vshll.u32 %v1012, 16
      %v1222 = vrot.slane %v1220, 7
      %v1223 = vor.u32 %v1219, %v1222
      %v1224 = vsel %vm1036, %v1215, %v1223
      %v1225 = vrot.slane %v1223, 4
      %v1227 = vshrl.u32 %v1013, 16
      %v1229 = vrot.slane %v1227, 6
      %v1230 = vshll.u32 %v1013, 16
      %v1232 = vrot.slane %v1230, 7
      %v1233 = vor.u32 %v1229, %v1232
      %v1234 = vsel %vm1036, %v1225, %v1233
      %v1235 = vrot.slane %v1233, 4
      %v1237 = vshrl.u32 %v1014, 16
      %v1239 = vrot.slane %v1237, 6
      %v1240 = vshll.u32 %v1014, 16
      %v1242 = vrot.slane %v1240, 7
      %v1243 = vor.u32 %v1239, %v1242
      %v1244 = vsel %vm1036, %v1235, %v1243
      %v1245 = vrot.slane %v1243, 4
      %v1247 = vshrl.u32 %v1015, 16
      %v1249 = vrot.slane %v1247, 6
      %v1250 = vshll.u32 %v1015, 16
      %v1252 = vrot.slane %v1250, 7
      %v1253 = vor.u32 %v1249, %v1252
      %v1254 = vsel %vm1036, %v1245, %v1253
      %v1255 = vrot.slane %v1253, 4
      %v1257 = vshrl.u32 %v1016, 16
      %v1259 = vrot.slane %v1257, 6
      %v1260 = vshll.u32 %v1016, 16
      %v1262 = vrot.slane %v1260, 7
      %v1263 = vor.u32 %v1259, %v1262
      %v1264 = vsel %vm1036, %v1255, %v1263
      %v1265 = vrot.slane %v1263, 4
      %v1267 = vshrl.u32 %v1017, 16
      %v1269 = vrot.slane %v1267, 6
      %v1270 = vshll.u32 %v1017, 16
      %v1272 = vrot.slane %v1270, 7
      %v1273 = vor.u32 %v1269, %v1272
      %v1274 = vsel %vm1036, %v1265, %v1273
      %v1275 = vrot.slane %v1273, 4
      %v1277 = vshrl.u32 %v1018, 16
      %v1279 = vrot.slane %v1277, 6
      %v1280 = vshll.u32 %v1018, 16
      %v1282 = vrot.slane %v1280, 7
      %v1283 = vor.u32 %v1279, %v1282
      %v1284 = vsel %vm1036, %v1275, %v1283
      %v1285 = vrot.slane %v1283, 4
      %v1287 = vshrl.u32 %v1019, 16
      %v1289 = vrot.slane %v1287, 6
      %v1290 = vshll.u32 %v1019, 16
      %v1292 = vrot.slane %v1290, 7
      %v1293 = vor.u32 %v1289, %v1292
      %v1294 = vsel %vm1036, %v1285, %v1293
      %v1295 = vrot.slane %v1293, 4
      %v1297 = vshrl.u32 %v1020, 16
      %v1299 = vrot.slane %v1297, 6
      %v1300 = vshll.u32 %v1020, 16
      %v1302 = vrot.slane %v1300, 7
      %v1303 = vor.u32 %v1299, %v1302
      %v1304 = vsel %vm1036, %v1295, %v1303
      %v1305 = vrot.slane %v1303, 4
      %v1307 = vshrl.u32 %v1021, 16
      %v1309 = vrot.slane %v1307, 6
      %v1310 = vshll.u32 %v1021, 16
      %v1312 = vrot.slane %v1310, 7
      %v1313 = vor.u32 %v1309, %v1312
      %v1314 = vsel %vm1036, %v1305, %v1313
      %v1315 = vrot.slane %v1313, 4
      %v1317 = vshrl.u32 %v1022, 16
      %v1319 = vrot.slane %v1317, 6
      %v1320 = vshll.u32 %v1022, 16
      %v1322 = vrot.slane %v1320, 7
      %v1323 = vor.u32 %v1319, %v1322
      %v1324 = vsel %vm1036, %v1315, %v1323
      %v1325 = vrot.slane %v1323, 4
      %v1327 = vshrl.u32 %v1023, 16
      %v1329 = vrot.slane %v1327, 6
      %v1330 = vshll.u32 %v1023, 16
      %v1332 = vrot.slane %v1330, 7
      %v1333 = vor.u32 %v1329, %v1332
      %v1334 = vsel %vm1036, %v1325, %v1333
      %v1335 = vrot.slane %v1333, 4
      %v1337 = vshrl.u32 %v1024, 16
      %v1339 = vrot.slane %v1337, 6
      %v1340 = vshll.u32 %v1024, 16
      %v1342 = vrot.slane %v1340, 7
      %v1343 = vor.u32 %v1339, %v1342
      %v1344 = vsel %vm1036, %v1335, %v1343
      %v1345 = vrot.slane %v1343, 4
      %v1347 = vshrl.u32 %v1025, 16
      %v1349 = vrot.slane %v1347, 6
      %v1350 = vshll.u32 %v1025, 16
      %v1352 = vrot.slane %v1350, 7
      %v1353 = vor.u32 %v1349, %v1352
      %v1354 = vsel %vm1036, %v1345, %v1353
      %v1355 = vrot.slane %v1353, 4
      %v1357 = vshrl.u32 %v1026, 16
      %v1359 = vrot.slane %v1357, 6
      %v1360 = vshll.u32 %v1026, 16
      %v1362 = vrot.slane %v1360, 7
      %v1363 = vor.u32 %v1359, %v1362
      %v1364 = vsel %vm1036, %v1355, %v1363
      %v1365 = vrot.slane %v1363, 4
      %v1367 = vshrl.u32 %v1027, 16
      %v1369 = vrot.slane %v1367, 6
      %v1370 = vshll.u32 %v1027, 16
      %v1372 = vrot.slane %v1370, 7
      %v1373 = vor.u32 %v1369, %v1372
      %v1374 = vsel %vm1036, %v1365, %v1373
      %v1375 = vrot.slane %v1373, 4
      %v1377 = vshrl.u32 %v1028, 16
      %v1379 = vrot.slane %v1377, 6
      %v1380 = vshll.u32 %v1028, 16
      %v1382 = vrot.slane %v1380, 7
      %v1383 = vor.u32 %v1379, %v1382
      %v1384 = vsel %vm1036, %v1375, %v1383
      %v1385 = vrot.slane %v1383, 4
      %v1387 = vshrl.u32 %v1029, 16
      %v1389 = vrot.slane %v1387, 6
      %v1390 = vshll.u32 %v1029, 16
      %v1392 = vrot.slane %v1390, 7
      %v1393 = vor.u32 %v1389, %v1392
      %v1394 = vsel %vm1036, %v1385, %v1393
      %v1395 = vrot.slane %v1393, 4
      %v1397 = vshrl.u32 %v1030, 16
      %v1399 = vrot.slane %v1397, 6
      %v1400 = vshll.u32 %v1030, 16
      %v1402 = vrot.slane %v1400, 7
      %v1403 = vor.u32 %v1399, %v1402
      %v1404 = vsel %vm1036, %v1395, %v1403
      %v1405 = vrot.slane %v1403, 4
      %v1407 = vshrl.u32 %v1031, 16
      %v1409 = vrot.slane %v1407, 6
      %v1410 = vshll.u32 %v1031, 16
      %v1412 = vrot.slane %v1410, 7
      %v1413 = vor.u32 %v1409, %v1412
      %v1414 = vsel %vm1036, %v1405, %v1413
      %v1415 = vrot.slane %v1413, 4
      %v1417 = vshrl.u32 %v1032, 16
      %v1419 = vrot.slane %v1417, 6
      %v1420 = vshll.u32 %v1032, 16
      %v1422 = vrot.slane %v1420, 7
      %v1423 = vor.u32 %v1419, %v1422
      %v1424 = vsel %vm1036, %v1415, %v1423
      %v1425 = vrot.slane %v1423, 4
      %v1427 = vshrl.u32 %v1033, 16
      %v1429 = vrot.slane %v1427, 6
      %v1430 = vshll.u32 %v1033, 16
      %v1432 = vrot.slane %v1430, 7
      %v1433 = vor.u32 %v1429, %v1432
      %v1434 = vsel %vm1036, %v1425, %v1433
      %v1435 = vrot.slane %v1433, 4
      %v1437 = vshrl.u32 %v1034, 16
      %v1439 = vrot.slane %v1437, 6
      %v1440 = vshll.u32 %v1034, 16
      %v1442 = vrot.slane %v1440, 7
      %v1443 = vor.u32 %v1439, %v1442
      %v1444 = vsel %vm1036, %v1435, %v1443
      %vm1486 = vcmask 60417
      %vm1487 = vsmask.f32 7942
      %vm1488 = vmand %vm1486, %vm1487
      %v1489 = vld [vmem:[#allocation2 + $0x8] sm:$0xe]
      %v1490 = vsel %vm1488, %v1044, %v1489
      %1491 = vst [vmem:[#allocation2 + $0x8] sm:$0xe] %v1490
      %1492 = vst.msk [vmem:[#allocation2 + $0xc] sm:$0xf] %vm976, %v1054
      %1493 = vst.msk [vmem:[#allocation2 + $0x10] sm:$0xf] %vm976, %v1064
      %1494 = vst.msk [vmem:[#allocation2 + $0x14] sm:$0xf] %vm976, %v1074
      %1495 = vst.msk [vmem:[#allocation2 + $0x18] sm:$0xf] %vm976, %v1084
      %1496 = vst.msk [vmem:[#allocation2 + $0x1c] sm:$0xf] %vm976, %v1094
      %1497 = vst.msk [vmem:[#allocation2 + $0x20] sm:$0xf] %vm976, %v1104
      %1498 = vst.msk [vmem:[#allocation2 + $0x24] sm:$0xf] %vm976, %v1114
      %1499 = vst.msk [vmem:[#allocation2 + $0x28] sm:$0xf] %vm976, %v1124
      %1500 = vst.msk [vmem:[#allocation2 + $0x2c] sm:$0xf] %vm976, %v1134
      %1501 = vst.msk [vmem:[#allocation2 + $0x30] sm:$0xf] %vm976, %v1144
      %1502 = vst.msk [vmem:[#allocation2 + $0x34] sm:$0xf] %vm976, %v1154
      %1503 = vst.msk [vmem:[#allocation2 + $0x38] sm:$0xf] %vm976, %v1164
      %1504 = vst.msk [vmem:[#allocation2 + $0x3c] sm:$0xf] %vm976, %v1174
      %1505 = vst.msk [vmem:[#allocation2 + $0x40] sm:$0xf] %vm976, %v1184
      %1506 = vst.msk [vmem:[#allocation2 + $0x44] sm:$0xf] %vm976, %v1194
      %1507 = vst.msk [vmem:[#allocation2 + $0x48] sm:$0xf] %vm976, %v1204
      %1508 = vst.msk [vmem:[#allocation2 + $0x4c] sm:$0xf] %vm976, %v1214
      %1509 = vst.msk [vmem:[#allocation2 + $0x50] sm:$0xf] %vm976, %v1224
      %1510 = vst.msk [vmem:[#allocation2 + $0x54] sm:$0xf] %vm976, %v1234
      %1511 = vst.msk [vmem:[#allocation2 + $0x58] sm:$0xf] %vm976, %v1244
      %1512 = vst.msk [vmem:[#allocation2 + $0x5c] sm:$0xf] %vm976, %v1254
      %1513 = vst.msk [vmem:[#allocation2 + $0x60] sm:$0xf] %vm976, %v1264
      %1514 = vst.msk [vmem:[#allocation2 + $0x64] sm:$0xf] %vm976, %v1274
      %1515 = vst.msk [vmem:[#allocation2 + $0x68] sm:$0xf] %vm976, %v1284
      %1516 = vst.msk [vmem:[#allocation2 + $0x6c] sm:$0xf] %vm976, %v1294
      %1517 = vst.msk [vmem:[#allocation2 + $0x70] sm:$0xf] %vm976, %v1304
      %1518 = vst.msk [vmem:[#allocation2 + $0x74] sm:$0xf] %vm976, %v1314
      %1519 = vst.msk [vmem:[#allocation2 + $0x78] sm:$0xf] %vm976, %v1324
      %1520 = vst.msk [vmem:[#allocation2 + $0x7c] sm:$0xf] %vm976, %v1334
      %1521 = vst.msk [vmem:[#allocation2 + $0x80] sm:$0xf] %vm976, %v1344
      %1522 = vst.msk [vmem:[#allocation2 + $0x84] sm:$0xf] %vm976, %v1354
      %1523 = vst.msk [vmem:[#allocation2 + $0x88] sm:$0xf] %vm976, %v1364
      %1524 = vst.msk [vmem:[#allocation2 + $0x8c] sm:$0xf] %vm976, %v1374
      %1525 = vst.msk [vmem:[#allocation2 + $0x90] sm:$0xf] %vm976, %v1384
      %1526 = vst.msk [vmem:[#allocation2 + $0x94] sm:$0xf] %vm976, %v1394
      %1527 = vst.msk [vmem:[#allocation2 + $0x98] sm:$0xf] %vm976, %v1404
      %1528 = vst.msk [vmem:[#allocation2 + $0x9c] sm:$0xf] %vm976, %v1414
      %1529 = vst.msk [vmem:[#allocation2 + $0xa0] sm:$0xf] %vm976, %v1424
      %1530 = vst.msk [vmem:[#allocation2 + $0xa4] sm:$0xf] %vm976, %v1434
      %vm1531 = vcmask 60416
      %vm1532 = vsmask.f32 3328
      %vm1533 = vmand %vm1531, %vm1532
      %v1534 = vld [vmem:[#allocation2 + $0xa8] sm:$0xf]
      %v1535 = vsel %vm1533, %v1444, %v1534
      %1536 = vst [vmem:[#allocation2 + $0xa8] sm:$0xf] %v1535
      %v1537 = vld [vmem:[#allocation2] sm:$0xf]
      %v1538 = vld [vmem:[#allocation2 + $0x4] sm:$0xf]
      %v1539 = vld [vmem:[#allocation2 + $0x8] sm:$0xf]
      %v1540 = vld [vmem:[#allocation2 + $0xc] sm:$0xf]
      %v1541 = vld [vmem:[#allocation2 + $0x10] sm:$0xf]
      %v1542 = vld [vmem:[#allocation2 + $0x14] sm:$0xf]
      %v1543 = vld [vmem:[#allocation2 + $0x18] sm:$0xf]
      %v1544 = vld [vmem:[#allocation2 + $0x1c] sm:$0xf]
      %v1545 = vld [vmem:[#allocation2 + $0x20] sm:$0xf]
      %v1546 = vld [vmem:[#allocation2 + $0x24] sm:$0xf]
      %v1547 = vld [vmem:[#allocation2 + $0x28] sm:$0xf]
      %v1548 = vld [vmem:[#allocation2 + $0x2c] sm:$0xf]
      %v1549 = vld [vmem:[#allocation2 + $0x30] sm:$0xf]
      %v1550 = vld [vmem:[#allocation2 + $0x34] sm:$0xf]
      %v1551 = vld [vmem:[#allocation2 + $0x38] sm:$0xf]
      %v1552 = vld [vmem:[#allocation2 + $0x3c] sm:$0xf]
      %v1553 = vld [vmem:[#allocation2 + $0x40] sm:$0xf]
      %v1554 = vld [vmem:[#allocation2 + $0x44] sm:$0xf]
      %v1555 = vld [vmem:[#allocation2 + $0x48] sm:$0xf]
      %v1556 = vld [vmem:[#allocation2 + $0x4c] sm:$0xf]
      %v1557 = vld [vmem:[#allocation2 + $0x50] sm:$0xf]
      %v1558 = vld [vmem:[#allocation2 + $0x54] sm:$0xf]
      %v1559 = vld [vmem:[#allocation2 + $0x58] sm:$0xf]
      %v1560 = vld [vmem:[#allocation2 + $0x5c] sm:$0xf]
      %v1561 = vld [vmem:[#allocation2 + $0x60] sm:$0xf]
      %v1562 = vld [vmem:[#allocation2 + $0x64] sm:$0xf]
      %v1563 = vld [vmem:[#allocation2 + $0x68] sm:$0xf]
      %v1564 = vld [vmem:[#allocation2 + $0x6c] sm:$0xf]
      %v1565 = vld [vmem:[#allocation2 + $0x70] sm:$0xf]
      %v1566 = vld [vmem:[#allocation2 + $0x74] sm:$0xf]
      %v1567 = vld [vmem:[#allocation2 + $0x78] sm:$0xf]
      %v1568 = vld [vmem:[#allocation2 + $0x7c] sm:$0xf]
      %v1569 = vld [vmem:[#allocation2 + $0x80] sm:$0xf]
      %v1570 = vld [vmem:[#allocation2 + $0x84] sm:$0xf]
      %v1571 = vld [vmem:[#allocation2 + $0x88] sm:$0xf]
      %v1572 = vld [vmem:[#allocation2 + $0x8c] sm:$0xf]
      %v1573 = vld [vmem:[#allocation2 + $0x90] sm:$0xf]
      %v1574 = vld [vmem:[#allocation2 + $0x94] sm:$0xf]
      %v1575 = vld [vmem:[#allocation2 + $0x98] sm:$0xf]
      %v1576 = vld [vmem:[#allocation2 + $0x9c] sm:$0xf]
      %v1577 = vld [vmem:[#allocation2 + $0xa0] sm:$0x3]
      %1578 = vst.msk [vmem:[#allocation3] sm:$0xf] %vm976, %v1537
      %1579 = vst.msk [vmem:[#allocation3 + $0x4] sm:$0xf] %vm976, %v1538
      %1580 = vst.msk [vmem:[#allocation3 + $0x8] sm:$0xf] %vm976, %v1539
      %1581 = vst.msk [vmem:[#allocation3 + $0xc] sm:$0xf] %vm976, %v1540
      %1582 = vst.msk [vmem:[#allocation3 + $0x10] sm:$0xf] %vm976, %v1541
      %1583 = vst.msk [vmem:[#allocation3 + $0x14] sm:$0xf] %vm976, %v1542
      %1584 = vst.msk [vmem:[#allocation3 + $0x18] sm:$0xf] %vm976, %v1543
      %1585 = vst.msk [vmem:[#allocation3 + $0x1c] sm:$0xf] %vm976, %v1544
      %1586 = vst.msk [vmem:[#allocation3 + $0x20] sm:$0xf] %vm976, %v1545
      %1587 = vst.msk [vmem:[#allocation3 + $0x24] sm:$0xf] %vm976, %v1546
      %1588 = vst.msk [vmem:[#allocation3 + $0x28] sm:$0xf] %vm976, %v1547
      %1589 = vst.msk [vmem:[#allocation3 + $0x2c] sm:$0xf] %vm976, %v1548
      %1590 = vst.msk [vmem:[#allocation3 + $0x30] sm:$0xf] %vm976, %v1549
      %1591 = vst.msk [vmem:[#allocation3 + $0x34] sm:$0xf] %vm976, %v1550
      %1592 = vst.msk [vmem:[#allocation3 + $0x38] sm:$0xf] %vm976, %v1551
      %1593 = vst.msk [vmem:[#allocation3 + $0x3c] sm:$0xf] %vm976, %v1552
      %1594 = vst.msk [vmem:[#allocation3 + $0x40] sm:$0xf] %vm976, %v1553
      %1595 = vst.msk [vmem:[#allocation3 + $0x44] sm:$0xf] %vm976, %v1554
      %1596 = vst.msk [vmem:[#allocation3 + $0x48] sm:$0xf] %vm976, %v1555
      %1597 = vst.msk [vmem:[#allocation3 + $0x4c] sm:$0xf] %vm976, %v1556
      %1598 = vst.msk [vmem:[#allocation3 + $0x50] sm:$0xf] %vm976, %v1557
      %1599 = vst.msk [vmem:[#allocation3 + $0x54] sm:$0xf] %vm976, %v1558
      %1600 = vst.msk [vmem:[#allocation3 + $0x58] sm:$0xf] %vm976, %v1559
      %1601 = vst.msk [vmem:[#allocation3 + $0x5c] sm:$0xf] %vm976, %v1560
      %1602 = vst.msk [vmem:[#allocation3 + $0x60] sm:$0xf] %vm976, %v1561
      %1603 = vst.msk [vmem:[#allocation3 + $0x64] sm:$0xf] %vm976, %v1562
      %1604 = vst.msk [vmem:[#allocation3 + $0x68] sm:$0xf] %vm976, %v1563
      %1605 = vst.msk [vmem:[#allocation3 + $0x6c] sm:$0xf] %vm976, %v1564
      %1606 = vst.msk [vmem:[#allocation3 + $0x70] sm:$0xf] %vm976, %v1565
      %1607 = vst.msk [vmem:[#allocation3 + $0x74] sm:$0xf] %vm976, %v1566
      %1608 = vst.msk [vmem:[#allocation3 + $0x78] sm:$0xf] %vm976, %v1567
      %1609 = vst.msk [vmem:[#allocation3 + $0x7c] sm:$0xf] %vm976, %v1568
      %1610 = vst.msk [vmem:[#allocation3 + $0x80] sm:$0xf] %vm976, %v1569
      %1611 = vst.msk [vmem:[#allocation3 + $0x84] sm:$0xf] %vm976, %v1570
      %1612 = vst.msk [vmem:[#allocation3 + $0x88] sm:$0xf] %vm976, %v1571
      %1613 = vst.msk [vmem:[#allocation3 + $0x8c] sm:$0xf] %vm976, %v1572
      %1614 = vst.msk [vmem:[#allocation3 + $0x90] sm:$0xf] %vm976, %v1573
      %1615 = vst.msk [vmem:[#allocation3 + $0x94] sm:$0xf] %vm976, %v1574
      %1616 = vst.msk [vmem:[#allocation3 + $0x98] sm:$0xf] %vm976, %v1575
      %1617 = vst.msk [vmem:[#allocation3 + $0x9c] sm:$0xf] %vm976, %v1576
      %vm1618 = vcmask 58368
      %1619 = vst.msk [vmem:[#allocation3 + $0xa0] sm:$0x3] %vm1618, %v1577
      %v1620 = vld [vmem:[#allocation2] sm:$0xf]
      %v1621 = vld [vmem:[#allocation2 + $0x4] sm:$0xf]
      %v1622 = vld [vmem:[#allocation2 + $0x8] sm:$0xf]
      %v1623 = vld [vmem:[#allocation2 + $0xc] sm:$0xf]
      %v1624 = vld [vmem:[#allocation2 + $0x10] sm:$0xf]
      %v1625 = vld [vmem:[#allocation2 + $0x14] sm:$0xf]
      %v1626 = vld [vmem:[#allocation2 + $0x18] sm:$0xf]
      %v1627 = vld [vmem:[#allocation2 + $0x1c] sm:$0xf]
      %v1628 = vld [vmem:[#allocation2 + $0x20] sm:$0xf]
      %v1629 = vld [vmem:[#allocation2 + $0x24] sm:$0xf]
      %v1630 = vld [vmem:[#allocation2 + $0x28] sm:$0xf]
      %v1631 = vld [vmem:[#allocation2 + $0x2c] sm:$0xf]
      %v1632 = vld [vmem:[#allocation2 + $0x30] sm:$0xf]
      %v1633 = vld [vmem:[#allocation2 + $0x34] sm:$0xf]
      %v1634 = vld [vmem:[#allocation2 + $0x38] sm:$0xf]
      %v1635 = vld [vmem:[#allocation2 + $0x3c] sm:$0xf]
      %v1636 = vld [vmem:[#allocation2 + $0x40] sm:$0xf]
      %v1637 = vld [vmem:[#allocation2 + $0x44] sm:$0xf]
      %v1638 = vld [vmem:[#allocation2 + $0x48] sm:$0xf]
      %v1639 = vld [vmem:[#allocation2 + $0x4c] sm:$0xf]
      %v1640 = vld [vmem:[#allocation2 + $0x50] sm:$0xf]
      %v1641 = vld [vmem:[#allocation2 + $0x54] sm:$0xf]
      %v1642 = vld [vmem:[#allocation2 + $0x58] sm:$0xf]
      %v1643 = vld [vmem:[#allocation2 + $0x5c] sm:$0xf]
      %v1644 = vld [vmem:[#allocation2 + $0x60] sm:$0xf]
      %v1645 = vld [vmem:[#allocation2 + $0x64] sm:$0xf]
      %v1646 = vld [vmem:[#allocation2 + $0x68] sm:$0xf]
      %v1647 = vld [vmem:[#allocation2 + $0x6c] sm:$0xf]
      %v1648 = vld [vmem:[#allocation2 + $0x70] sm:$0xf]
      %v1649 = vld [vmem:[#allocation2 + $0x74] sm:$0xf]
      %v1650 = vld [vmem:[#allocation2 + $0x78] sm:$0xf]
      %v1651 = vld [vmem:[#allocation2 + $0x7c] sm:$0xf]
      %v1652 = vld [vmem:[#allocation2 + $0x80] sm:$0xf]
      %v1653 = vld [vmem:[#allocation2 + $0x84] sm:$0xf]
      %v1654 = vld [vmem:[#allocation2 + $0x88] sm:$0xf]
      %v1655 = vld [vmem:[#allocation2 + $0x8c] sm:$0xf]
      %v1656 = vld [vmem:[#allocation2 + $0x90] sm:$0xf]
      %v1657 = vld [vmem:[#allocation2 + $0x94] sm:$0xf]
      %v1658 = vld [vmem:[#allocation2 + $0x98] sm:$0xf]
      %v1659 = vld [vmem:[#allocation2 + $0x9c] sm:$0xf]
      %v1660 = vld [vmem:[#allocation2 + $0xa0] sm:$0x7]
      %vm1661 = vsmask.f32 7440
      %vm1662 = vmor %vm1532, %vm1661
      %v1664 = vshrl.u32 %v1620, 16
      %v1666 = vrot.slane %v1664, 4
      %v1667 = vshll.u32 %v1620, 16
      %v1669 = vrot.slane %v1667, 5
      %v1670 = vor.u32 %v1666, %v1669
      %v1671 = vrot.slane %v1670, 4
      %v1673 = vshll.u32 %v1621, 16
      %v1675 = vrot.slane %v1673, 5
      %v1676 = vsel %vm1662, %v1671, %v1675
      %v1677 = vshrl.u32 %v1621, 16
      %v1679 = vrot.slane %v1677, 4
      %v1680 = vor.u32 %v1679, %v1675
      %v1681 = vrot.slane %v1680, 4
      %v1683 = vshll.u32 %v1622, 16
      %v1685 = vrot.slane %v1683, 5
      %v1686 = vsel %vm1662, %v1681, %v1685
      %v1687 = vshrl.u32 %v1622, 16
      %v1689 = vrot.slane %v1687, 4
      %v1690 = vor.u32 %v1689, %v1685
      %v1691 = vrot.slane %v1690, 4
      %v1693 = vshll.u32 %v1623, 16
      %v1695 = vrot.slane %v1693, 5
      %v1696 = vsel %vm1662, %v1691, %v1695
      %v1697 = vshrl.u32 %v1623, 16
      %v1699 = vrot.slane %v1697, 4
      %v1700 = vor.u32 %v1699, %v1695
      %v1701 = vrot.slane %v1700, 4
      %v1703 = vshll.u32 %v1624, 16
      %v1705 = vrot.slane %v1703, 5
      %v1706 = vsel %vm1662, %v1701, %v1705
      %v1707 = vshrl.u32 %v1624, 16
      %v1709 = vrot.slane %v1707, 4
      %v1710 = vor.u32 %v1709, %v1705
      %v1711 = vrot.slane %v1710, 4
      %v1713 = vshll.u32 %v1625, 16
      %v1715 = vrot.slane %v1713, 5
      %v1716 = vsel %vm1662, %v1711, %v1715
      %v1717 = vshrl.u32 %v1625, 16
      %v1719 = vrot.slane %v1717, 4
      %v1720 = vor.u32 %v1719, %v1715
      %v1721 = vrot.slane %v1720, 4
      %v1723 = vshll.u32 %v1626, 16
      %v1725 = vrot.slane %v1723, 5
      %v1726 = vsel %vm1662, %v1721, %v1725
      %v1727 = vshrl.u32 %v1626, 16
      %v1729 = vrot.slane %v1727, 4
      %v1730 = vor.u32 %v1729, %v1725
      %v1731 = vrot.slane %v1730, 4
      %v1733 = vshll.u32 %v1627, 16
      %v1735 = vrot.slane %v1733, 5
      %v1736 = vsel %vm1662, %v1731, %v1735
      %v1737 = vshrl.u32 %v1627, 16
      %v1739 = vrot.slane %v1737, 4
      %v1740 = vor.u32 %v1739, %v1735
      %v1741 = vrot.slane %v1740, 4
      %v1743 = vshll.u32 %v1628, 16
      %v1745 = vrot.slane %v1743, 5
      %v1746 = vsel %vm1662, %v1741, %v1745
      %v1747 = vshrl.u32 %v1628, 16
      %v1749 = vrot.slane %v1747, 4
      %v1750 = vor.u32 %v1749, %v1745
      %v1751 = vrot.slane %v1750, 4
      %v1753 = vshll.u32 %v1629, 16
      %v1755 = vrot.slane %v1753, 5
      %v1756 = vsel %vm1662, %v1751, %v1755
      %v1757 = vshrl.u32 %v1629, 16
      %v1759 = vrot.slane %v1757, 4
      %v1760 = vor.u32 %v1759, %v1755
      %v1761 = vrot.slane %v1760, 4
      %v1763 = vshll.u32 %v1630, 16
      %v1765 = vrot.slane %v1763, 5
      %v1766 = vsel %vm1662, %v1761, %v1765
      %v1767 = vshrl.u32 %v1630, 16
      %v1769 = vrot.slane %v1767, 4
      %v1770 = vor.u32 %v1769, %v1765
      %v1771 = vrot.slane %v1770, 4
      %v1773 = vshll.u32 %v1631, 16
      %v1775 = vrot.slane %v1773, 5
      %v1776 = vsel %vm1662, %v1771, %v1775
      %v1777 = vshrl.u32 %v1631, 16
      %v1779 = vrot.slane %v1777, 4
      %v1780 = vor.u32 %v1779, %v1775
      %v1781 = vrot.slane %v1780, 4
      %v1783 = vshll.u32 %v1632, 16
      %v1785 = vrot.slane %v1783, 5
      %v1786 = vsel %vm1662, %v1781, %v1785
      %v1787 = vshrl.u32 %v1632, 16
      %v1789 = vrot.slane %v1787, 4
      %v1790 = vor.u32 %v1789, %v1785
      %v1791 = vrot.slane %v1790, 4
      %v1793 = vshll.u32 %v1633, 16
      %v1795 = vrot.slane %v1793, 5
      %v1796 = vsel %vm1662, %v1791, %v1795
      %v1797 = vshrl.u32 %v1633, 16
      %v1799 = vrot.slane %v1797, 4
      %v1800 = vor.u32 %v1799, %v1795
      %v1801 = vrot.slane %v1800, 4
      %v1803 = vshll.u32 %v1634, 16
      %v1805 = vrot.slane %v1803, 5
      %v1806 = vsel %vm1662, %v1801, %v1805
      %v1807 = vshrl.u32 %v1634, 16
      %v1809 = vrot.slane %v1807, 4
      %v1810 = vor.u32 %v1809, %v1805
      %v1811 = vrot.slane %v1810, 4
      %v1813 = vshll.u32 %v1635, 16
      %v1815 = vrot.slane %v1813, 5
      %v1816 = vsel %vm1662, %v1811, %v1815
      %v1817 = vshrl.u32 %v1635, 16
      %v1819 = vrot.slane %v1817, 4
      %v1820 = vor.u32 %v1819, %v1815
      %v1821 = vrot.slane %v1820, 4
      %v1823 = vshll.u32 %v1636, 16
      %v1825 = vrot.slane %v1823, 5
      %v1826 = vsel %vm1662, %v1821, %v1825
      %v1827 = vshrl.u32 %v1636, 16
      %v1829 = vrot.slane %v1827, 4
      %v1830 = vor.u32 %v1829, %v1825
      %v1831 = vrot.slane %v1830, 4
      %v1833 = vshll.u32 %v1637, 16
      %v1835 = vrot.slane %v1833, 5
      %v1836 = vsel %vm1662, %v1831, %v1835
      %v1837 = vshrl.u32 %v1637, 16
      %v1839 = vrot.slane %v1837, 4
      %v1840 = vor.u32 %v1839, %v1835
      %v1841 = vrot.slane %v1840, 4
      %v1843 = vshll.u32 %v1638, 16
      %v1845 = vrot.slane %v1843, 5
      %v1846 = vsel %vm1662, %v1841, %v1845
      %v1847 = vshrl.u32 %v1638, 16
      %v1849 = vrot.slane %v1847, 4
      %v1850 = vor.u32 %v1849, %v1845
      %v1851 = vrot.slane %v1850, 4
      %v1853 = vshll.u32 %v1639, 16
      %v1855 = vrot.slane %v1853, 5
      %v1856 = vsel %vm1662, %v1851, %v1855
      %v1857 = vshrl.u32 %v1639, 16
      %v1859 = vrot.slane %v1857, 4
      %v1860 = vor.u32 %v1859, %v1855
      %v1861 = vrot.slane %v1860, 4
      %v1863 = vshll.u32 %v1640, 16
      %v1865 = vrot.slane %v1863, 5
      %v1866 = vsel %vm1662, %v1861, %v1865
      %v1867 = vshrl.u32 %v1640, 16
      %v1869 = vrot.slane %v1867, 4
      %v1870 = vor.u32 %v1869, %v1865
      %v1871 = vrot.slane %v1870, 4
      %v1873 = vshll.u32 %v1641, 16
      %v1875 = vrot.slane %v1873, 5
      %v1876 = vsel %vm1662, %v1871, %v1875
      %v1877 = vshrl.u32 %v1641, 16
      %v1879 = vrot.slane %v1877, 4
      %v1880 = vor.u32 %v1879, %v1875
      %v1881 = vrot.slane %v1880, 4
      %v1883 = vshll.u32 %v1642, 16
      %v1885 = vrot.slane %v1883, 5
      %v1886 = vsel %vm1662, %v1881, %v1885
      %v1887 = vshrl.u32 %v1642, 16
      %v1889 = vrot.slane %v1887, 4
      %v1890 = vor.u32 %v1889, %v1885
      %v1891 = vrot.slane %v1890, 4
      %v1893 = vshll.u32 %v1643, 16
      %v1895 = vrot.slane %v1893, 5
      %v1896 = vsel %vm1662, %v1891, %v1895
      %v1897 = vshrl.u32 %v1643, 16
      %v1899 = vrot.slane %v1897, 4
      %v1900 = vor.u32 %v1899, %v1895
      %v1901 = vrot.slane %v1900, 4
      %v1903 = vshll.u32 %v1644, 16
      %v1905 = vrot.slane %v1903, 5
      %v1906 = vsel %vm1662, %v1901, %v1905
      %v1907 = vshrl.u32 %v1644, 16
      %v1909 = vrot.slane %v1907, 4
      %v1910 = vor.u32 %v1909, %v1905
      %v1911 = vrot.slane %v1910, 4
      %v1913 = vshll.u32 %v1645, 16
      %v1915 = vrot.slane %v1913, 5
      %v1916 = vsel %vm1662, %v1911, %v1915
      %v1917 = vshrl.u32 %v1645, 16
      %v1919 = vrot.slane %v1917, 4
      %v1920 = vor.u32 %v1919, %v1915
      %v1921 = vrot.slane %v1920, 4
      %v1923 = vshll.u32 %v1646, 16
      %v1925 = vrot.slane %v1923, 5
      %v1926 = vsel %vm1662, %v1921, %v1925
      %v1927 = vshrl.u32 %v1646, 16
      %v1929 = vrot.slane %v1927, 4
      %v1930 = vor.u32 %v1929, %v1925
      %v1931 = vrot.slane %v1930, 4
      %v1933 = vshll.u32 %v1647, 16
      %v1935 = vrot.slane %v1933, 5
      %v1936 = vsel %vm1662, %v1931, %v1935
      %v1937 = vshrl.u32 %v1647, 16
      %v1939 = vrot.slane %v1937, 4
      %v1940 = vor.u32 %v1939, %v1935
      %v1941 = vrot.slane %v1940, 4
      %v1943 = vshll.u32 %v1648, 16
      %v1945 = vrot.slane %v1943, 5
      %v1946 = vsel %vm1662, %v1941, %v1945
      %v1947 = vshrl.u32 %v1648, 16
      %v1949 = vrot.slane %v1947, 4
      %v1950 = vor.u32 %v1949, %v1945
      %v1951 = vrot.slane %v1950, 4
      %v1953 = vshll.u32 %v1649, 16
      %v1955 = vrot.slane %v1953, 5
      %v1956 = vsel %vm1662, %v1951, %v1955
      %v1957 = vshrl.u32 %v1649, 16
      %v1959 = vrot.slane %v1957, 4
      %v1960 = vor.u32 %v1959, %v1955
      %v1961 = vrot.slane %v1960, 4
      %v1963 = vshll.u32 %v1650, 16
      %v1965 = vrot.slane %v1963, 5
      %v1966 = vsel %vm1662, %v1961, %v1965
      %v1967 = vshrl.u32 %v1650, 16
      %v1969 = vrot.slane %v1967, 4
      %v1970 = vor.u32 %v1969, %v1965
      %v1971 = vrot.slane %v1970, 4
      %v1973 = vshll.u32 %v1651, 16
      %v1975 = vrot.slane %v1973, 5
      %v1976 = vsel %vm1662, %v1971, %v1975
      %v1977 = vshrl.u32 %v1651, 16
      %v1979 = vrot.slane %v1977, 4
      %v1980 = vor.u32 %v1979, %v1975
      %v1981 = vrot.slane %v1980, 4
      %v1983 = vshll.u32 %v1652, 16
      %v1985 = vrot.slane %v1983, 5
      %v1986 = vsel %vm1662, %v1981, %v1985
      %v1987 = vshrl.u32 %v1652, 16
      %v1989 = vrot.slane %v1987, 4
      %v1990 = vor.u32 %v1989, %v1985
      %v1991 = vrot.slane %v1990, 4
      %v1993 = vshll.u32 %v1653, 16
      %v1995 = vrot.slane %v1993, 5
      %v1996 = vsel %vm1662, %v1991, %v1995
      %v1997 = vshrl.u32 %v1653, 16
      %v1999 = vrot.slane %v1997, 4
      %v2000 = vor.u32 %v1999, %v1995
      %v2001 = vrot.slane %v2000, 4
      %v2003 = vshll.u32 %v1654, 16
      %v2005 = vrot.slane %v2003, 5
      %v2006 = vsel %vm1662, %v2001, %v2005
      %v2007 = vshrl.u32 %v1654, 16
      %v2009 = vrot.slane %v2007, 4
      %v2010 = vor.u32 %v2009, %v2005
      %v2011 = vrot.slane %v2010, 4
      %v2013 = vshll.u32 %v1655, 16
      %v2015 = vrot.slane %v2013, 5
      %v2016 = vsel %vm1662, %v2011, %v2015
      %v2017 = vshrl.u32 %v1655, 16
      %v2019 = vrot.slane %v2017, 4
      %v2020 = vor.u32 %v2019, %v2015
      %v2021 = vrot.slane %v2020, 4
      %v2023 = vshll.u32 %v1656, 16
      %v2025 = vrot.slane %v2023, 5
      %v2026 = vsel %vm1662, %v2021, %v2025
      %v2027 = vshrl.u32 %v1656, 16
      %v2029 = vrot.slane %v2027, 4
      %v2030 = vor.u32 %v2029, %v2025
      %v2031 = vrot.slane %v2030, 4
      %v2033 = vshll.u32 %v1657, 16
      %v2035 = vrot.slane %v2033, 5
      %v2036 = vsel %vm1662, %v2031, %v2035
      %v2037 = vshrl.u32 %v1657, 16
      %v2039 = vrot.slane %v2037, 4
      %v2040 = vor.u32 %v2039, %v2035
      %v2041 = vrot.slane %v2040, 4
      %v2043 = vshll.u32 %v1658, 16
      %v2045 = vrot.slane %v2043, 5
      %v2046 = vsel %vm1662, %v2041, %v2045
      %v2047 = vshrl.u32 %v1658, 16
      %v2049 = vrot.slane %v2047, 4
      %v2050 = vor.u32 %v2049, %v2045
      %v2051 = vrot.slane %v2050, 4
      %v2053 = vshll.u32 %v1659, 16
      %v2055 = vrot.slane %v2053, 5
      %v2056 = vsel %vm1662, %v2051, %v2055
      %v2057 = vshrl.u32 %v1659, 16
      %v2059 = vrot.slane %v2057, 4
      %v2060 = vor.u32 %v2059, %v2055
      %v2061 = vrot.slane %v2060, 4
      %v2063 = vshll.u32 %v1660, 16
      %v2065 = vrot.slane %v2063, 5
      %v2066 = vsel %vm1662, %v2061, %v2065
      %v2067 = vshrl.u32 %v1660, 16
      %v2069 = vrot.slane %v2067, 4
      %v2070 = vor.u32 %v2069, %v2065
      %v2071 = vrot.slane %v2070, 4
      %2072 = vrot.lane.b32.xlu0 %v1676, 8
      %v2073 = vpop.permute.xlu0 %2072
      %2074 = vrot.lane.b32.xlu0 %v1686, 8
      %v2075 = vpop.permute.xlu0 %2074
      %2076 = vrot.lane.b32.xlu0 %v1696, 8
      %v2077 = vpop.permute.xlu0 %2076
      %2078 = vrot.lane.b32.xlu0 %v1706, 8
      %v2079 = vpop.permute.xlu0 %2078
      %2080 = vrot.lane.b32.xlu0 %v1716, 8
      %v2081 = vpop.permute.xlu0 %2080
      %2082 = vrot.lane.b32.xlu0 %v1726, 8
      %v2083 = vpop.permute.xlu0 %2082
      %2084 = vrot.lane.b32.xlu0 %v1736, 8
      %v2085 = vpop.permute.xlu0 %2084
      %2086 = vrot.lane.b32.xlu0 %v1746, 8
      %v2087 = vpop.permute.xlu0 %2086
      %2088 = vrot.lane.b32.xlu0 %v1756, 8
      %v2089 = vpop.permute.xlu0 %2088
      %2090 = vrot.lane.b32.xlu0 %v1766, 8
      %v2091 = vpop.permute.xlu0 %2090
      %2092 = vrot.lane.b32.xlu0 %v1776, 8
      %v2093 = vpop.permute.xlu0 %2092
      %2094 = vrot.lane.b32.xlu0 %v1786, 8
      %v2095 = vpop.permute.xlu0 %2094
      %2096 = vrot.lane.b32.xlu0 %v1796, 8
      %v2097 = vpop.permute.xlu0 %2096
      %2098 = vrot.lane.b32.xlu0 %v1806, 8
      %v2099 = vpop.permute.xlu0 %2098
      %2100 = vrot.lane.b32.xlu0 %v1816, 8
      %v2101 = vpop.permute.xlu0 %2100
      %2102 = vrot.lane.b32.xlu0 %v1826, 8
      %v2103 = vpop.permute.xlu0 %2102
      %2104 = vrot.lane.b32.xlu0 %v1836, 8
      %v2105 = vpop.permute.xlu0 %2104
      %2106 = vrot.lane.b32.xlu0 %v1846, 8
      %v2107 = vpop.permute.xlu0 %2106
      %2108 = vrot.lane.b32.xlu0 %v1856, 8
      %v2109 = vpop.permute.xlu0 %2108
      %2110 = vrot.lane.b32.xlu0 %v1866, 8
      %v2111 = vpop.permute.xlu0 %2110
      %2112 = vrot.lane.b32.xlu0 %v1876, 8
      %v2113 = vpop.permute.xlu0 %2112
      %2114 = vrot.lane.b32.xlu0 %v1886, 8
      %v2115 = vpop.permute.xlu0 %2114
      %2116 = vrot.lane.b32.xlu0 %v1896, 8
      %v2117 = vpop.permute.xlu0 %2116
      %2118 = vrot.lane.b32.xlu0 %v1906, 8
      %v2119 = vpop.permute.xlu0 %2118
      %2120 = vrot.lane.b32.xlu0 %v1916, 8
      %v2121 = vpop.permute.xlu0 %2120
      %2122 = vrot.lane.b32.xlu0 %v1926, 8
      %v2123 = vpop.permute.xlu0 %2122
      %2124 = vrot.lane.b32.xlu0 %v1936, 8
      %v2125 = vpop.permute.xlu0 %2124
      %2126 = vrot.lane.b32.xlu0 %v1946, 8
      %v2127 = vpop.permute.xlu0 %2126
      %2128 = vrot.lane.b32.xlu0 %v1956, 8
      %v2129 = vpop.permute.xlu0 %2128
      %2130 = vrot.lane.b32.xlu0 %v1966, 8
      %v2131 = vpop.permute.xlu0 %2130
      %2132 = vrot.lane.b32.xlu0 %v1976, 8
      %v2133 = vpop.permute.xlu0 %2132
      %2134 = vrot.lane.b32.xlu0 %v1986, 8
      %v2135 = vpop.permute.xlu0 %2134
      %2136 = vrot.lane.b32.xlu0 %v1996, 8
      %v2137 = vpop.permute.xlu0 %2136
      %2138 = vrot.lane.b32.xlu0 %v2006, 8
      %v2139 = vpop.permute.xlu0 %2138
      %2140 = vrot.lane.b32.xlu0 %v2016, 8
      %v2141 = vpop.permute.xlu0 %2140
      %2142 = vrot.lane.b32.xlu0 %v2026, 8
      %v2143 = vpop.permute.xlu0 %2142
      %2144 = vrot.lane.b32.xlu0 %v2036, 8
      %v2145 = vpop.permute.xlu0 %2144
      %2146 = vrot.lane.b32.xlu0 %v2046, 8
      %v2147 = vpop.permute.xlu0 %2146
      %2148 = vrot.lane.b32.xlu0 %v2056, 8
      %v2149 = vpop.permute.xlu0 %2148
      %2150 = vrot.lane.b32.xlu0 %v2066, 8
      %v2151 = vpop.permute.xlu0 %2150
      %2152 = vrot.lane.b32.xlu0 %v2071, 8
      %v2153 = vpop.permute.xlu0 %2152
      %vm2195 = vcmask 126016
      %2196 = vst.msk [vmem:[#allocation3] sm:$0xf] %vm2195, %v2073
      %2197 = vst.msk [vmem:[#allocation3 + $0x4] sm:$0xf] %vm2195, %v2075
      %2198 = vst.msk [vmem:[#allocation3 + $0x8] sm:$0xf] %vm2195, %v2077
      %2199 = vst.msk [vmem:[#allocation3 + $0xc] sm:$0xf] %vm2195, %v2079
      %2200 = vst.msk [vmem:[#allocation3 + $0x10] sm:$0xf] %vm2195, %v2081
      %2201 = vst.msk [vmem:[#allocation3 + $0x14] sm:$0xf] %vm2195, %v2083
      %2202 = vst.msk [vmem:[#allocation3 + $0x18] sm:$0xf] %vm2195, %v2085
      %2203 = vst.msk [vmem:[#allocation3 + $0x1c] sm:$0xf] %vm2195, %v2087
      %2204 = vst.msk [vmem:[#allocation3 + $0x20] sm:$0xf] %vm2195, %v2089
      %2205 = vst.msk [vmem:[#allocation3 + $0x24] sm:$0xf] %vm2195, %v2091
      %2206 = vst.msk [vmem:[#allocation3 + $0x28] sm:$0xf] %vm2195, %v2093
      %2207 = vst.msk [vmem:[#allocation3 + $0x2c] sm:$0xf] %vm2195, %v2095
      %2208 = vst.msk [vmem:[#allocation3 + $0x30] sm:$0xf] %vm2195, %v2097
      %2209 = vst.msk [vmem:[#allocation3 + $0x34] sm:$0xf] %vm2195, %v2099
      %2210 = vst.msk [vmem:[#allocation3 + $0x38] sm:$0xf] %vm2195, %v2101
      %2211 = vst.msk [vmem:[#allocation3 + $0x3c] sm:$0xf] %vm2195, %v2103
      %2212 = vst.msk [vmem:[#allocation3 + $0x40] sm:$0xf] %vm2195, %v2105
      %2213 = vst.msk [vmem:[#allocation3 + $0x44] sm:$0xf] %vm2195, %v2107
      %2214 = vst.msk [vmem:[#allocation3 + $0x48] sm:$0xf] %vm2195, %v2109
      %2215 = vst.msk [vmem:[#allocation3 + $0x4c] sm:$0xf] %vm2195, %v2111
      %2216 = vst.msk [vmem:[#allocation3 + $0x50] sm:$0xf] %vm2195, %v2113
      %2217 = vst.msk [vmem:[#allocation3 + $0x54] sm:$0xf] %vm2195, %v2115
      %2218 = vst.msk [vmem:[#allocation3 + $0x58] sm:$0xf] %vm2195, %v2117
      %2219 = vst.msk [vmem:[#allocation3 + $0x5c] sm:$0xf] %vm2195, %v2119
      %2220 = vst.msk [vmem:[#allocation3 + $0x60] sm:$0xf] %vm2195, %v2121
      %2221 = vst.msk [vmem:[#allocation3 + $0x64] sm:$0xf] %vm2195, %v2123
      %2222 = vst.msk [vmem:[#allocation3 + $0x68] sm:$0xf] %vm2195, %v2125
      %2223 = vst.msk [vmem:[#allocation3 + $0x6c] sm:$0xf] %vm2195, %v2127
      %2224 = vst.msk [vmem:[#allocation3 + $0x70] sm:$0xf] %vm2195, %v2129
      %2225 = vst.msk [vmem:[#allocation3 + $0x74] sm:$0xf] %vm2195, %v2131
      %2226 = vst.msk [vmem:[#allocation3 + $0x78] sm:$0xf] %vm2195, %v2133
      %2227 = vst.msk [vmem:[#allocation3 + $0x7c] sm:$0xf] %vm2195, %v2135
      %2228 = vst.msk [vmem:[#allocation3 + $0x80] sm:$0xf] %vm2195, %v2137
      %2229 = vst.msk [vmem:[#allocation3 + $0x84] sm:$0xf] %vm2195, %v2139
      %2230 = vst.msk [vmem:[#allocation3 + $0x88] sm:$0xf] %vm2195, %v2141
      %2231 = vst.msk [vmem:[#allocation3 + $0x8c] sm:$0xf] %vm2195, %v2143
      %2232 = vst.msk [vmem:[#allocation3 + $0x90] sm:$0xf] %vm2195, %v2145
      %2233 = vst.msk [vmem:[#allocation3 + $0x94] sm:$0xf] %vm2195, %v2147
      %2234 = vst.msk [vmem:[#allocation3 + $0x98] sm:$0xf] %vm2195, %v2149
      %2235 = vst.msk [vmem:[#allocation3 + $0x9c] sm:$0xf] %vm2195, %v2151
      %vm2236 = vcmask 123968
      %2237 = vst.msk [vmem:[#allocation3 + $0xa0] sm:$0x3] %vm2236, %v2153
      %v2238 = vld [vmem:[#allocation2] sm:$0xe]
      %v2239 = vld [vmem:[#allocation2 + $0x4] sm:$0xf]
      %v2240 = vld [vmem:[#allocation2 + $0x8] sm:$0xf]
      %v2241 = vld [vmem:[#allocation2 + $0xc] sm:$0xf]
      %v2242 = vld [vmem:[#allocation2 + $0x10] sm:$0xf]
      %v2243 = vld [vmem:[#allocation2 + $0x14] sm:$0xf]
      %v2244 = vld [vmem:[#allocation2 + $0x18] sm:$0xf]
      %v2245 = vld [vmem:[#allocation2 + $0x1c] sm:$0xf]
      %v2246 = vld [vmem:[#allocation2 + $0x20] sm:$0xf]
      %v2247 = vld [vmem:[#allocation2 + $0x24] sm:$0xf]
      %v2248 = vld [vmem:[#allocation2 + $0x28] sm:$0xf]
      %v2249 = vld [vmem:[#allocation2 + $0x2c] sm:$0xf]
      %v2250 = vld [vmem:[#allocation2 + $0x30] sm:$0xf]
      %v2251 = vld [vmem:[#allocation2 + $0x34] sm:$0xf]
      %v2252 = vld [vmem:[#allocation2 + $0x38] sm:$0xf]
      %v2253 = vld [vmem:[#allocation2 + $0x3c] sm:$0xf]
      %v2254 = vld [vmem:[#allocation2 + $0x40] sm:$0xf]
      %v2255 = vld [vmem:[#allocation2 + $0x44] sm:$0xf]
      %v2256 = vld [vmem:[#allocation2 + $0x48] sm:$0xf]
      %v2257 = vld [vmem:[#allocation2 + $0x4c] sm:$0xf]
      %v2258 = vld [vmem:[#allocation2 + $0x50] sm:$0xf]
      %v2259 = vld [vmem:[#allocation2 + $0x54] sm:$0xf]
      %v2260 = vld [vmem:[#allocation2 + $0x58] sm:$0xf]
      %v2261 = vld [vmem:[#allocation2 + $0x5c] sm:$0xf]
      %v2262 = vld [vmem:[#allocation2 + $0x60] sm:$0xf]
      %v2263 = vld [vmem:[#allocation2 + $0x64] sm:$0xf]
      %v2264 = vld [vmem:[#allocation2 + $0x68] sm:$0xf]
      %v2265 = vld [vmem:[#allocation2 + $0x6c] sm:$0xf]
      %v2266 = vld [vmem:[#allocation2 + $0x70] sm:$0xf]
      %v2267 = vld [vmem:[#allocation2 + $0x74] sm:$0xf]
      %v2268 = vld [vmem:[#allocation2 + $0x78] sm:$0xf]
      %v2269 = vld [vmem:[#allocation2 + $0x7c] sm:$0xf]
      %v2270 = vld [vmem:[#allocation2 + $0x80] sm:$0xf]
      %v2271 = vld [vmem:[#allocation2 + $0x84] sm:$0xf]
      %v2272 = vld [vmem:[#allocation2 + $0x88] sm:$0xf]
      %v2273 = vld [vmem:[#allocation2 + $0x8c] sm:$0xf]
      %v2274 = vld [vmem:[#allocation2 + $0x90] sm:$0xf]
      %v2275 = vld [vmem:[#allocation2 + $0x94] sm:$0xf]
      %v2276 = vld [vmem:[#allocation2 + $0x98] sm:$0xf]
      %v2277 = vld [vmem:[#allocation2 + $0x9c] sm:$0xf]
      %v2278 = vld [vmem:[#allocation2 + $0xa0] sm:$0x7]
      %vm2320 = vcmask 1042432
      %vm2321 = vcmask 1046532
      %vm2322 = vmor %vm2320, %vm2321
      %v2323 = vrot.slane %v2238, 5
      %v2324 = vrot.slane %v2323, 4
      %v2325 = vrot.slane %v2239, 5
      %v2326 = vsel %vm2322, %v2324, %v2325
      %v2327 = vrot.slane %v2325, 4
      %v2328 = vrot.slane %v2240, 5
      %v2329 = vsel %vm2322, %v2327, %v2328
      %v2330 = vrot.slane %v2328, 4
      %v2331 = vrot.slane %v2241, 5
      %v2332 = vsel %vm2322, %v2330, %v2331
      %v2333 = vrot.slane %v2331, 4
      %v2334 = vrot.slane %v2242, 5
      %v2335 = vsel %vm2322, %v2333, %v2334
      %v2336 = vrot.slane %v2334, 4
      %v2337 = vrot.slane %v2243, 5
      %v2338 = vsel %vm2322, %v2336, %v2337
      %v2339 = vrot.slane %v2337, 4
      %v2340 = vrot.slane %v2244, 5
      %v2341 = vsel %vm2322, %v2339, %v2340
      %v2342 = vrot.slane %v2340, 4
      %v2343 = vrot.slane %v2245, 5
      %v2344 = vsel %vm2322, %v2342, %v2343
      %v2345 = vrot.slane %v2343, 4
      %v2346 = vrot.slane %v2246, 5
      %v2347 = vsel %vm2322, %v2345, %v2346
      %v2348 = vrot.slane %v2346, 4
      %v2349 = vrot.slane %v2247, 5
      %v2350 = vsel %vm2322, %v2348, %v2349
      %v2351 = vrot.slane %v2349, 4
      %v2352 = vrot.slane %v2248, 5
      %v2353 = vsel %vm2322, %v2351, %v2352
      %v2354 = vrot.slane %v2352, 4
      %v2355 = vrot.slane %v2249, 5
      %v2356 = vsel %vm2322, %v2354, %v2355
      %v2357 = vrot.slane %v2355, 4
      %v2358 = vrot.slane %v2250, 5
      %v2359 = vsel %vm2322, %v2357, %v2358
      %v2360 = vrot.slane %v2358, 4
      %v2361 = vrot.slane %v2251, 5
      %v2362 = vsel %vm2322, %v2360, %v2361
      %v2363 = vrot.slane %v2361, 4
      %v2364 = vrot.slane %v2252, 5
      %v2365 = vsel %vm2322, %v2363, %v2364
      %v2366 = vrot.slane %v2364, 4
      %v2367 = vrot.slane %v2253, 5
      %v2368 = vsel %vm2322, %v2366, %v2367
      %v2369 = vrot.slane %v2367, 4
      %v2370 = vrot.slane %v2254, 5
      %v2371 = vsel %vm2322, %v2369, %v2370
      %v2372 = vrot.slane %v2370, 4
      %v2373 = vrot.slane %v2255, 5
      %v2374 = vsel %vm2322, %v2372, %v2373
      %v2375 = vrot.slane %v2373, 4
      %v2376 = vrot.slane %v2256, 5
      %v2377 = vsel %vm2322, %v2375, %v2376
      %v2378 = vrot.slane %v2376, 4
      %v2379 = vrot.slane %v2257, 5
      %v2380 = vsel %vm2322, %v2378, %v2379
      %v2381 = vrot.slane %v2379, 4
      %v2382 = vrot.slane %v2258, 5
      %v2383 = vsel %vm2322, %v2381, %v2382
      %v2384 = vrot.slane %v2382, 4
      %v2385 = vrot.slane %v2259, 5
      %v2386 = vsel %vm2322, %v2384, %v2385
      %v2387 = vrot.slane %v2385, 4
      %v2388 = vrot.slane %v2260, 5
      %v2389 = vsel %vm2322, %v2387, %v2388
      %v2390 = vrot.slane %v2388, 4
      %v2391 = vrot.slane %v2261, 5
      %v2392 = vsel %vm2322, %v2390, %v2391
      %v2393 = vrot.slane %v2391, 4
      %v2394 = vrot.slane %v2262, 5
      %v2395 = vsel %vm2322, %v2393, %v2394
      %v2396 = vrot.slane %v2394, 4
      %v2397 = vrot.slane %v2263, 5
      %v2398 = vsel %vm2322, %v2396, %v2397
      %v2399 = vrot.slane %v2397, 4
      %v2400 = vrot.slane %v2264, 5
      %v2401 = vsel %vm2322, %v2399, %v2400
      %v2402 = vrot.slane %v2400, 4
      %v2403 = vrot.slane %v2265, 5
      %v2404 = vsel %vm2322, %v2402, %v2403
      %v2405 = vrot.slane %v2403, 4
      %v2406 = vrot.slane %v2266, 5
      %v2407 = vsel %vm2322, %v2405, %v2406
      %v2408 = vrot.slane %v2406, 4
      %v2409 = vrot.slane %v2267, 5
      %v2410 = vsel %vm2322, %v2408, %v2409
      %v2411 = vrot.slane %v2409, 4
      %v2412 = vrot.slane %v2268, 5
      %v2413 = vsel %vm2322, %v2411, %v2412
      %v2414 = vrot.slane %v2412, 4
      %v2415 = vrot.slane %v2269, 5
      %v2416 = vsel %vm2322, %v2414, %v2415
      %v2417 = vrot.slane %v2415, 4
      %v2418 = vrot.slane %v2270, 5
      %v2419 = vsel %vm2322, %v2417, %v2418
      %v2420 = vrot.slane %v2418, 4
      %v2421 = vrot.slane %v2271, 5
      %v2422 = vsel %vm2322, %v2420, %v2421
      %v2423 = vrot.slane %v2421, 4
      %v2424 = vrot.slane %v2272, 5
      %v2425 = vsel %vm2322, %v2423, %v2424
      %v2426 = vrot.slane %v2424, 4
      %v2427 = vrot.slane %v2273, 5
      %v2428 = vsel %vm2322, %v2426, %v2427
      %v2429 = vrot.slane %v2427, 4
      %v2430 = vrot.slane %v2274, 5
      %v2431 = vsel %vm2322, %v2429, %v2430
      %v2432 = vrot.slane %v2430, 4
      %v2433 = vrot.slane %v2275, 5
      %v2434 = vsel %vm2322, %v2432, %v2433
      %v2435 = vrot.slane %v2433, 4
      %v2436 = vrot.slane %v2276, 5
      %v2437 = vsel %vm2322, %v2435, %v2436
      %v2438 = vrot.slane %v2436, 4
      %v2439 = vrot.slane %v2277, 5
      %v2440 = vsel %vm2322, %v2438, %v2439
      %v2441 = vrot.slane %v2439, 4
      %v2442 = vrot.slane %v2278, 5
      %v2443 = vsel %vm2322, %v2441, %v2442
      %v2444 = vrot.slane %v2442, 4
      %2445 = vrot.lane.b32.xlu0 %v2326, 16
      %v2446 = vpop.permute.xlu0 %2445
      %2447 = vrot.lane.b32.xlu0 %v2329, 16
      %v2448 = vpop.permute.xlu0 %2447
      %2449 = vrot.lane.b32.xlu0 %v2332, 16
      %v2450 = vpop.permute.xlu0 %2449
      %2451 = vrot.lane.b32.xlu0 %v2335, 16
      %v2452 = vpop.permute.xlu0 %2451
      %2453 = vrot.lane.b32.xlu0 %v2338, 16
      %v2454 = vpop.permute.xlu0 %2453
      %2455 = vrot.lane.b32.xlu0 %v2341, 16
      %v2456 = vpop.permute.xlu0 %2455
      %2457 = vrot.lane.b32.xlu0 %v2344, 16
      %v2458 = vpop.permute.xlu0 %2457
      %2459 = vrot.lane.b32.xlu0 %v2347, 16
      %v2460 = vpop.permute.xlu0 %2459
      %2461 = vrot.lane.b32.xlu0 %v2350, 16
      %v2462 = vpop.permute.xlu0 %2461
      %2463 = vrot.lane.b32.xlu0 %v2353, 16
      %v2464 = vpop.permute.xlu0 %2463
      %2465 = vrot.lane.b32.xlu0 %v2356, 16
      %v2466 = vpop.permute.xlu0 %2465
      %2467 = vrot.lane.b32.xlu0 %v2359, 16
      %v2468 = vpop.permute.xlu0 %2467
      %2469 = vrot.lane.b32.xlu0 %v2362, 16
      %v2470 = vpop.permute.xlu0 %2469
      %2471 = vrot.lane.b32.xlu0 %v2365, 16
      %v2472 = vpop.permute.xlu0 %2471
      %2473 = vrot.lane.b32.xlu0 %v2368, 16
      %v2474 = vpop.permute.xlu0 %2473
      %2475 = vrot.lane.b32.xlu0 %v2371, 16
      %v2476 = vpop.permute.xlu0 %2475
      %2477 = vrot.lane.b32.xlu0 %v2374, 16
      %v2478 = vpop.permute.xlu0 %2477
      %2479 = vrot.lane.b32.xlu0 %v2377, 16
      %v2480 = vpop.permute.xlu0 %2479
      %2481 = vrot.lane.b32.xlu0 %v2380, 16
      %v2482 = vpop.permute.xlu0 %2481
      %2483 = vrot.lane.b32.xlu0 %v2383, 16
      %v2484 = vpop.permute.xlu0 %2483
      %2485 = vrot.lane.b32.xlu0 %v2386, 16
      %v2486 = vpop.permute.xlu0 %2485
      %2487 = vrot.lane.b32.xlu0 %v2389, 16
      %v2488 = vpop.permute.xlu0 %2487
      %2489 = vrot.lane.b32.xlu0 %v2392, 16
      %v2490 = vpop.permute.xlu0 %2489
      %2491 = vrot.lane.b32.xlu0 %v2395, 16
      %v2492 = vpop.permute.xlu0 %2491
      %2493 = vrot.lane.b32.xlu0 %v2398, 16
      %v2494 = vpop.permute.xlu0 %2493
      %2495 = vrot.lane.b32.xlu0 %v2401, 16
      %v2496 = vpop.permute.xlu0 %2495
      %2497 = vrot.lane.b32.xlu0 %v2404, 16
      %v2498 = vpop.permute.xlu0 %2497
      %2499 = vrot.lane.b32.xlu0 %v2407, 16
      %v2500 = vpop.permute.xlu0 %2499
      %2501 = vrot.lane.b32.xlu0 %v2410, 16
      %v2502 = vpop.permute.xlu0 %2501
      %2503 = vrot.lane.b32.xlu0 %v2413, 16
      %v2504 = vpop.permute.xlu0 %2503
      %2505 = vrot.lane.b32.xlu0 %v2416, 16
      %v2506 = vpop.permute.xlu0 %2505
      %2507 = vrot.lane.b32.xlu0 %v2419, 16
      %v2508 = vpop.permute.xlu0 %2507
      %2509 = vrot.lane.b32.xlu0 %v2422, 16
      %v2510 = vpop.permute.xlu0 %2509
      %2511 = vrot.lane.b32.xlu0 %v2425, 16
      %v2512 = vpop.permute.xlu0 %2511
      %2513 = vrot.lane.b32.xlu0 %v2428, 16
      %v2514 = vpop.permute.xlu0 %2513
      %2515 = vrot.lane.b32.xlu0 %v2431, 16
      %v2516 = vpop.permute.xlu0 %2515
      %2517 = vrot.lane.b32.xlu0 %v2434, 16
      %v2518 = vpop.permute.xlu0 %2517
      %2519 = vrot.lane.b32.xlu0 %v2437, 16
      %v2520 = vpop.permute.xlu0 %2519
      %2521 = vrot.lane.b32.xlu0 %v2440, 16
      %v2522 = vpop.permute.xlu0 %2521
      %2523 = vrot.lane.b32.xlu0 %v2443, 16
      %v2524 = vpop.permute.xlu0 %2523
      %2525 = vrot.lane.b32.xlu0 %v2444, 16
      %v2526 = vpop.permute.xlu0 %2525
      %vm2568 = vcmask 191616
      %2569 = vst.msk [vmem:[#allocation3] sm:$0xf] %vm2568, %v2446
      %2570 = vst.msk [vmem:[#allocation3 + $0x4] sm:$0xf] %vm2568, %v2448
      %2571 = vst.msk [vmem:[#allocation3 + $0x8] sm:$0xf] %vm2568, %v2450
      %2572 = vst.msk [vmem:[#allocation3 + $0xc] sm:$0xf] %vm2568, %v2452
      %2573 = vst.msk [vmem:[#allocation3 + $0x10] sm:$0xf] %vm2568, %v2454
      %2574 = vst.msk [vmem:[#allocation3 + $0x14] sm:$0xf] %vm2568, %v2456
      %2575 = vst.msk [vmem:[#allocation3 + $0x18] sm:$0xf] %vm2568, %v2458
      %2576 = vst.msk [vmem:[#allocation3 + $0x1c] sm:$0xf] %vm2568, %v2460
      %2577 = vst.msk [vmem:[#allocation3 + $0x20] sm:$0xf] %vm2568, %v2462
      %2578 = vst.msk [vmem:[#allocation3 + $0x24] sm:$0xf] %vm2568, %v2464
      %2579 = vst.msk [vmem:[#allocation3 + $0x28] sm:$0xf] %vm2568, %v2466
      %2580 = vst.msk [vmem:[#allocation3 + $0x2c] sm:$0xf] %vm2568, %v2468
      %2581 = vst.msk [vmem:[#allocation3 + $0x30] sm:$0xf] %vm2568, %v2470
      %2582 = vst.msk [vmem:[#allocation3 + $0x34] sm:$0xf] %vm2568, %v2472
      %2583 = vst.msk [vmem:[#allocation3 + $0x38] sm:$0xf] %vm2568, %v2474
      %2584 = vst.msk [vmem:[#allocation3 + $0x3c] sm:$0xf] %vm2568, %v2476
      %2585 = vst.msk [vmem:[#allocation3 + $0x40] sm:$0xf] %vm2568, %v2478
      %2586 = vst.msk [vmem:[#allocation3 + $0x44] sm:$0xf] %vm2568, %v2480
      %2587 = vst.msk [vmem:[#allocation3 + $0x48] sm:$0xf] %vm2568, %v2482
      %2588 = vst.msk [vmem:[#allocation3 + $0x4c] sm:$0xf] %vm2568, %v2484
      %2589 = vst.msk [vmem:[#allocation3 + $0x50] sm:$0xf] %vm2568, %v2486
      %2590 = vst.msk [vmem:[#allocation3 + $0x54] sm:$0xf] %vm2568, %v2488
      %2591 = vst.msk [vmem:[#allocation3 + $0x58] sm:$0xf] %vm2568, %v2490
      %2592 = vst.msk [vmem:[#allocation3 + $0x5c] sm:$0xf] %vm2568, %v2492
      %2593 = vst.msk [vmem:[#allocation3 + $0x60] sm:$0xf] %vm2568, %v2494
      %2594 = vst.msk [vmem:[#allocation3 + $0x64] sm:$0xf] %vm2568, %v2496
      %2595 = vst.msk [vmem:[#allocation3 + $0x68] sm:$0xf] %vm2568, %v2498
      %2596 = vst.msk [vmem:[#allocation3 + $0x6c] sm:$0xf] %vm2568, %v2500
      %2597 = vst.msk [vmem:[#allocation3 + $0x70] sm:$0xf] %vm2568, %v2502
      %2598 = vst.msk [vmem:[#allocation3 + $0x74] sm:$0xf] %vm2568, %v2504
      %2599 = vst.msk [vmem:[#allocation3 + $0x78] sm:$0xf] %vm2568, %v2506
      %2600 = vst.msk [vmem:[#allocation3 + $0x7c] sm:$0xf] %vm2568, %v2508
      %2601 = vst.msk [vmem:[#allocation3 + $0x80] sm:$0xf] %vm2568, %v2510
      %2602 = vst.msk [vmem:[#allocation3 + $0x84] sm:$0xf] %vm2568, %v2512
      %2603 = vst.msk [vmem:[#allocation3 + $0x88] sm:$0xf] %vm2568, %v2514
      %2604 = vst.msk [vmem:[#allocation3 + $0x8c] sm:$0xf] %vm2568, %v2516
      %2605 = vst.msk [vmem:[#allocation3 + $0x90] sm:$0xf] %vm2568, %v2518
      %2606 = vst.msk [vmem:[#allocation3 + $0x94] sm:$0xf] %vm2568, %v2520
      %2607 = vst.msk [vmem:[#allocation3 + $0x98] sm:$0xf] %vm2568, %v2522
      %2608 = vst.msk [vmem:[#allocation3 + $0x9c] sm:$0xf] %vm2568, %v2524
      %vm2609 = vcmask 189568
      %2610 = vst.msk [vmem:[#allocation3 + $0xa0] sm:$0x3] %vm2609, %v2526
      %v2611 = vld [vmem:[#allocation2 + $0x8] sm:$0xe]
      %v2612 = vld [vmem:[#allocation2 + $0xc] sm:$0xf]
      %v2613 = vld [vmem:[#allocation2 + $0x10] sm:$0xf]
      %v2614 = vld [vmem:[#allocation2 + $0x14] sm:$0xf]
      %v2615 = vld [vmem:[#allocation2 + $0x18] sm:$0xf]
      %v2616 = vld [vmem:[#allocation2 + $0x1c] sm:$0xf]
      %v2617 = vld [vmem:[#allocation2 + $0x20] sm:$0xf]
      %v2618 = vld [vmem:[#allocation2 + $0x24] sm:$0xf]
      %v2619 = vld [vmem:[#allocation2 + $0x28] sm:$0xf]
      %v2620 = vld [vmem:[#allocation2 + $0x2c] sm:$0xf]
      %v2621 = vld [vmem:[#allocation2 + $0x30] sm:$0xf]
      %v2622 = vld [vmem:[#allocation2 + $0x34] sm:$0xf]
      %v2623 = vld [vmem:[#allocation2 + $0x38] sm:$0xf]
      %v2624 = vld [vmem:[#allocation2 + $0x3c] sm:$0xf]
      %v2625 = vld [vmem:[#allocation2 + $0x40] sm:$0xf]
      %v2626 = vld [vmem:[#allocation2 + $0x44] sm:$0xf]
      %v2627 = vld [vmem:[#allocation2 + $0x48] sm:$0xf]
      %v2628 = vld [vmem:[#allocation2 + $0x4c] sm:$0xf]
      %v2629 = vld [vmem:[#allocation2 + $0x50] sm:$0xf]
      %v2630 = vld [vmem:[#allocation2 + $0x54] sm:$0xf]
      %v2631 = vld [vmem:[#allocation2 + $0x58] sm:$0xf]
      %v2632 = vld [vmem:[#allocation2 + $0x5c] sm:$0xf]
      %v2633 = vld [vmem:[#allocation2 + $0x60] sm:$0xf]
      %v2634 = vld [vmem:[#allocation2 + $0x64] sm:$0xf]
      %v2635 = vld [vmem:[#allocation2 + $0x68] sm:$0xf]
      %v2636 = vld [vmem:[#allocation2 + $0x6c] sm:$0xf]
      %v2637 = vld [vmem:[#allocation2 + $0x70] sm:$0xf]
      %v2638 = vld [vmem:[#allocation2 + $0x74] sm:$0xf]
      %v2639 = vld [vmem:[#allocation2 + $0x78] sm:$0xf]
      %v2640 = vld [vmem:[#allocation2 + $0x7c] sm:$0xf]
      %v2641 = vld [vmem:[#allocation2 + $0x80] sm:$0xf]
      %v2642 = vld [vmem:[#allocation2 + $0x84] sm:$0xf]
      %v2643 = vld [vmem:[#allocation2 + $0x88] sm:$0xf]
      %v2644 = vld [vmem:[#allocation2 + $0x8c] sm:$0xf]
      %v2645 = vld [vmem:[#allocation2 + $0x90] sm:$0xf]
      %v2646 = vld [vmem:[#allocation2 + $0x94] sm:$0xf]
      %v2647 = vld [vmem:[#allocation2 + $0x98] sm:$0xf]
      %v2648 = vld [vmem:[#allocation2 + $0x9c] sm:$0xf]
      %v2649 = vld [vmem:[#allocation2 + $0xa0] sm:$0xf]
      %v2650 = vld [vmem:[#allocation2 + $0xa4] sm:$0xf]
      %v2651 = vld [vmem:[#allocation2 + $0xa8] sm:$0x7]
      %v2693 = vrot.slane %v2611, 5
      %v2694 = vrot.slane %v2693, 4
      %v2695 = vrot.slane %v2612, 5
      %v2696 = vsel %vm2322, %v2694, %v2695
      %v2697 = vrot.slane %v2695, 4
      %v2698 = vrot.slane %v2613, 5
      %v2699 = vsel %vm2322, %v2697, %v2698
      %v2700 = vrot.slane %v2698, 4
      %v2701 = vrot.slane %v2614, 5
      %v2702 = vsel %vm2322, %v2700, %v2701
      %v2703 = vrot.slane %v2701, 4
      %v2704 = vrot.slane %v2615, 5
      %v2705 = vsel %vm2322, %v2703, %v2704
      %v2706 = vrot.slane %v2704, 4
      %v2707 = vrot.slane %v2616, 5
      %v2708 = vsel %vm2322, %v2706, %v2707
      %v2709 = vrot.slane %v2707, 4
      %v2710 = vrot.slane %v2617, 5
      %v2711 = vsel %vm2322, %v2709, %v2710
      %v2712 = vrot.slane %v2710, 4
      %v2713 = vrot.slane %v2618, 5
      %v2714 = vsel %vm2322, %v2712, %v2713
      %v2715 = vrot.slane %v2713, 4
      %v2716 = vrot.slane %v2619, 5
      %v2717 = vsel %vm2322, %v2715, %v2716
      %v2718 = vrot.slane %v2716, 4
      %v2719 = vrot.slane %v2620, 5
      %v2720 = vsel %vm2322, %v2718, %v2719
      %v2721 = vrot.slane %v2719, 4
      %v2722 = vrot.slane %v2621, 5
      %v2723 = vsel %vm2322, %v2721, %v2722
      %v2724 = vrot.slane %v2722, 4
      %v2725 = vrot.slane %v2622, 5
      %v2726 = vsel %vm2322, %v2724, %v2725
      %v2727 = vrot.slane %v2725, 4
      %v2728 = vrot.slane %v2623, 5
      %v2729 = vsel %vm2322, %v2727, %v2728
      %v2730 = vrot.slane %v2728, 4
      %v2731 = vrot.slane %v2624, 5
      %v2732 = vsel %vm2322, %v2730, %v2731
      %v2733 = vrot.slane %v2731, 4
      %v2734 = vrot.slane %v2625, 5
      %v2735 = vsel %vm2322, %v2733, %v2734
      %v2736 = vrot.slane %v2734, 4
      %v2737 = vrot.slane %v2626, 5
      %v2738 = vsel %vm2322, %v2736, %v2737
      %v2739 = vrot.slane %v2737, 4
      %v2740 = vrot.slane %v2627, 5
      %v2741 = vsel %vm2322, %v2739, %v2740
      %v2742 = vrot.slane %v2740, 4
      %v2743 = vrot.slane %v2628, 5
      %v2744 = vsel %vm2322, %v2742, %v2743
      %v2745 = vrot.slane %v2743, 4
      %v2746 = vrot.slane %v2629, 5
      %v2747 = vsel %vm2322, %v2745, %v2746
      %v2748 = vrot.slane %v2746, 4
      %v2749 = vrot.slane %v2630, 5
      %v2750 = vsel %vm2322, %v2748, %v2749
      %v2751 = vrot.slane %v2749, 4
      %v2752 = vrot.slane %v2631, 5
      %v2753 = vsel %vm2322, %v2751, %v2752
      %v2754 = vrot.slane %v2752, 4
      %v2755 = vrot.slane %v2632, 5
      %v2756 = vsel %vm2322, %v2754, %v2755
      %v2757 = vrot.slane %v2755, 4
      %v2758 = vrot.slane %v2633, 5
      %v2759 = vsel %vm2322, %v2757, %v2758
      %v2760 = vrot.slane %v2758, 4
      %v2761 = vrot.slane %v2634, 5
      %v2762 = vsel %vm2322, %v2760, %v2761
      %v2763 = vrot.slane %v2761, 4
      %v2764 = vrot.slane %v2635, 5
      %v2765 = vsel %vm2322, %v2763, %v2764
      %v2766 = vrot.slane %v2764, 4
      %v2767 = vrot.slane %v2636, 5
      %v2768 = vsel %vm2322, %v2766, %v2767
      %v2769 = vrot.slane %v2767, 4
      %v2770 = vrot.slane %v2637, 5
      %v2771 = vsel %vm2322, %v2769, %v2770
      %v2772 = vrot.slane %v2770, 4
      %v2773 = vrot.slane %v2638, 5
      %v2774 = vsel %vm2322, %v2772, %v2773
      %v2775 = vrot.slane %v2773, 4
      %v2776 = vrot.slane %v2639, 5
      %v2777 = vsel %vm2322, %v2775, %v2776
      %v2778 = vrot.slane %v2776, 4
      %v2779 = vrot.slane %v2640, 5
      %v2780 = vsel %vm2322, %v2778, %v2779
      %v2781 = vrot.slane %v2779, 4
      %v2782 = vrot.slane %v2641, 5
      %v2783 = vsel %vm2322, %v2781, %v2782
      %v2784 = vrot.slane %v2782, 4
      %v2785 = vrot.slane %v2642, 5
      %v2786 = vsel %vm2322, %v2784, %v2785
      %v2787 = vrot.slane %v2785, 4
      %v2788 = vrot.slane %v2643, 5
      %v2789 = vsel %vm2322, %v2787, %v2788
      %v2790 = vrot.slane %v2788, 4
      %v2791 = vrot.slane %v2644, 5
      %v2792 = vsel %vm2322, %v2790, %v2791
      %v2793 = vrot.slane %v2791, 4
      %v2794 = vrot.slane %v2645, 5
      %v2795 = vsel %vm2322, %v2793, %v2794
      %v2796 = vrot.slane %v2794, 4
      %v2797 = vrot.slane %v2646, 5
      %v2798 = vsel %vm2322, %v2796, %v2797
      %v2799 = vrot.slane %v2797, 4
      %v2800 = vrot.slane %v2647, 5
      %v2801 = vsel %vm2322, %v2799, %v2800
      %v2802 = vrot.slane %v2800, 4
      %v2803 = vrot.slane %v2648, 5
      %v2804 = vsel %vm2322, %v2802, %v2803
      %v2805 = vrot.slane %v2803, 4
      %v2806 = vrot.slane %v2649, 5
      %v2807 = vsel %vm2322, %v2805, %v2806
      %v2808 = vrot.slane %v2806, 4
      %v2809 = vrot.slane %v2650, 5
      %v2810 = vsel %vm2322, %v2808, %v2809
      %v2811 = vrot.slane %v2809, 4
      %v2812 = vrot.slane %v2651, 5
      %v2813 = vsel %vm2322, %v2811, %v2812
      %v2814 = vrot.slane %v2812, 4
      %2815 = vrot.lane.b32.xlu0 %v2696, 24
      %v2816 = vpop.permute.xlu0 %2815
      %2817 = vrot.lane.b32.xlu0 %v2699, 24
      %v2818 = vpop.permute.xlu0 %2817
      %2819 = vrot.lane.b32.xlu0 %v2702, 24
      %v2820 = vpop.permute.xlu0 %2819
      %2821 = vrot.lane.b32.xlu0 %v2705, 24
      %v2822 = vpop.permute.xlu0 %2821
      %2823 = vrot.lane.b32.xlu0 %v2708, 24
      %v2824 = vpop.permute.xlu0 %2823
      %2825 = vrot.lane.b32.xlu0 %v2711, 24
      %v2826 = vpop.permute.xlu0 %2825
      %2827 = vrot.lane.b32.xlu0 %v2714, 24
      %v2828 = vpop.permute.xlu0 %2827
      %2829 = vrot.lane.b32.xlu0 %v2717, 24
      %v2830 = vpop.permute.xlu0 %2829
      %2831 = vrot.lane.b32.xlu0 %v2720, 24
      %v2832 = vpop.permute.xlu0 %2831
      %2833 = vrot.lane.b32.xlu0 %v2723, 24
      %v2834 = vpop.permute.xlu0 %2833
      %2835 = vrot.lane.b32.xlu0 %v2726, 24
      %v2836 = vpop.permute.xlu0 %2835
      %2837 = vrot.lane.b32.xlu0 %v2729, 24
      %v2838 = vpop.permute.xlu0 %2837
      %2839 = vrot.lane.b32.xlu0 %v2732, 24
      %v2840 = vpop.permute.xlu0 %2839
      %2841 = vrot.lane.b32.xlu0 %v2735, 24
      %v2842 = vpop.permute.xlu0 %2841
      %2843 = vrot.lane.b32.xlu0 %v2738, 24
      %v2844 = vpop.permute.xlu0 %2843
      %2845 = vrot.lane.b32.xlu0 %v2741, 24
      %v2846 = vpop.permute.xlu0 %2845
      %2847 = vrot.lane.b32.xlu0 %v2744, 24
      %v2848 = vpop.permute.xlu0 %2847
      %2849 = vrot.lane.b32.xlu0 %v2747, 24
      %v2850 = vpop.permute.xlu0 %2849
      %2851 = vrot.lane.b32.xlu0 %v2750, 24
      %v2852 = vpop.permute.xlu0 %2851
      %2853 = vrot.lane.b32.xlu0 %v2753, 24
      %v2854 = vpop.permute.xlu0 %2853
      %2855 = vrot.lane.b32.xlu0 %v2756, 24
      %v2856 = vpop.permute.xlu0 %2855
      %2857 = vrot.lane.b32.xlu0 %v2759, 24
      %v2858 = vpop.permute.xlu0 %2857
      %2859 = vrot.lane.b32.xlu0 %v2762, 24
      %v2860 = vpop.permute.xlu0 %2859
      %2861 = vrot.lane.b32.xlu0 %v2765, 24
      %v2862 = vpop.permute.xlu0 %2861
      %2863 = vrot.lane.b32.xlu0 %v2768, 24
      %v2864 = vpop.permute.xlu0 %2863
      %2865 = vrot.lane.b32.xlu0 %v2771, 24
      %v2866 = vpop.permute.xlu0 %2865
      %2867 = vrot.lane.b32.xlu0 %v2774, 24
      %v2868 = vpop.permute.xlu0 %2867
      %2869 = vrot.lane.b32.xlu0 %v2777, 24
      %v2870 = vpop.permute.xlu0 %2869
      %2871 = vrot.lane.b32.xlu0 %v2780, 24
      %v2872 = vpop.permute.xlu0 %2871
      %2873 = vrot.lane.b32.xlu0 %v2783, 24
      %v2874 = vpop.permute.xlu0 %2873
      %2875 = vrot.lane.b32.xlu0 %v2786, 24
      %v2876 = vpop.permute.xlu0 %2875
      %2877 = vrot.lane.b32.xlu0 %v2789, 24
      %v2878 = vpop.permute.xlu0 %2877
      %2879 = vrot.lane.b32.xlu0 %v2792, 24
      %v2880 = vpop.permute.xlu0 %2879
      %2881 = vrot.lane.b32.xlu0 %v2795, 24
      %v2882 = vpop.permute.xlu0 %2881
      %2883 = vrot.lane.b32.xlu0 %v2798, 24
      %v2884 = vpop.permute.xlu0 %2883
      %2885 = vrot.lane.b32.xlu0 %v2801, 24
      %v2886 = vpop.permute.xlu0 %2885
      %2887 = vrot.lane.b32.xlu0 %v2804, 24
      %v2888 = vpop.permute.xlu0 %2887
      %2889 = vrot.lane.b32.xlu0 %v2807, 24
      %v2890 = vpop.permute.xlu0 %2889
      %2891 = vrot.lane.b32.xlu0 %v2810, 24
      %v2892 = vpop.permute.xlu0 %2891
      %2893 = vrot.lane.b32.xlu0 %v2813, 24
      %v2894 = vpop.permute.xlu0 %2893
      %2895 = vrot.lane.b32.xlu0 %v2814, 24
      %v2896 = vpop.permute.xlu0 %2895
      %vm2938 = vcmask 257216
      %2939 = vst.msk [vmem:[#allocation3] sm:$0xf] %vm2938, %v2816
      %2940 = vst.msk [vmem:[#allocation3 + $0x4] sm:$0xf] %vm2938, %v2818
      %2941 = vst.msk [vmem:[#allocation3 + $0x8] sm:$0xf] %vm2938, %v2820
      %2942 = vst.msk [vmem:[#allocation3 + $0xc] sm:$0xf] %vm2938, %v2822
      %2943 = vst.msk [vmem:[#allocation3 + $0x10] sm:$0xf] %vm2938, %v2824
      %2944 = vst.msk [vmem:[#allocation3 + $0x14] sm:$0xf] %vm2938, %v2826
      %2945 = vst.msk [vmem:[#allocation3 + $0x18] sm:$0xf] %vm2938, %v2828
      %2946 = vst.msk [vmem:[#allocation3 + $0x1c] sm:$0xf] %vm2938, %v2830
      %2947 = vst.msk [vmem:[#allocation3 + $0x20] sm:$0xf] %vm2938, %v2832
      %2948 = vst.msk [vmem:[#allocation3 + $0x24] sm:$0xf] %vm2938, %v2834
      %2949 = vst.msk [vmem:[#allocation3 + $0x28] sm:$0xf] %vm2938, %v2836
      %2950 = vst.msk [vmem:[#allocation3 + $0x2c] sm:$0xf] %vm2938, %v2838
      %2951 = vst.msk [vmem:[#allocation3 + $0x30] sm:$0xf] %vm2938, %v2840
      %2952 = vst.msk [vmem:[#allocation3 + $0x34] sm:$0xf] %vm2938, %v2842
      %2953 = vst.msk [vmem:[#allocation3 + $0x38] sm:$0xf] %vm2938, %v2844
      %2954 = vst.msk [vmem:[#allocation3 + $0x3c] sm:$0xf] %vm2938, %v2846
      %2955 = vst.msk [vmem:[#allocation3 + $0x40] sm:$0xf] %vm2938, %v2848
      %2956 = vst.msk [vmem:[#allocation3 + $0x44] sm:$0xf] %vm2938, %v2850
      %2957 = vst.msk [vmem:[#allocation3 + $0x48] sm:$0xf] %vm2938, %v2852
      %2958 = vst.msk [vmem:[#allocation3 + $0x4c] sm:$0xf] %vm2938, %v2854
      %2959 = vst.msk [vmem:[#allocation3 + $0x50] sm:$0xf] %vm2938, %v2856
      %2960 = vst.msk [vmem:[#allocation3 + $0x54] sm:$0xf] %vm2938, %v2858
      %2961 = vst.msk [vmem:[#allocation3 + $0x58] sm:$0xf] %vm2938, %v2860
      %2962 = vst.msk [vmem:[#allocation3 + $0x5c] sm:$0xf] %vm2938, %v2862
      %2963 = vst.msk [vmem:[#allocation3 + $0x60] sm:$0xf] %vm2938, %v2864
      %2964 = vst.msk [vmem:[#allocation3 + $0x64] sm:$0xf] %vm2938, %v2866
      %2965 = vst.msk [vmem:[#allocation3 + $0x68] sm:$0xf] %vm2938, %v2868
      %2966 = vst.msk [vmem:[#allocation3 + $0x6c] sm:$0xf] %vm2938, %v2870
      %2967 = vst.msk [vmem:[#allocation3 + $0x70] sm:$0xf] %vm2938, %v2872
      %2968 = vst.msk [vmem:[#allocation3 + $0x74] sm:$0xf] %vm2938, %v2874
      %2969 = vst.msk [vmem:[#allocation3 + $0x78] sm:$0xf] %vm2938, %v2876
      %2970 = vst.msk [vmem:[#allocation3 + $0x7c] sm:$0xf] %vm2938, %v2878
      %2971 = vst.msk [vmem:[#allocation3 + $0x80] sm:$0xf] %vm2938, %v2880
      %2972 = vst.msk [vmem:[#allocation3 + $0x84] sm:$0xf] %vm2938, %v2882
      %2973 = vst.msk [vmem:[#allocation3 + $0x88] sm:$0xf] %vm2938, %v2884
      %2974 = vst.msk [vmem:[#allocation3 + $0x8c] sm:$0xf] %vm2938, %v2886
      %2975 = vst.msk [vmem:[#allocation3 + $0x90] sm:$0xf] %vm2938, %v2888
      %2976 = vst.msk [vmem:[#allocation3 + $0x94] sm:$0xf] %vm2938, %v2890
      %2977 = vst.msk [vmem:[#allocation3 + $0x98] sm:$0xf] %vm2938, %v2892
      %2978 = vst.msk [vmem:[#allocation3 + $0x9c] sm:$0xf] %vm2938, %v2894
      %vm2979 = vcmask 255168
      %2980 = vst.msk [vmem:[#allocation3 + $0xa0] sm:$0x3] %vm2979, %v2896
      %v2981 = vld [vmem:[#allocation2 + $0x8] sm:$0xe]
      %v2982 = vld [vmem:[#allocation2 + $0xc] sm:$0xf]
      %v2983 = vld [vmem:[#allocation2 + $0x10] sm:$0xf]
      %v2984 = vld [vmem:[#allocation2 + $0x14] sm:$0xf]
      %v2985 = vld [vmem:[#allocation2 + $0x18] sm:$0xf]
      %v2986 = vld [vmem:[#allocation2 + $0x1c] sm:$0xf]
      %v2987 = vld [vmem:[#allocation2 + $0x20] sm:$0xf]
      %v2988 = vld [vmem:[#allocation2 + $0x24] sm:$0xf]
      %v2989 = vld [vmem:[#allocation2 + $0x28] sm:$0xf]
      %v2990 = vld [vmem:[#allocation2 + $0x2c] sm:$0xf]
      %v2991 = vld [vmem:[#allocation2 + $0x30] sm:$0xf]
      %v2992 = vld [vmem:[#allocation2 + $0x34] sm:$0xf]
      %v2993 = vld [vmem:[#allocation2 + $0x38] sm:$0xf]
      %v2994 = vld [vmem:[#allocation2 + $0x3c] sm:$0xf]
      %v2995 = vld [vmem:[#allocation2 + $0x40] sm:$0xf]
      %v2996 = vld [vmem:[#allocation2 + $0x44] sm:$0xf]
      %v2997 = vld [vmem:[#allocation2 + $0x48] sm:$0xf]
      %v2998 = vld [vmem:[#allocation2 + $0x4c] sm:$0xf]
      %v2999 = vld [vmem:[#allocation2 + $0x50] sm:$0xf]
      %v3000 = vld [vmem:[#allocation2 + $0x54] sm:$0xf]
      %v3001 = vld [vmem:[#allocation2 + $0x58] sm:$0xf]
      %v3002 = vld [vmem:[#allocation2 + $0x5c] sm:$0xf]
      %v3003 = vld [vmem:[#allocation2 + $0x60] sm:$0xf]
      %v3004 = vld [vmem:[#allocation2 + $0x64] sm:$0xf]
      %v3005 = vld [vmem:[#allocation2 + $0x68] sm:$0xf]
      %v3006 = vld [vmem:[#allocation2 + $0x6c] sm:$0xf]
      %v3007 = vld [vmem:[#allocation2 + $0x70] sm:$0xf]
      %v3008 = vld [vmem:[#allocation2 + $0x74] sm:$0xf]
      %v3009 = vld [vmem:[#allocation2 + $0x78] sm:$0xf]
      %v3010 = vld [vmem:[#allocation2 + $0x7c] sm:$0xf]
      %v3011 = vld [vmem:[#allocation2 + $0x80] sm:$0xf]
      %v3012 = vld [vmem:[#allocation2 + $0x84] sm:$0xf]
      %v3013 = vld [vmem:[#allocation2 + $0x88] sm:$0xf]
      %v3014 = vld [vmem:[#allocation2 + $0x8c] sm:$0xf]
      %v3015 = vld [vmem:[#allocation2 + $0x90] sm:$0xf]
      %v3016 = vld [vmem:[#allocation2 + $0x94] sm:$0xf]
      %v3017 = vld [vmem:[#allocation2 + $0x98] sm:$0xf]
      %v3018 = vld [vmem:[#allocation2 + $0x9c] sm:$0xf]
      %v3019 = vld [vmem:[#allocation2 + $0xa0] sm:$0xf]
      %v3020 = vld [vmem:[#allocation2 + $0xa4] sm:$0xf]
      %v3021 = vld [vmem:[#allocation2 + $0xa8] sm:$0xf]
      %vm3022 = vsmask.f32 2304
      %vm3023 = vsmask.f32 6416
      %vm3024 = vmor %vm3022, %vm3023
      %v3026 = vshrl.u32 %v2981, 16
      %v3028 = vrot.slane %v3026, 5
      %v3029 = vshll.u32 %v2981, 16
      %v3031 = vrot.slane %v3029, 6
      %v3032 = vor.u32 %v3028, %v3031
      %v3033 = vrot.slane %v3032, 4
      %v3035 = vshrl.u32 %v2982, 16
      %v3037 = vrot.slane %v3035, 5
      %v3038 = vshll.u32 %v2982, 16
      %v3040 = vrot.slane %v3038, 6
      %v3041 = vor.u32 %v3037, %v3040
      %v3042 = vsel %vm3024, %v3033, %v3041
      %v3043 = vrot.slane %v3041, 4
      %v3045 = vshrl.u32 %v2983, 16
      %v3047 = vrot.slane %v3045, 5
      %v3048 = vshll.u32 %v2983, 16
      %v3050 = vrot.slane %v3048, 6
      %v3051 = vor.u32 %v3047, %v3050
      %v3052 = vsel %vm3024, %v3043, %v3051
      %v3053 = vrot.slane %v3051, 4
      %v3055 = vshrl.u32 %v2984, 16
      %v3057 = vrot.slane %v3055, 5
      %v3058 = vshll.u32 %v2984, 16
      %v3060 = vrot.slane %v3058, 6
      %v3061 = vor.u32 %v3057, %v3060
      %v3062 = vsel %vm3024, %v3053, %v3061
      %v3063 = vrot.slane %v3061, 4
      %v3065 = vshrl.u32 %v2985, 16
      %v3067 = vrot.slane %v3065, 5
      %v3068 = vshll.u32 %v2985, 16
      %v3070 = vrot.slane %v3068, 6
      %v3071 = vor.u32 %v3067, %v3070
      %v3072 = vsel %vm3024, %v3063, %v3071
      %v3073 = vrot.slane %v3071, 4
      %v3075 = vshrl.u32 %v2986, 16
      %v3077 = vrot.slane %v3075, 5
      %v3078 = vshll.u32 %v2986, 16
      %v3080 = vrot.slane %v3078, 6
      %v3081 = vor.u32 %v3077, %v3080
      %v3082 = vsel %vm3024, %v3073, %v3081
      %v3083 = vrot.slane %v3081, 4
      %v3085 = vshrl.u32 %v2987, 16
      %v3087 = vrot.slane %v3085, 5
      %v3088 = vshll.u32 %v2987, 16
      %v3090 = vrot.slane %v3088, 6
      %v3091 = vor.u32 %v3087, %v3090
      %v3092 = vsel %vm3024, %v3083, %v3091
      %v3093 = vrot.slane %v3091, 4
      %v3095 = vshrl.u32 %v2988, 16
      %v3097 = vrot.slane %v3095, 5
      %v3098 = vshll.u32 %v2988, 16
      %v3100 = vrot.slane %v3098, 6
      %v3101 = vor.u32 %v3097, %v3100
      %v3102 = vsel %vm3024, %v3093, %v3101
      %v3103 = vrot.slane %v3101, 4
      %v3105 = vshrl.u32 %v2989, 16
      %v3107 = vrot.slane %v3105, 5
      %v3108 = vshll.u32 %v2989, 16
      %v3110 = vrot.slane %v3108, 6
      %v3111 = vor.u32 %v3107, %v3110
      %v3112 = vsel %vm3024, %v3103, %v3111
      %v3113 = vrot.slane %v3111, 4
      %v3115 = vshrl.u32 %v2990, 16
      %v3117 = vrot.slane %v3115, 5
      %v3118 = vshll.u32 %v2990, 16
      %v3120 = vrot.slane %v3118, 6
      %v3121 = vor.u32 %v3117, %v3120
      %v3122 = vsel %vm3024, %v3113, %v3121
      %v3123 = vrot.slane %v3121, 4
      %v3125 = vshrl.u32 %v2991, 16
      %v3127 = vrot.slane %v3125, 5
      %v3128 = vshll.u32 %v2991, 16
      %v3130 = vrot.slane %v3128, 6
      %v3131 = vor.u32 %v3127, %v3130
      %v3132 = vsel %vm3024, %v3123, %v3131
      %v3133 = vrot.slane %v3131, 4
      %v3135 = vshrl.u32 %v2992, 16
      %v3137 = vrot.slane %v3135, 5
      %v3138 = vshll.u32 %v2992, 16
      %v3140 = vrot.slane %v3138, 6
      %v3141 = vor.u32 %v3137, %v3140
      %v3142 = vsel %vm3024, %v3133, %v3141
      %v3143 = vrot.slane %v3141, 4
      %v3145 = vshrl.u32 %v2993, 16
      %v3147 = vrot.slane %v3145, 5
      %v3148 = vshll.u32 %v2993, 16
      %v3150 = vrot.slane %v3148, 6
      %v3151 = vor.u32 %v3147, %v3150
      %v3152 = vsel %vm3024, %v3143, %v3151
      %v3153 = vrot.slane %v3151, 4
      %v3155 = vshrl.u32 %v2994, 16
      %v3157 = vrot.slane %v3155, 5
      %v3158 = vshll.u32 %v2994, 16
      %v3160 = vrot.slane %v3158, 6
      %v3161 = vor.u32 %v3157, %v3160
      %v3162 = vsel %vm3024, %v3153, %v3161
      %v3163 = vrot.slane %v3161, 4
      %v3165 = vshrl.u32 %v2995, 16
      %v3167 = vrot.slane %v3165, 5
      %v3168 = vshll.u32 %v2995, 16
      %v3170 = vrot.slane %v3168, 6
      %v3171 = vor.u32 %v3167, %v3170
      %v3172 = vsel %vm3024, %v3163, %v3171
      %v3173 = vrot.slane %v3171, 4
      %v3175 = vshrl.u32 %v2996, 16
      %v3177 = vrot.slane %v3175, 5
      %v3178 = vshll.u32 %v2996, 16
      %v3180 = vrot.slane %v3178, 6
      %v3181 = vor.u32 %v3177, %v3180
      %v3182 = vsel %vm3024, %v3173, %v3181
      %v3183 = vrot.slane %v3181, 4
      %v3185 = vshrl.u32 %v2997, 16
      %v3187 = vrot.slane %v3185, 5
      %v3188 = vshll.u32 %v2997, 16
      %v3190 = vrot.slane %v3188, 6
      %v3191 = vor.u32 %v3187, %v3190
      %v3192 = vsel %vm3024, %v3183, %v3191
      %v3193 = vrot.slane %v3191, 4
      %v3195 = vshrl.u32 %v2998, 16
      %v3197 = vrot.slane %v3195, 5
      %v3198 = vshll.u32 %v2998, 16
      %v3200 = vrot.slane %v3198, 6
      %v3201 = vor.u32 %v3197, %v3200
      %v3202 = vsel %vm3024, %v3193, %v3201
      %v3203 = vrot.slane %v3201, 4
      %v3205 = vshrl.u32 %v2999, 16
      %v3207 = vrot.slane %v3205, 5
      %v3208 = vshll.u32 %v2999, 16
      %v3210 = vrot.slane %v3208, 6
      %v3211 = vor.u32 %v3207, %v3210
      %v3212 = vsel %vm3024, %v3203, %v3211
      %v3213 = vrot.slane %v3211, 4
      %v3215 = vshrl.u32 %v3000, 16
      %v3217 = vrot.slane %v3215, 5
      %v3218 = vshll.u32 %v3000, 16
      %v3220 = vrot.slane %v3218, 6
      %v3221 = vor.u32 %v3217, %v3220
      %v3222 = vsel %vm3024, %v3213, %v3221
      %v3223 = vrot.slane %v3221, 4
      %v3225 = vshrl.u32 %v3001, 16
      %v3227 = vrot.slane %v3225, 5
      %v3228 = vshll.u32 %v3001, 16
      %v3230 = vrot.slane %v3228, 6
      %v3231 = vor.u32 %v3227, %v3230
      %v3232 = vsel %vm3024, %v3223, %v3231
      %v3233 = vrot.slane %v3231, 4
      %v3235 = vshrl.u32 %v3002, 16
      %v3237 = vrot.slane %v3235, 5
      %v3238 = vshll.u32 %v3002, 16
      %v3240 = vrot.slane %v3238, 6
      %v3241 = vor.u32 %v3237, %v3240
      %v3242 = vsel %vm3024, %v3233, %v3241
      %v3243 = vrot.slane %v3241, 4
      %v3245 = vshrl.u32 %v3003, 16
      %v3247 = vrot.slane %v3245, 5
      %v3248 = vshll.u32 %v3003, 16
      %v3250 = vrot.slane %v3248, 6
      %v3251 = vor.u32 %v3247, %v3250
      %v3252 = vsel %vm3024, %v3243, %v3251
      %v3253 = vrot.slane %v3251, 4
      %v3255 = vshrl.u32 %v3004, 16
      %v3257 = vrot.slane %v3255, 5
      %v3258 = vshll.u32 %v3004, 16
      %v3260 = vrot.slane %v3258, 6
      %v3261 = vor.u32 %v3257, %v3260
      %v3262 = vsel %vm3024, %v3253, %v3261
      %v3263 = vrot.slane %v3261, 4
      %v3265 = vshrl.u32 %v3005, 16
      %v3267 = vrot.slane %v3265, 5
      %v3268 = vshll.u32 %v3005, 16
      %v3270 = vrot.slane %v3268, 6
      %v3271 = vor.u32 %v3267, %v3270
      %v3272 = vsel %vm3024, %v3263, %v3271
      %v3273 = vrot.slane %v3271, 4
      %v3275 = vshrl.u32 %v3006, 16
      %v3277 = vrot.slane %v3275, 5
      %v3278 = vshll.u32 %v3006, 16
      %v3280 = vrot.slane %v3278, 6
      %v3281 = vor.u32 %v3277, %v3280
      %v3282 = vsel %vm3024, %v3273, %v3281
      %v3283 = vrot.slane %v3281, 4
      %v3285 = vshrl.u32 %v3007, 16
      %v3287 = vrot.slane %v3285, 5
      %v3288 = vshll.u32 %v3007, 16
      %v3290 = vrot.slane %v3288, 6
      %v3291 = vor.u32 %v3287, %v3290
      %v3292 = vsel %vm3024, %v3283, %v3291
      %v3293 = vrot.slane %v3291, 4
      %v3295 = vshrl.u32 %v3008, 16
      %v3297 = vrot.slane %v3295, 5
      %v3298 = vshll.u32 %v3008, 16
      %v3300 = vrot.slane %v3298, 6
      %v3301 = vor.u32 %v3297, %v3300
      %v3302 = vsel %vm3024, %v3293, %v3301
      %v3303 = vrot.slane %v3301, 4
      %v3305 = vshrl.u32 %v3009, 16
      %v3307 = vrot.slane %v3305, 5
      %v3308 = vshll.u32 %v3009, 16
      %v3310 = vrot.slane %v3308, 6
      %v3311 = vor.u32 %v3307, %v3310
      %v3312 = vsel %vm3024, %v3303, %v3311
      %v3313 = vrot.slane %v3311, 4
      %v3315 = vshrl.u32 %v3010, 16
      %v3317 = vrot.slane %v3315, 5
      %v3318 = vshll.u32 %v3010, 16
      %v3320 = vrot.slane %v3318, 6
      %v3321 = vor.u32 %v3317, %v3320
      %v3322 = vsel %vm3024, %v3313, %v3321
      %v3323 = vrot.slane %v3321, 4
      %v3325 = vshrl.u32 %v3011, 16
      %v3327 = vrot.slane %v3325, 5
      %v3328 = vshll.u32 %v3011, 16
      %v3330 = vrot.slane %v3328, 6
      %v3331 = vor.u32 %v3327, %v3330
      %v3332 = vsel %vm3024, %v3323, %v3331
      %v3333 = vrot.slane %v3331, 4
      %v3335 = vshrl.u32 %v3012, 16
      %v3337 = vrot.slane %v3335, 5
      %v3338 = vshll.u32 %v3012, 16
      %v3340 = vrot.slane %v3338, 6
      %v3341 = vor.u32 %v3337, %v3340
      %v3342 = vsel %vm3024, %v3333, %v3341
      %v3343 = vrot.slane %v3341, 4
      %v3345 = vshrl.u32 %v3013, 16
      %v3347 = vrot.slane %v3345, 5
      %v3348 = vshll.u32 %v3013, 16
      %v3350 = vrot.slane %v3348, 6
      %v3351 = vor.u32 %v3347, %v3350
      %v3352 = vsel %vm3024, %v3343, %v3351
      %v3353 = vrot.slane %v3351, 4
      %v3355 = vshrl.u32 %v3014, 16
      %v3357 = vrot.slane %v3355, 5
      %v3358 = vshll.u32 %v3014, 16
      %v3360 = vrot.slane %v3358, 6
      %v3361 = vor.u32 %v3357, %v3360
      %v3362 = vsel %vm3024, %v3353, %v3361
      %v3363 = vrot.slane %v3361, 4
      %v3365 = vshrl.u32 %v3015, 16
      %v3367 = vrot.slane %v3365, 5
      %v3368 = vshll.u32 %v3015, 16
      %v3370 = vrot.slane %v3368, 6
      %v3371 = vor.u32 %v3367, %v3370
      %v3372 = vsel %vm3024, %v3363, %v3371
      %v3373 = vrot.slane %v3371, 4
      %v3375 = vshrl.u32 %v3016, 16
      %v3377 = vrot.slane %v3375, 5
      %v3378 = vshll.u32 %v3016, 16
      %v3380 = vrot.slane %v3378, 6
      %v3381 = vor.u32 %v3377, %v3380
      %v3382 = vsel %vm3024, %v3373, %v3381
      %v3383 = vrot.slane %v3381, 4
      %v3385 = vshrl.u32 %v3017, 16
      %v3387 = vrot.slane %v3385, 5
      %v3388 = vshll.u32 %v3017, 16
      %v3390 = vrot.slane %v3388, 6
      %v3391 = vor.u32 %v3387, %v3390
      %v3392 = vsel %vm3024, %v3383, %v3391
      %v3393 = vrot.slane %v3391, 4
      %v3395 = vshrl.u32 %v3018, 16
      %v3397 = vrot.slane %v3395, 5
      %v3398 = vshll.u32 %v3018, 16
      %v3400 = vrot.slane %v3398, 6
      %v3401 = vor.u32 %v3397, %v3400
      %v3402 = vsel %vm3024, %v3393, %v3401
      %v3403 = vrot.slane %v3401, 4
      %v3405 = vshrl.u32 %v3019, 16
      %v3407 = vrot.slane %v3405, 5
      %v3408 = vshll.u32 %v3019, 16
      %v3410 = vrot.slane %v3408, 6
      %v3411 = vor.u32 %v3407, %v3410
      %v3412 = vsel %vm3024, %v3403, %v3411
      %v3413 = vrot.slane %v3411, 4
      %v3415 = vshrl.u32 %v3020, 16
      %v3417 = vrot.slane %v3415, 5
      %v3418 = vshll.u32 %v3020, 16
      %v3420 = vrot.slane %v3418, 6
      %v3421 = vor.u32 %v3417, %v3420
      %v3422 = vsel %vm3024, %v3413, %v3421
      %v3423 = vrot.slane %v3421, 4
      %v3425 = vshrl.u32 %v3021, 16
      %v3427 = vrot.slane %v3425, 5
      %v3428 = vshll.u32 %v3021, 16
      %v3430 = vrot.slane %v3428, 6
      %v3431 = vor.u32 %v3427, %v3430
      %v3432 = vsel %vm3024, %v3423, %v3431
      %v3433 = vrot.slane %v3431, 4
      %3434 = vrot.lane.b32.xlu0 %v3042, 32
      %v3435 = vpop.permute.xlu0 %3434
      %3436 = vrot.lane.b32.xlu0 %v3052, 32
      %v3437 = vpop.permute.xlu0 %3436
      %3438 = vrot.lane.b32.xlu0 %v3062, 32
      %v3439 = vpop.permute.xlu0 %3438
      %3440 = vrot.lane.b32.xlu0 %v3072, 32
      %v3441 = vpop.permute.xlu0 %3440
      %3442 = vrot.lane.b32.xlu0 %v3082, 32
      %v3443 = vpop.permute.xlu0 %3442
      %3444 = vrot.lane.b32.xlu0 %v3092, 32
      %v3445 = vpop.permute.xlu0 %3444
      %3446 = vrot.lane.b32.xlu0 %v3102, 32
      %v3447 = vpop.permute.xlu0 %3446
      %3448 = vrot.lane.b32.xlu0 %v3112, 32
      %v3449 = vpop.permute.xlu0 %3448
      %3450 = vrot.lane.b32.xlu0 %v3122, 32
      %v3451 = vpop.permute.xlu0 %3450
      %3452 = vrot.lane.b32.xlu0 %v3132, 32
      %v3453 = vpop.permute.xlu0 %3452
      %3454 = vrot.lane.b32.xlu0 %v3142, 32
      %v3455 = vpop.permute.xlu0 %3454
      %3456 = vrot.lane.b32.xlu0 %v3152, 32
      %v3457 = vpop.permute.xlu0 %3456
      %3458 = vrot.lane.b32.xlu0 %v3162, 32
      %v3459 = vpop.permute.xlu0 %3458
      %3460 = vrot.lane.b32.xlu0 %v3172, 32
      %v3461 = vpop.permute.xlu0 %3460
      %3462 = vrot.lane.b32.xlu0 %v3182, 32
      %v3463 = vpop.permute.xlu0 %3462
      %3464 = vrot.lane.b32.xlu0 %v3192, 32
      %v3465 = vpop.permute.xlu0 %3464
      %3466 = vrot.lane.b32.xlu0 %v3202, 32
      %v3467 = vpop.permute.xlu0 %3466
      %3468 = vrot.lane.b32.xlu0 %v3212, 32
      %v3469 = vpop.permute.xlu0 %3468
      %3470 = vrot.lane.b32.xlu0 %v3222, 32
      %v3471 = vpop.permute.xlu0 %3470
      %3472 = vrot.lane.b32.xlu0 %v3232, 32
      %v3473 = vpop.permute.xlu0 %3472
      %3474 = vrot.lane.b32.xlu0 %v3242, 32
      %v3475 = vpop.permute.xlu0 %3474
      %3476 = vrot.lane.b32.xlu0 %v3252, 32
      %v3477 = vpop.permute.xlu0 %3476
      %3478 = vrot.lane.b32.xlu0 %v3262, 32
      %v3479 = vpop.permute.xlu0 %3478
      %3480 = vrot.lane.b32.xlu0 %v3272, 32
      %v3481 = vpop.permute.xlu0 %3480
      %3482 = vrot.lane.b32.xlu0 %v3282, 32
      %v3483 = vpop.permute.xlu0 %3482
      %3484 = vrot.lane.b32.xlu0 %v3292, 32
      %v3485 = vpop.permute.xlu0 %3484
      %3486 = vrot.lane.b32.xlu0 %v3302, 32
      %v3487 = vpop.permute.xlu0 %3486
      %3488 = vrot.lane.b32.xlu0 %v3312, 32
      %v3489 = vpop.permute.xlu0 %3488
      %3490 = vrot.lane.b32.xlu0 %v3322, 32
      %v3491 = vpop.permute.xlu0 %3490
      %3492 = vrot.lane.b32.xlu0 %v3332, 32
      %v3493 = vpop.permute.xlu0 %3492
      %3494 = vrot.lane.b32.xlu0 %v3342, 32
      %v3495 = vpop.permute.xlu0 %3494
      %3496 = vrot.lane.b32.xlu0 %v3352, 32
      %v3497 = vpop.permute.xlu0 %3496
      %3498 = vrot.lane.b32.xlu0 %v3362, 32
      %v3499 = vpop.permute.xlu0 %3498
      %3500 = vrot.lane.b32.xlu0 %v3372, 32
      %v3501 = vpop.permute.xlu0 %3500
      %3502 = vrot.lane.b32.xlu0 %v3382, 32
      %v3503 = vpop.permute.xlu0 %3502
      %3504 = vrot.lane.b32.xlu0 %v3392, 32
      %v3505 = vpop.permute.xlu0 %3504
      %3506 = vrot.lane.b32.xlu0 %v3402, 32
      %v3507 = vpop.permute.xlu0 %3506
      %3508 = vrot.lane.b32.xlu0 %v3412, 32
      %v3509 = vpop.permute.xlu0 %3508
      %3510 = vrot.lane.b32.xlu0 %v3422, 32
      %v3511 = vpop.permute.xlu0 %3510
      %3512 = vrot.lane.b32.xlu0 %v3432, 32
      %v3513 = vpop.permute.xlu0 %3512
      %3514 = vrot.lane.b32.xlu0 %v3433, 32
      %v3515 = vpop.permute.xlu0 %3514
      %vm3557 = vcmask 322816
      %3558 = vst.msk [vmem:[#allocation3] sm:$0xf] %vm3557, %v3435
      %3559 = vst.msk [vmem:[#allocation3 + $0x4] sm:$0xf] %vm3557, %v3437
      %3560 = vst.msk [vmem:[#allocation3 + $0x8] sm:$0xf] %vm3557, %v3439
      %3561 = vst.msk [vmem:[#allocation3 + $0xc] sm:$0xf] %vm3557, %v3441
      %3562 = vst.msk [vmem:[#allocation3 + $0x10] sm:$0xf] %vm3557, %v3443
      %3563 = vst.msk [vmem:[#allocation3 + $0x14] sm:$0xf] %vm3557, %v3445
      %3564 = vst.msk [vmem:[#allocation3 + $0x18] sm:$0xf] %vm3557, %v3447
      %3565 = vst.msk [vmem:[#allocation3 + $0x1c] sm:$0xf] %vm3557, %v3449
      %3566 = vst.msk [vmem:[#allocation3 + $0x20] sm:$0xf] %vm3557, %v3451
      %3567 = vst.msk [vmem:[#allocation3 + $0x24] sm:$0xf] %vm3557, %v3453
      %3568 = vst.msk [vmem:[#allocation3 + $0x28] sm:$0xf] %vm3557, %v3455
      %3569 = vst.msk [vmem:[#allocation3 + $0x2c] sm:$0xf] %vm3557, %v3457
      %3570 = vst.msk [vmem:[#allocation3 + $0x30] sm:$0xf] %vm3557, %v3459
      %3571 = vst.msk [vmem:[#allocation3 + $0x34] sm:$0xf] %vm3557, %v3461
      %3572 = vst.msk [vmem:[#allocation3 + $0x38] sm:$0xf] %vm3557, %v3463
      %3573 = vst.msk [vmem:[#allocation3 + $0x3c] sm:$0xf] %vm3557, %v3465
      %3574 = vst.msk [vmem:[#allocation3 + $0x40] sm:$0xf] %vm3557, %v3467
      %3575 = vst.msk [vmem:[#allocation3 + $0x44] sm:$0xf] %vm3557, %v3469
      %3576 = vst.msk [vmem:[#allocation3 + $0x48] sm:$0xf] %vm3557, %v3471
      %3577 = vst.msk [vmem:[#allocation3 + $0x4c] sm:$0xf] %vm3557, %v3473
      %3578 = vst.msk [vmem:[#allocation3 + $0x50] sm:$0xf] %vm3557, %v3475
      %3579 = vst.msk [vmem:[#allocation3 + $0x54] sm:$0xf] %vm3557, %v3477
      %3580 = vst.msk [vmem:[#allocation3 + $0x58] sm:$0xf] %vm3557, %v3479
      %3581 = vst.msk [vmem:[#allocation3 + $0x5c] sm:$0xf] %vm3557, %v3481
      %3582 = vst.msk [vmem:[#allocation3 + $0x60] sm:$0xf] %vm3557, %v3483
      %3583 = vst.msk [vmem:[#allocation3 + $0x64] sm:$0xf] %vm3557, %v3485
      %3584 = vst.msk [vmem:[#allocation3 + $0x68] sm:$0xf] %vm3557, %v3487
      %3585 = vst.msk [vmem:[#allocation3 + $0x6c] sm:$0xf] %vm3557, %v3489
      %3586 = vst.msk [vmem:[#allocation3 + $0x70] sm:$0xf] %vm3557, %v3491
      %3587 = vst.msk [vmem:[#allocation3 + $0x74] sm:$0xf] %vm3557, %v3493
      %3588 = vst.msk [vmem:[#allocation3 + $0x78] sm:$0xf] %vm3557, %v3495
      %3589 = vst.msk [vmem:[#allocation3 + $0x7c] sm:$0xf] %vm3557, %v3497
      %3590 = vst.msk [vmem:[#allocation3 + $0x80] sm:$0xf] %vm3557, %v3499
      %3591 = vst.msk [vmem:[#allocation3 + $0x84] sm:$0xf] %vm3557, %v3501
      %3592 = vst.msk [vmem:[#allocation3 + $0x88] sm:$0xf] %vm3557, %v3503
      %3593 = vst.msk [vmem:[#allocation3 + $0x8c] sm:$0xf] %vm3557, %v3505
      %3594 = vst.msk [vmem:[#allocation3 + $0x90] sm:$0xf] %vm3557, %v3507
      %3595 = vst.msk [vmem:[#allocation3 + $0x94] sm:$0xf] %vm3557, %v3509
      %3596 = vst.msk [vmem:[#allocation3 + $0x98] sm:$0xf] %vm3557, %v3511
      %3597 = vst.msk [vmem:[#allocation3 + $0x9c] sm:$0xf] %vm3557, %v3513
      %vm3598 = vcmask 320768
      %3599 = vst.msk [vmem:[#allocation3 + $0xa0] sm:$0x3] %vm3598, %v3515
      %v3600 = vld [vmem:[#allocation2 + $0x8] sm:$0xc]
      %v3601 = vld [vmem:[#allocation2 + $0xc] sm:$0xf]
      %v3602 = vld [vmem:[#allocation2 + $0x10] sm:$0xf]
      %v3603 = vld [vmem:[#allocation2 + $0x14] sm:$0xf]
      %v3604 = vld [vmem:[#allocation2 + $0x18] sm:$0xf]
      %v3605 = vld [vmem:[#allocation2 + $0x1c] sm:$0xf]
      %v3606 = vld [vmem:[#allocation2 + $0x20] sm:$0xf]
      %v3607 = vld [vmem:[#allocation2 + $0x24] sm:$0xf]
      %v3608 = vld [vmem:[#allocation2 + $0x28] sm:$0xf]
      %v3609 = vld [vmem:[#allocation2 + $0x2c] sm:$0xf]
      %v3610 = vld [vmem:[#allocation2 + $0x30] sm:$0xf]
      %v3611 = vld [vmem:[#allocation2 + $0x34] sm:$0xf]
      %v3612 = vld [vmem:[#allocation2 + $0x38] sm:$0xf]
      %v3613 = vld [vmem:[#allocation2 + $0x3c] sm:$0xf]
      %v3614 = vld [vmem:[#allocation2 + $0x40] sm:$0xf]
      %v3615 = vld [vmem:[#allocation2 + $0x44] sm:$0xf]
      %v3616 = vld [vmem:[#allocation2 + $0x48] sm:$0xf]
      %v3617 = vld [vmem:[#allocation2 + $0x4c] sm:$0xf]
      %v3618 = vld [vmem:[#allocation2 + $0x50] sm:$0xf]
      %v3619 = vld [vmem:[#allocation2 + $0x54] sm:$0xf]
      %v3620 = vld [vmem:[#allocation2 + $0x58] sm:$0xf]
      %v3621 = vld [vmem:[#allocation2 + $0x5c] sm:$0xf]
      %v3622 = vld [vmem:[#allocation2 + $0x60] sm:$0xf]
      %v3623 = vld [vmem:[#allocation2 + $0x64] sm:$0xf]
      %v3624 = vld [vmem:[#allocation2 + $0x68] sm:$0xf]
      %v3625 = vld [vmem:[#allocation2 + $0x6c] sm:$0xf]
      %v3626 = vld [vmem:[#allocation2 + $0x70] sm:$0xf]
      %v3627 = vld [vmem:[#allocation2 + $0x74] sm:$0xf]
      %v3628 = vld [vmem:[#allocation2 + $0x78] sm:$0xf]
      %v3629 = vld [vmem:[#allocation2 + $0x7c] sm:$0xf]
      %v3630 = vld [vmem:[#allocation2 + $0x80] sm:$0xf]
      %v3631 = vld [vmem:[#allocation2 + $0x84] sm:$0xf]
      %v3632 = vld [vmem:[#allocation2 + $0x88] sm:$0xf]
      %v3633 = vld [vmem:[#allocation2 + $0x8c] sm:$0xf]
      %v3634 = vld [vmem:[#allocation2 + $0x90] sm:$0xf]
      %v3635 = vld [vmem:[#allocation2 + $0x94] sm:$0xf]
      %v3636 = vld [vmem:[#allocation2 + $0x98] sm:$0xf]
      %v3637 = vld [vmem:[#allocation2 + $0x9c] sm:$0xf]
      %v3638 = vld [vmem:[#allocation2 + $0xa0] sm:$0xf]
      %v3639 = vld [vmem:[#allocation2 + $0xa4] sm:$0xf]
      %v3640 = vld [vmem:[#allocation2 + $0xa8] sm:$0xf]
      %vm3682 = vcmask 1041408
      %vm3683 = vcmask 1045508
      %vm3684 = vmor %vm3682, %vm3683
      %v3685 = vrot.slane %v3600, 6
      %v3686 = vrot.slane %v3685, 4
      %v3687 = vrot.slane %v3601, 6
      %v3688 = vsel %vm3684, %v3686, %v3687
      %v3689 = vrot.slane %v3687, 4
      %v3690 = vrot.slane %v3602, 6
      %v3691 = vsel %vm3684, %v3689, %v3690
      %v3692 = vrot.slane %v3690, 4
      %v3693 = vrot.slane %v3603, 6
      %v3694 = vsel %vm3684, %v3692, %v3693
      %v3695 = vrot.slane %v3693, 4
      %v3696 = vrot.slane %v3604, 6
      %v3697 = vsel %vm3684, %v3695, %v3696
      %v3698 = vrot.slane %v3696, 4
      %v3699 = vrot.slane %v3605, 6
      %v3700 = vsel %vm3684, %v3698, %v3699
      %v3701 = vrot.slane %v3699, 4
      %v3702 = vrot.slane %v3606, 6
      %v3703 = vsel %vm3684, %v3701, %v3702
      %v3704 = vrot.slane %v3702, 4
      %v3705 = vrot.slane %v3607, 6
      %v3706 = vsel %vm3684, %v3704, %v3705
      %v3707 = vrot.slane %v3705, 4
      %v3708 = vrot.slane %v3608, 6
      %v3709 = vsel %vm3684, %v3707, %v3708
      %v3710 = vrot.slane %v3708, 4
      %v3711 = vrot.slane %v3609, 6
      %v3712 = vsel %vm3684, %v3710, %v3711
      %v3713 = vrot.slane %v3711, 4
      %v3714 = vrot.slane %v3610, 6
      %v3715 = vsel %vm3684, %v3713, %v3714
      %v3716 = vrot.slane %v3714, 4
      %v3717 = vrot.slane %v3611, 6
      %v3718 = vsel %vm3684, %v3716, %v3717
      %v3719 = vrot.slane %v3717, 4
      %v3720 = vrot.slane %v3612, 6
      %v3721 = vsel %vm3684, %v3719, %v3720
      %v3722 = vrot.slane %v3720, 4
      %v3723 = vrot.slane %v3613, 6
      %v3724 = vsel %vm3684, %v3722, %v3723
      %v3725 = vrot.slane %v3723, 4
      %v3726 = vrot.slane %v3614, 6
      %v3727 = vsel %vm3684, %v3725, %v3726
      %v3728 = vrot.slane %v3726, 4
      %v3729 = vrot.slane %v3615, 6
      %v3730 = vsel %vm3684, %v3728, %v3729
      %v3731 = vrot.slane %v3729, 4
      %v3732 = vrot.slane %v3616, 6
      %v3733 = vsel %vm3684, %v3731, %v3732
      %v3734 = vrot.slane %v3732, 4
      %v3735 = vrot.slane %v3617, 6
      %v3736 = vsel %vm3684, %v3734, %v3735
      %v3737 = vrot.slane %v3735, 4
      %v3738 = vrot.slane %v3618, 6
      %v3739 = vsel %vm3684, %v3737, %v3738
      %v3740 = vrot.slane %v3738, 4
      %v3741 = vrot.slane %v3619, 6
      %v3742 = vsel %vm3684, %v3740, %v3741
      %v3743 = vrot.slane %v3741, 4
      %v3744 = vrot.slane %v3620, 6
      %v3745 = vsel %vm3684, %v3743, %v3744
      %v3746 = vrot.slane %v3744, 4
      %v3747 = vrot.slane %v3621, 6
      %v3748 = vsel %vm3684, %v3746, %v3747
      %v3749 = vrot.slane %v3747, 4
      %v3750 = vrot.slane %v3622, 6
      %v3751 = vsel %vm3684, %v3749, %v3750
      %v3752 = vrot.slane %v3750, 4
      %v3753 = vrot.slane %v3623, 6
      %v3754 = vsel %vm3684, %v3752, %v3753
      %v3755 = vrot.slane %v3753, 4
      %v3756 = vrot.slane %v3624, 6
      %v3757 = vsel %vm3684, %v3755, %v3756
      %v3758 = vrot.slane %v3756, 4
      %v3759 = vrot.slane %v3625, 6
      %v3760 = vsel %vm3684, %v3758, %v3759
      %v3761 = vrot.slane %v3759, 4
      %v3762 = vrot.slane %v3626, 6
      %v3763 = vsel %vm3684, %v3761, %v3762
      %v3764 = vrot.slane %v3762, 4
      %v3765 = vrot.slane %v3627, 6
      %v3766 = vsel %vm3684, %v3764, %v3765
      %v3767 = vrot.slane %v3765, 4
      %v3768 = vrot.slane %v3628, 6
      %v3769 = vsel %vm3684, %v3767, %v3768
      %v3770 = vrot.slane %v3768, 4
      %v3771 = vrot.slane %v3629, 6
      %v3772 = vsel %vm3684, %v3770, %v3771
      %v3773 = vrot.slane %v3771, 4
      %v3774 = vrot.slane %v3630, 6
      %v3775 = vsel %vm3684, %v3773, %v3774
      %v3776 = vrot.slane %v3774, 4
      %v3777 = vrot.slane %v3631, 6
      %v3778 = vsel %vm3684, %v3776, %v3777
      %v3779 = vrot.slane %v3777, 4
      %v3780 = vrot.slane %v3632, 6
      %v3781 = vsel %vm3684, %v3779, %v3780
      %v3782 = vrot.slane %v3780, 4
      %v3783 = vrot.slane %v3633, 6
      %v3784 = vsel %vm3684, %v3782, %v3783
      %v3785 = vrot.slane %v3783, 4
      %v3786 = vrot.slane %v3634, 6
      %v3787 = vsel %vm3684, %v3785, %v3786
      %v3788 = vrot.slane %v3786, 4
      %v3789 = vrot.slane %v3635, 6
      %v3790 = vsel %vm3684, %v3788, %v3789
      %v3791 = vrot.slane %v3789, 4
      %v3792 = vrot.slane %v3636, 6
      %v3793 = vsel %vm3684, %v3791, %v3792
      %v3794 = vrot.slane %v3792, 4
      %v3795 = vrot.slane %v3637, 6
      %v3796 = vsel %vm3684, %v3794, %v3795
      %v3797 = vrot.slane %v3795, 4
      %v3798 = vrot.slane %v3638, 6
      %v3799 = vsel %vm3684, %v3797, %v3798
      %v3800 = vrot.slane %v3798, 4
      %v3801 = vrot.slane %v3639, 6
      %v3802 = vsel %vm3684, %v3800, %v3801
      %v3803 = vrot.slane %v3801, 4
      %v3804 = vrot.slane %v3640, 6
      %v3805 = vsel %vm3684, %v3803, %v3804
      %v3806 = vrot.slane %v3804, 4
      %3807 = vrot.lane.b32.xlu0 %v3688, 40
      %v3808 = vpop.permute.xlu0 %3807
      %3809 = vrot.lane.b32.xlu0 %v3691, 40
      %v3810 = vpop.permute.xlu0 %3809
      %3811 = vrot.lane.b32.xlu0 %v3694, 40
      %v3812 = vpop.permute.xlu0 %3811
      %3813 = vrot.lane.b32.xlu0 %v3697, 40
      %v3814 = vpop.permute.xlu0 %3813
      %3815 = vrot.lane.b32.xlu0 %v3700, 40
      %v3816 = vpop.permute.xlu0 %3815
      %3817 = vrot.lane.b32.xlu0 %v3703, 40
      %v3818 = vpop.permute.xlu0 %3817
      %3819 = vrot.lane.b32.xlu0 %v3706, 40
      %v3820 = vpop.permute.xlu0 %3819
      %3821 = vrot.lane.b32.xlu0 %v3709, 40
      %v3822 = vpop.permute.xlu0 %3821
      %3823 = vrot.lane.b32.xlu0 %v3712, 40
      %v3824 = vpop.permute.xlu0 %3823
      %3825 = vrot.lane.b32.xlu0 %v3715, 40
      %v3826 = vpop.permute.xlu0 %3825
      %3827 = vrot.lane.b32.xlu0 %v3718, 40
      %v3828 = vpop.permute.xlu0 %3827
      %3829 = vrot.lane.b32.xlu0 %v3721, 40
      %v3830 = vpop.permute.xlu0 %3829
      %3831 = vrot.lane.b32.xlu0 %v3724, 40
      %v3832 = vpop.permute.xlu0 %3831
      %3833 = vrot.lane.b32.xlu0 %v3727, 40
      %v3834 = vpop.permute.xlu0 %3833
      %3835 = vrot.lane.b32.xlu0 %v3730, 40
      %v3836 = vpop.permute.xlu0 %3835
      %3837 = vrot.lane.b32.xlu0 %v3733, 40
      %v3838 = vpop.permute.xlu0 %3837
      %3839 = vrot.lane.b32.xlu0 %v3736, 40
      %v3840 = vpop.permute.xlu0 %3839
      %3841 = vrot.lane.b32.xlu0 %v3739, 40
      %v3842 = vpop.permute.xlu0 %3841
      %3843 = vrot.lane.b32.xlu0 %v3742, 40
      %v3844 = vpop.permute.xlu0 %3843
      %3845 = vrot.lane.b32.xlu0 %v3745, 40
      %v3846 = vpop.permute.xlu0 %3845
      %3847 = vrot.lane.b32.xlu0 %v3748, 40
      %v3848 = vpop.permute.xlu0 %3847
      %3849 = vrot.lane.b32.xlu0 %v3751, 40
      %v3850 = vpop.permute.xlu0 %3849
      %3851 = vrot.lane.b32.xlu0 %v3754, 40
      %v3852 = vpop.permute.xlu0 %3851
      %3853 = vrot.lane.b32.xlu0 %v3757, 40
      %v3854 = vpop.permute.xlu0 %3853
      %3855 = vrot.lane.b32.xlu0 %v3760, 40
      %v3856 = vpop.permute.xlu0 %3855
      %3857 = vrot.lane.b32.xlu0 %v3763, 40
      %v3858 = vpop.permute.xlu0 %3857
      %3859 = vrot.lane.b32.xlu0 %v3766, 40
      %v3860 = vpop.permute.xlu0 %3859
      %3861 = vrot.lane.b32.xlu0 %v3769, 40
      %v3862 = vpop.permute.xlu0 %3861
      %3863 = vrot.lane.b32.xlu0 %v3772, 40
      %v3864 = vpop.permute.xlu0 %3863
      %3865 = vrot.lane.b32.xlu0 %v3775, 40
      %v3866 = vpop.permute.xlu0 %3865
      %3867 = vrot.lane.b32.xlu0 %v3778, 40
      %v3868 = vpop.permute.xlu0 %3867
      %3869 = vrot.lane.b32.xlu0 %v3781, 40
      %v3870 = vpop.permute.xlu0 %3869
      %3871 = vrot.lane.b32.xlu0 %v3784, 40
      %v3872 = vpop.permute.xlu0 %3871
      %3873 = vrot.lane.b32.xlu0 %v3787, 40
      %v3874 = vpop.permute.xlu0 %3873
      %3875 = vrot.lane.b32.xlu0 %v3790, 40
      %v3876 = vpop.permute.xlu0 %3875
      %3877 = vrot.lane.b32.xlu0 %v3793, 40
      %v3878 = vpop.permute.xlu0 %3877
      %3879 = vrot.lane.b32.xlu0 %v3796, 40
      %v3880 = vpop.permute.xlu0 %3879
      %3881 = vrot.lane.b32.xlu0 %v3799, 40
      %v3882 = vpop.permute.xlu0 %3881
      %3883 = vrot.lane.b32.xlu0 %v3802, 40
      %v3884 = vpop.permute.xlu0 %3883
      %3885 = vrot.lane.b32.xlu0 %v3805, 40
      %v3886 = vpop.permute.xlu0 %3885
      %3887 = vrot.lane.b32.xlu0 %v3806, 40
      %v3888 = vpop.permute.xlu0 %3887
      %vm3930 = vcmask 388416
      %3931 = vst.msk [vmem:[#allocation3] sm:$0xf] %vm3930, %v3808
      %3932 = vst.msk [vmem:[#allocation3 + $0x4] sm:$0xf] %vm3930, %v3810
      %3933 = vst.msk [vmem:[#allocation3 + $0x8] sm:$0xf] %vm3930, %v3812
      %3934 = vst.msk [vmem:[#allocation3 + $0xc] sm:$0xf] %vm3930, %v3814
      %3935 = vst.msk [vmem:[#allocation3 + $0x10] sm:$0xf] %vm3930, %v3816
      %3936 = vst.msk [vmem:[#allocation3 + $0x14] sm:$0xf] %vm3930, %v3818
      %3937 = vst.msk [vmem:[#allocation3 + $0x18] sm:$0xf] %vm3930, %v3820
      %3938 = vst.msk [vmem:[#allocation3 + $0x1c] sm:$0xf] %vm3930, %v3822
      %3939 = vst.msk [vmem:[#allocation3 + $0x20] sm:$0xf] %vm3930, %v3824
      %3940 = vst.msk [vmem:[#allocation3 + $0x24] sm:$0xf] %vm3930, %v3826
      %3941 = vst.msk [vmem:[#allocation3 + $0x28] sm:$0xf] %vm3930, %v3828
      %3942 = vst.msk [vmem:[#allocation3 + $0x2c] sm:$0xf] %vm3930, %v3830
      %3943 = vst.msk [vmem:[#allocation3 + $0x30] sm:$0xf] %vm3930, %v3832
      %3944 = vst.msk [vmem:[#allocation3 + $0x34] sm:$0xf] %vm3930, %v3834
      %3945 = vst.msk [vmem:[#allocation3 + $0x38] sm:$0xf] %vm3930, %v3836
      %3946 = vst.msk [vmem:[#allocation3 + $0x3c] sm:$0xf] %vm3930, %v3838
      %3947 = vst.msk [vmem:[#allocation3 + $0x40] sm:$0xf] %vm3930, %v3840
      %3948 = vst.msk [vmem:[#allocation3 + $0x44] sm:$0xf] %vm3930, %v3842
      %3949 = vst.msk [vmem:[#allocation3 + $0x48] sm:$0xf] %vm3930, %v3844
      %3950 = vst.msk [vmem:[#allocation3 + $0x4c] sm:$0xf] %vm3930, %v3846
      %3951 = vst.msk [vmem:[#allocation3 + $0x50] sm:$0xf] %vm3930, %v3848
      %3952 = vst.msk [vmem:[#allocation3 + $0x54] sm:$0xf] %vm3930, %v3850
      %3953 = vst.msk [vmem:[#allocation3 + $0x58] sm:$0xf] %vm3930, %v3852
      %3954 = vst.msk [vmem:[#allocation3 + $0x5c] sm:$0xf] %vm3930, %v3854
      %3955 = vst.msk [vmem:[#allocation3 + $0x60] sm:$0xf] %vm3930, %v3856
      %3956 = vst.msk [vmem:[#allocation3 + $0x64] sm:$0xf] %vm3930, %v3858
      %3957 = vst.msk [vmem:[#allocation3 + $0x68] sm:$0xf] %vm3930, %v3860
      %3958 = vst.msk [vmem:[#allocation3 + $0x6c] sm:$0xf] %vm3930, %v3862
      %3959 = vst.msk [vmem:[#allocation3 + $0x70] sm:$0xf] %vm3930, %v3864
      %3960 = vst.msk [vmem:[#allocation3 + $0x74] sm:$0xf] %vm3930, %v3866
      %3961 = vst.msk [vmem:[#allocation3 + $0x78] sm:$0xf] %vm3930, %v3868
      %3962 = vst.msk [vmem:[#allocation3 + $0x7c] sm:$0xf] %vm3930, %v3870
      %3963 = vst.msk [vmem:[#allocation3 + $0x80] sm:$0xf] %vm3930, %v3872
      %3964 = vst.msk [vmem:[#allocation3 + $0x84] sm:$0xf] %vm3930, %v3874
      %3965 = vst.msk [vmem:[#allocation3 + $0x88] sm:$0xf] %vm3930, %v3876
      %3966 = vst.msk [vmem:[#allocation3 + $0x8c] sm:$0xf] %vm3930, %v3878
      %3967 = vst.msk [vmem:[#allocation3 + $0x90] sm:$0xf] %vm3930, %v3880
      %3968 = vst.msk [vmem:[#allocation3 + $0x94] sm:$0xf] %vm3930, %v3882
      %3969 = vst.msk [vmem:[#allocation3 + $0x98] sm:$0xf] %vm3930, %v3884
      %3970 = vst.msk [vmem:[#allocation3 + $0x9c] sm:$0xf] %vm3930, %v3886
      %vm3971 = vcmask 386368
      %3972 = vst.msk [vmem:[#allocation3 + $0xa0] sm:$0x3] %vm3971, %v3888
      %v3973 = vld [vmem:[#allocation2 + $0x10] sm:$0xc]
      %v3974 = vld [vmem:[#allocation2 + $0x14] sm:$0xf]
      %v3975 = vld [vmem:[#allocation2 + $0x18] sm:$0xf]
      %v3976 = vld [vmem:[#allocation2 + $0x1c] sm:$0xf]
      %v3977 = vld [vmem:[#allocation2 + $0x20] sm:$0xf]
      %v3978 = vld [vmem:[#allocation2 + $0x24] sm:$0xf]
      %v3979 = vld [vmem:[#allocation2 + $0x28] sm:$0xf]
      %v3980 = vld [vmem:[#allocation2 + $0x2c] sm:$0xf]
      %v3981 = vld [vmem:[#allocation2 + $0x30] sm:$0xf]
      %v3982 = vld [vmem:[#allocation2 + $0x34] sm:$0xf]
      %v3983 = vld [vmem:[#allocation2 + $0x38] sm:$0xf]
      %v3984 = vld [vmem:[#allocation2 + $0x3c] sm:$0xf]
      %v3985 = vld [vmem:[#allocation2 + $0x40] sm:$0xf]
      %v3986 = vld [vmem:[#allocation2 + $0x44] sm:$0xf]
      %v3987 = vld [vmem:[#allocation2 + $0x48] sm:$0xf]
      %v3988 = vld [vmem:[#allocation2 + $0x4c] sm:$0xf]
      %v3989 = vld [vmem:[#allocation2 + $0x50] sm:$0xf]
      %v3990 = vld [vmem:[#allocation2 + $0x54] sm:$0xf]
      %v3991 = vld [vmem:[#allocation2 + $0x58] sm:$0xf]
      %v3992 = vld [vmem:[#allocation2 + $0x5c] sm:$0xf]
      %v3993 = vld [vmem:[#allocation2 + $0x60] sm:$0xf]
      %v3994 = vld [vmem:[#allocation2 + $0x64] sm:$0xf]
      %v3995 = vld [vmem:[#allocation2 + $0x68] sm:$0xf]
      %v3996 = vld [vmem:[#allocation2 + $0x6c] sm:$0xf]
      %v3997 = vld [vmem:[#allocation2 + $0x70] sm:$0xf]
      %v3998 = vld [vmem:[#allocation2 + $0x74] sm:$0xf]
      %v3999 = vld [vmem:[#allocation2 + $0x78] sm:$0xf]
      %v4000 = vld [vmem:[#allocation2 + $0x7c] sm:$0xf]
      %v4001 = vld [vmem:[#allocation2 + $0x80] sm:$0xf]
      %v4002 = vld [vmem:[#allocation2 + $0x84] sm:$0xf]
      %v4003 = vld [vmem:[#allocation2 + $0x88] sm:$0xf]
      %v4004 = vld [vmem:[#allocation2 + $0x8c] sm:$0xf]
      %v4005 = vld [vmem:[#allocation2 + $0x90] sm:$0xf]
      %v4006 = vld [vmem:[#allocation2 + $0x94] sm:$0xf]
      %v4007 = vld [vmem:[#allocation2 + $0x98] sm:$0xf]
      %v4008 = vld [vmem:[#allocation2 + $0x9c] sm:$0xf]
      %v4009 = vld [vmem:[#allocation2 + $0xa0] sm:$0xf]
      %v4010 = vld [vmem:[#allocation2 + $0xa4] sm:$0xf]
      %v4011 = vld [vmem:[#allocation2 + $0xa8] sm:$0xf]
      %v4012 = vld [vmem:[#allocation2 + $0xac] sm:$0xf]
      %v4013 = vld [vmem:[#allocation2 + $0xb0] sm:$0xf]
      %v4055 = vrot.slane %v3973, 6
      %v4056 = vrot.slane %v4055, 4
      %v4057 = vrot.slane %v3974, 6
      %v4058 = vsel %vm3684, %v4056, %v4057
      %v4059 = vrot.slane %v4057, 4
      %v4060 = vrot.slane %v3975, 6
      %v4061 = vsel %vm3684, %v4059, %v4060
      %v4062 = vrot.slane %v4060, 4
      %v4063 = vrot.slane %v3976, 6
      %v4064 = vsel %vm3684, %v4062, %v4063
      %v4065 = vrot.slane %v4063, 4
      %v4066 = vrot.slane %v3977, 6
      %v4067 = vsel %vm3684, %v4065, %v4066
      %v4068 = vrot.slane %v4066, 4
      %v4069 = vrot.slane %v3978, 6
      %v4070 = vsel %vm3684, %v4068, %v4069
      %v4071 = vrot.slane %v4069, 4
      %v4072 = vrot.slane %v3979, 6
      %v4073 = vsel %vm3684, %v4071, %v4072
      %v4074 = vrot.slane %v4072, 4
      %v4075 = vrot.slane %v3980, 6
      %v4076 = vsel %vm3684, %v4074, %v4075
      %v4077 = vrot.slane %v4075, 4
      %v4078 = vrot.slane %v3981, 6
      %v4079 = vsel %vm3684, %v4077, %v4078
      %v4080 = vrot.slane %v4078, 4
      %v4081 = vrot.slane %v3982, 6
      %v4082 = vsel %vm3684, %v4080, %v4081
      %v4083 = vrot.slane %v4081, 4
      %v4084 = vrot.slane %v3983, 6
      %v4085 = vsel %vm3684, %v4083, %v4084
      %v4086 = vrot.slane %v4084, 4
      %v4087 = vrot.slane %v3984, 6
      %v4088 = vsel %vm3684, %v4086, %v4087
      %v4089 = vrot.slane %v4087, 4
      %v4090 = vrot.slane %v3985, 6
      %v4091 = vsel %vm3684, %v4089, %v4090
      %v4092 = vrot.slane %v4090, 4
      %v4093 = vrot.slane %v3986, 6
      %v4094 = vsel %vm3684, %v4092, %v4093
      %v4095 = vrot.slane %v4093, 4
      %v4096 = vrot.slane %v3987, 6
      %v4097 = vsel %vm3684, %v4095, %v4096
      %v4098 = vrot.slane %v4096, 4
      %v4099 = vrot.slane %v3988, 6
      %v4100 = vsel %vm3684, %v4098, %v4099
      %v4101 = vrot.slane %v4099, 4
      %v4102 = vrot.slane %v3989, 6
      %v4103 = vsel %vm3684, %v4101, %v4102
      %v4104 = vrot.slane %v4102, 4
      %v4105 = vrot.slane %v3990, 6
      %v4106 = vsel %vm3684, %v4104, %v4105
      %v4107 = vrot.slane %v4105, 4
      %v4108 = vrot.slane %v3991, 6
      %v4109 = vsel %vm3684, %v4107, %v4108
      %v4110 = vrot.slane %v4108, 4
      %v4111 = vrot.slane %v3992, 6
      %v4112 = vsel %vm3684, %v4110, %v4111
      %v4113 = vrot.slane %v4111, 4
      %v4114 = vrot.slane %v3993, 6
      %v4115 = vsel %vm3684, %v4113, %v4114
      %v4116 = vrot.slane %v4114, 4
      %v4117 = vrot.slane %v3994, 6
      %v4118 = vsel %vm3684, %v4116, %v4117
      %v4119 = vrot.slane %v4117, 4
      %v4120 = vrot.slane %v3995, 6
      %v4121 = vsel %vm3684, %v4119, %v4120
      %v4122 = vrot.slane %v4120, 4
      %v4123 = vrot.slane %v3996, 6
      %v4124 = vsel %vm3684, %v4122, %v4123
      %v4125 = vrot.slane %v4123, 4
      %v4126 = vrot.slane %v3997, 6
      %v4127 = vsel %vm3684, %v4125, %v4126
      %v4128 = vrot.slane %v4126, 4
      %v4129 = vrot.slane %v3998, 6
      %v4130 = vsel %vm3684, %v4128, %v4129
      %v4131 = vrot.slane %v4129, 4
      %v4132 = vrot.slane %v3999, 6
      %v4133 = vsel %vm3684, %v4131, %v4132
      %v4134 = vrot.slane %v4132, 4
      %v4135 = vrot.slane %v4000, 6
      %v4136 = vsel %vm3684, %v4134, %v4135
      %v4137 = vrot.slane %v4135, 4
      %v4138 = vrot.slane %v4001, 6
      %v4139 = vsel %vm3684, %v4137, %v4138
      %v4140 = vrot.slane %v4138, 4
      %v4141 = vrot.slane %v4002, 6
      %v4142 = vsel %vm3684, %v4140, %v4141
      %v4143 = vrot.slane %v4141, 4
      %v4144 = vrot.slane %v4003, 6
      %v4145 = vsel %vm3684, %v4143, %v4144
      %v4146 = vrot.slane %v4144, 4
      %v4147 = vrot.slane %v4004, 6
      %v4148 = vsel %vm3684, %v4146, %v4147
      %v4149 = vrot.slane %v4147, 4
      %v4150 = vrot.slane %v4005, 6
      %v4151 = vsel %vm3684, %v4149, %v4150
      %v4152 = vrot.slane %v4150, 4
      %v4153 = vrot.slane %v4006, 6
      %v4154 = vsel %vm3684, %v4152, %v4153
      %v4155 = vrot.slane %v4153, 4
      %v4156 = vrot.slane %v4007, 6
      %v4157 = vsel %vm3684, %v4155, %v4156
      %v4158 = vrot.slane %v4156, 4
      %v4159 = vrot.slane %v4008, 6
      %v4160 = vsel %vm3684, %v4158, %v4159
      %v4161 = vrot.slane %v4159, 4
      %v4162 = vrot.slane %v4009, 6
      %v4163 = vsel %vm3684, %v4161, %v4162
      %v4164 = vrot.slane %v4162, 4
      %v4165 = vrot.slane %v4010, 6
      %v4166 = vsel %vm3684, %v4164, %v4165
      %v4167 = vrot.slane %v4165, 4
      %v4168 = vrot.slane %v4011, 6
      %v4169 = vsel %vm3684, %v4167, %v4168
      %v4170 = vrot.slane %v4168, 4
      %v4171 = vrot.slane %v4012, 6
      %v4172 = vsel %vm3684, %v4170, %v4171
      %v4173 = vrot.slane %v4171, 4
      %v4174 = vrot.slane %v4013, 6
      %v4175 = vsel %vm3684, %v4173, %v4174
      %v4176 = vrot.slane %v4174, 4
      %4177 = vrot.lane.b32.xlu0 %v4058, 48
      %v4178 = vpop.permute.xlu0 %4177
      %4179 = vrot.lane.b32.xlu0 %v4061, 48
      %v4180 = vpop.permute.xlu0 %4179
      %4181 = vrot.lane.b32.xlu0 %v4064, 48
      %v4182 = vpop.permute.xlu0 %4181
      %4183 = vrot.lane.b32.xlu0 %v4067, 48
      %v4184 = vpop.permute.xlu0 %4183
      %4185 = vrot.lane.b32.xlu0 %v4070, 48
      %v4186 = vpop.permute.xlu0 %4185
      %4187 = vrot.lane.b32.xlu0 %v4073, 48
      %v4188 = vpop.permute.xlu0 %4187
      %4189 = vrot.lane.b32.xlu0 %v4076, 48
      %v4190 = vpop.permute.xlu0 %4189
      %4191 = vrot.lane.b32.xlu0 %v4079, 48
      %v4192 = vpop.permute.xlu0 %4191
      %4193 = vrot.lane.b32.xlu0 %v4082, 48
      %v4194 = vpop.permute.xlu0 %4193
      %4195 = vrot.lane.b32.xlu0 %v4085, 48
      %v4196 = vpop.permute.xlu0 %4195
      %4197 = vrot.lane.b32.xlu0 %v4088, 48
      %v4198 = vpop.permute.xlu0 %4197
      %4199 = vrot.lane.b32.xlu0 %v4091, 48
      %v4200 = vpop.permute.xlu0 %4199
      %4201 = vrot.lane.b32.xlu0 %v4094, 48
      %v4202 = vpop.permute.xlu0 %4201
      %4203 = vrot.lane.b32.xlu0 %v4097, 48
      %v4204 = vpop.permute.xlu0 %4203
      %4205 = vrot.lane.b32.xlu0 %v4100, 48
      %v4206 = vpop.permute.xlu0 %4205
      %4207 = vrot.lane.b32.xlu0 %v4103, 48
      %v4208 = vpop.permute.xlu0 %4207
      %4209 = vrot.lane.b32.xlu0 %v4106, 48
      %v4210 = vpop.permute.xlu0 %4209
      %4211 = vrot.lane.b32.xlu0 %v4109, 48
      %v4212 = vpop.permute.xlu0 %4211
      %4213 = vrot.lane.b32.xlu0 %v4112, 48
      %v4214 = vpop.permute.xlu0 %4213
      %4215 = vrot.lane.b32.xlu0 %v4115, 48
      %v4216 = vpop.permute.xlu0 %4215
      %4217 = vrot.lane.b32.xlu0 %v4118, 48
      %v4218 = vpop.permute.xlu0 %4217
      %4219 = vrot.lane.b32.xlu0 %v4121, 48
      %v4220 = vpop.permute.xlu0 %4219
      %4221 = vrot.lane.b32.xlu0 %v4124, 48
      %v4222 = vpop.permute.xlu0 %4221
      %4223 = vrot.lane.b32.xlu0 %v4127, 48
      %v4224 = vpop.permute.xlu0 %4223
      %4225 = vrot.lane.b32.xlu0 %v4130, 48
      %v4226 = vpop.permute.xlu0 %4225
      %4227 = vrot.lane.b32.xlu0 %v4133, 48
      %v4228 = vpop.permute.xlu0 %4227
      %4229 = vrot.lane.b32.xlu0 %v4136, 48
      %v4230 = vpop.permute.xlu0 %4229
      %4231 = vrot.lane.b32.xlu0 %v4139, 48
      %v4232 = vpop.permute.xlu0 %4231
      %4233 = vrot.lane.b32.xlu0 %v4142, 48
      %v4234 = vpop.permute.xlu0 %4233
      %4235 = vrot.lane.b32.xlu0 %v4145, 48
      %v4236 = vpop.permute.xlu0 %4235
      %4237 = vrot.lane.b32.xlu0 %v4148, 48
      %v4238 = vpop.permute.xlu0 %4237
      %4239 = vrot.lane.b32.xlu0 %v4151, 48
      %v4240 = vpop.permute.xlu0 %4239
      %4241 = vrot.lane.b32.xlu0 %v4154, 48
      %v4242 = vpop.permute.xlu0 %4241
      %4243 = vrot.lane.b32.xlu0 %v4157, 48
      %v4244 = vpop.permute.xlu0 %4243
      %4245 = vrot.lane.b32.xlu0 %v4160, 48
      %v4246 = vpop.permute.xlu0 %4245
      %4247 = vrot.lane.b32.xlu0 %v4163, 48
      %v4248 = vpop.permute.xlu0 %4247
      %4249 = vrot.lane.b32.xlu0 %v4166, 48
      %v4250 = vpop.permute.xlu0 %4249
      %4251 = vrot.lane.b32.xlu0 %v4169, 48
      %v4252 = vpop.permute.xlu0 %4251
      %4253 = vrot.lane.b32.xlu0 %v4172, 48
      %v4254 = vpop.permute.xlu0 %4253
      %4255 = vrot.lane.b32.xlu0 %v4175, 48
      %v4256 = vpop.permute.xlu0 %4255
      %4257 = vrot.lane.b32.xlu0 %v4176, 48
      %v4258 = vpop.permute.xlu0 %4257
      %vm4300 = vcmask 454016
      %4301 = vst.msk [vmem:[#allocation3] sm:$0xf] %vm4300, %v4178
      %4302 = vst.msk [vmem:[#allocation3 + $0x4] sm:$0xf] %vm4300, %v4180
      %4303 = vst.msk [vmem:[#allocation3 + $0x8] sm:$0xf] %vm4300, %v4182
      %4304 = vst.msk [vmem:[#allocation3 + $0xc] sm:$0xf] %vm4300, %v4184
      %4305 = vst.msk [vmem:[#allocation3 + $0x10] sm:$0xf] %vm4300, %v4186
      %4306 = vst.msk [vmem:[#allocation3 + $0x14] sm:$0xf] %vm4300, %v4188
      %4307 = vst.msk [vmem:[#allocation3 + $0x18] sm:$0xf] %vm4300, %v4190
      %4308 = vst.msk [vmem:[#allocation3 + $0x1c] sm:$0xf] %vm4300, %v4192
      %4309 = vst.msk [vmem:[#allocation3 + $0x20] sm:$0xf] %vm4300, %v4194
      %4310 = vst.msk [vmem:[#allocation3 + $0x24] sm:$0xf] %vm4300, %v4196
      %4311 = vst.msk [vmem:[#allocation3 + $0x28] sm:$0xf] %vm4300, %v4198
      %4312 = vst.msk [vmem:[#allocation3 + $0x2c] sm:$0xf] %vm4300, %v4200
      %4313 = vst.msk [vmem:[#allocation3 + $0x30] sm:$0xf] %vm4300, %v4202
      %4314 = vst.msk [vmem:[#allocation3 + $0x34] sm:$0xf] %vm4300, %v4204
      %4315 = vst.msk [vmem:[#allocation3 + $0x38] sm:$0xf] %vm4300, %v4206
      %4316 = vst.msk [vmem:[#allocation3 + $0x3c] sm:$0xf] %vm4300, %v4208
      %4317 = vst.msk [vmem:[#allocation3 + $0x40] sm:$0xf] %vm4300, %v4210
      %4318 = vst.msk [vmem:[#allocation3 + $0x44] sm:$0xf] %vm4300, %v4212
      %4319 = vst.msk [vmem:[#allocation3 + $0x48] sm:$0xf] %vm4300, %v4214
      %4320 = vst.msk [vmem:[#allocation3 + $0x4c] sm:$0xf] %vm4300, %v4216
      %4321 = vst.msk [vmem:[#allocation3 + $0x50] sm:$0xf] %vm4300, %v4218
      %4322 = vst.msk [vmem:[#allocation3 + $0x54] sm:$0xf] %vm4300, %v4220
      %4323 = vst.msk [vmem:[#allocation3 + $0x58] sm:$0xf] %vm4300, %v4222
      %4324 = vst.msk [vmem:[#allocation3 + $0x5c] sm:$0xf] %vm4300, %v4224
      %4325 = vst.msk [vmem:[#allocation3 + $0x60] sm:$0xf] %vm4300, %v4226
      %4326 = vst.msk [vmem:[#allocation3 + $0x64] sm:$0xf] %vm4300, %v4228
      %4327 = vst.msk [vmem:[#allocation3 + $0x68] sm:$0xf] %vm4300, %v4230
      %4328 = vst.msk [vmem:[#allocation3 + $0x6c] sm:$0xf] %vm4300, %v4232
      %4329 = vst.msk [vmem:[#allocation3 + $0x70] sm:$0xf] %vm4300, %v4234
      %4330 = vst.msk [vmem:[#allocation3 + $0x74] sm:$0xf] %vm4300, %v4236
      %4331 = vst.msk [vmem:[#allocation3 + $0x78] sm:$0xf] %vm4300, %v4238
      %4332 = vst.msk [vmem:[#allocation3 + $0x7c] sm:$0xf] %vm4300, %v4240
      %4333 = vst.msk [vmem:[#allocation3 + $0x80] sm:$0xf] %vm4300, %v4242
      %4334 = vst.msk [vmem:[#allocation3 + $0x84] sm:$0xf] %vm4300, %v4244
      %4335 = vst.msk [vmem:[#allocation3 + $0x88] sm:$0xf] %vm4300, %v4246
      %4336 = vst.msk [vmem:[#allocation3 + $0x8c] sm:$0xf] %vm4300, %v4248
      %4337 = vst.msk [vmem:[#allocation3 + $0x90] sm:$0xf] %vm4300, %v4250
      %4338 = vst.msk [vmem:[#allocation3 + $0x94] sm:$0xf] %vm4300, %v4252
      %4339 = vst.msk [vmem:[#allocation3 + $0x98] sm:$0xf] %vm4300, %v4254
      %4340 = vst.msk [vmem:[#allocation3 + $0x9c] sm:$0xf] %vm4300, %v4256
      %vm4341 = vcmask 451968
      %4342 = vst.msk [vmem:[#allocation3 + $0xa0] sm:$0x3] %vm4341, %v4258
      %v4343 = vld [vmem:[#allocation2 + $0x10] sm:$0xc]
      %v4344 = vld [vmem:[#allocation2 + $0x14] sm:$0xf]
      %v4345 = vld [vmem:[#allocation2 + $0x18] sm:$0xf]
      %v4346 = vld [vmem:[#allocation2 + $0x1c] sm:$0xf]
      %v4347 = vld [vmem:[#allocation2 + $0x20] sm:$0xf]
      %v4348 = vld [vmem:[#allocation2 + $0x24] sm:$0xf]
      %v4349 = vld [vmem:[#allocation2 + $0x28] sm:$0xf]
      %v4350 = vld [vmem:[#allocation2 + $0x2c] sm:$0xf]
      %v4351 = vld [vmem:[#allocation2 + $0x30] sm:$0xf]
      %v4352 = vld [vmem:[#allocation2 + $0x34] sm:$0xf]
      %v4353 = vld [vmem:[#allocation2 + $0x38] sm:$0xf]
      %v4354 = vld [vmem:[#allocation2 + $0x3c] sm:$0xf]
      %v4355 = vld [vmem:[#allocation2 + $0x40] sm:$0xf]
      %v4356 = vld [vmem:[#allocation2 + $0x44] sm:$0xf]
      %v4357 = vld [vmem:[#allocation2 + $0x48] sm:$0xf]
      %v4358 = vld [vmem:[#allocation2 + $0x4c] sm:$0xf]
      %v4359 = vld [vmem:[#allocation2 + $0x50] sm:$0xf]
      %v4360 = vld [vmem:[#allocation2 + $0x54] sm:$0xf]
      %v4361 = vld [vmem:[#allocation2 + $0x58] sm:$0xf]
      %v4362 = vld [vmem:[#allocation2 + $0x5c] sm:$0xf]
      %v4363 = vld [vmem:[#allocation2 + $0x60] sm:$0xf]
      %v4364 = vld [vmem:[#allocation2 + $0x64] sm:$0xf]
      %v4365 = vld [vmem:[#allocation2 + $0x68] sm:$0xf]
      %v4366 = vld [vmem:[#allocation2 + $0x6c] sm:$0xf]
      %v4367 = vld [vmem:[#allocation2 + $0x70] sm:$0xf]
      %v4368 = vld [vmem:[#allocation2 + $0x74] sm:$0xf]
      %v4369 = vld [vmem:[#allocation2 + $0x78] sm:$0xf]
      %v4370 = vld [vmem:[#allocation2 + $0x7c] sm:$0xf]
      %v4371 = vld [vmem:[#allocation2 + $0x80] sm:$0xf]
      %v4372 = vld [vmem:[#allocation2 + $0x84] sm:$0xf]
      %v4373 = vld [vmem:[#allocation2 + $0x88] sm:$0xf]
      %v4374 = vld [vmem:[#allocation2 + $0x8c] sm:$0xf]
      %v4375 = vld [vmem:[#allocation2 + $0x90] sm:$0xf]
      %v4376 = vld [vmem:[#allocation2 + $0x94] sm:$0xf]
      %v4377 = vld [vmem:[#allocation2 + $0x98] sm:$0xf]
      %v4378 = vld [vmem:[#allocation2 + $0x9c] sm:$0xf]
      %v4379 = vld [vmem:[#allocation2 + $0xa0] sm:$0xf]
      %v4380 = vld [vmem:[#allocation2 + $0xa4] sm:$0xf]
      %v4381 = vld [vmem:[#allocation2 + $0xa8] sm:$0xf]
      %v4382 = vld [vmem:[#allocation2 + $0xac] sm:$0xf]
      %v4383 = vld [vmem:[#allocation2 + $0xb0] sm:$0xf]
      %v4384 = vld [vmem:[#allocation2 + $0xb4] sm:$0x1]
      %v4386 = vshrl.u32 %v4343, 16
      %v4388 = vrot.slane %v4386, 6
      %v4389 = vshll.u32 %v4343, 16
      %v4391 = vrot.slane %v4389, 7
      %v4392 = vor.u32 %v4388, %v4391
      %v4393 = vrot.slane %v4392, 4
      %v4395 = vshrl.u32 %v4344, 16
      %v4397 = vrot.slane %v4395, 6
      %v4398 = vshll.u32 %v4344, 16
      %v4400 = vrot.slane %v4398, 7
      %v4401 = vor.u32 %v4397, %v4400
      %v4402 = vsel %vm1036, %v4393, %v4401
      %v4403 = vrot.slane %v4401, 4
      %v4405 = vshrl.u32 %v4345, 16
      %v4407 = vrot.slane %v4405, 6
      %v4408 = vshll.u32 %v4345, 16
      %v4410 = vrot.slane %v4408, 7
      %v4411 = vor.u32 %v4407, %v4410
      %v4412 = vsel %vm1036, %v4403, %v4411
      %v4413 = vrot.slane %v4411, 4
      %v4415 = vshrl.u32 %v4346, 16
      %v4417 = vrot.slane %v4415, 6
      %v4418 = vshll.u32 %v4346, 16
      %v4420 = vrot.slane %v4418, 7
      %v4421 = vor.u32 %v4417, %v4420
      %v4422 = vsel %vm1036, %v4413, %v4421
      %v4423 = vrot.slane %v4421, 4
      %v4425 = vshrl.u32 %v4347, 16
      %v4427 = vrot.slane %v4425, 6
      %v4428 = vshll.u32 %v4347, 16
      %v4430 = vrot.slane %v4428, 7
      %v4431 = vor.u32 %v4427, %v4430
      %v4432 = vsel %vm1036, %v4423, %v4431
      %v4433 = vrot.slane %v4431, 4
      %v4435 = vshrl.u32 %v4348, 16
      %v4437 = vrot.slane %v4435, 6
      %v4438 = vshll.u32 %v4348, 16
      %v4440 = vrot.slane %v4438, 7
      %v4441 = vor.u32 %v4437, %v4440
      %v4442 = vsel %vm1036, %v4433, %v4441
      %v4443 = vrot.slane %v4441, 4
      %v4445 = vshrl.u32 %v4349, 16
      %v4447 = vrot.slane %v4445, 6
      %v4448 = vshll.u32 %v4349, 16
      %v4450 = vrot.slane %v4448, 7
      %v4451 = vor.u32 %v4447, %v4450
      %v4452 = vsel %vm1036, %v4443, %v4451
      %v4453 = vrot.slane %v4451, 4
      %v4455 = vshrl.u32 %v4350, 16
      %v4457 = vrot.slane %v4455, 6
      %v4458 = vshll.u32 %v4350, 16
      %v4460 = vrot.slane %v4458, 7
      %v4461 = vor.u32 %v4457, %v4460
      %v4462 = vsel %vm1036, %v4453, %v4461
      %v4463 = vrot.slane %v4461, 4
      %v4465 = vshrl.u32 %v4351, 16
      %v4467 = vrot.slane %v4465, 6
      %v4468 = vshll.u32 %v4351, 16
      %v4470 = vrot.slane %v4468, 7
      %v4471 = vor.u32 %v4467, %v4470
      %v4472 = vsel %vm1036, %v4463, %v4471
      %v4473 = vrot.slane %v4471, 4
      %v4475 = vshrl.u32 %v4352, 16
      %v4477 = vrot.slane %v4475, 6
      %v4478 = vshll.u32 %v4352, 16
      %v4480 = vrot.slane %v4478, 7
      %v4481 = vor.u32 %v4477, %v4480
      %v4482 = vsel %vm1036, %v4473, %v4481
      %v4483 = vrot.slane %v4481, 4
      %v4485 = vshrl.u32 %v4353, 16
      %v4487 = vrot.slane %v4485, 6
      %v4488 = vshll.u32 %v4353, 16
      %v4490 = vrot.slane %v4488, 7
      %v4491 = vor.u32 %v4487, %v4490
      %v4492 = vsel %vm1036, %v4483, %v4491
      %v4493 = vrot.slane %v4491, 4
      %v4495 = vshrl.u32 %v4354, 16
      %v4497 = vrot.slane %v4495, 6
      %v4498 = vshll.u32 %v4354, 16
      %v4500 = vrot.slane %v4498, 7
      %v4501 = vor.u32 %v4497, %v4500
      %v4502 = vsel %vm1036, %v4493, %v4501
      %v4503 = vrot.slane %v4501, 4
      %v4505 = vshrl.u32 %v4355, 16
      %v4507 = vrot.slane %v4505, 6
      %v4508 = vshll.u32 %v4355, 16
      %v4510 = vrot.slane %v4508, 7
      %v4511 = vor.u32 %v4507, %v4510
      %v4512 = vsel %vm1036, %v4503, %v4511
      %v4513 = vrot.slane %v4511, 4
      %v4515 = vshrl.u32 %v4356, 16
      %v4517 = vrot.slane %v4515, 6
      %v4518 = vshll.u32 %v4356, 16
      %v4520 = vrot.slane %v4518, 7
      %v4521 = vor.u32 %v4517, %v4520
      %v4522 = vsel %vm1036, %v4513, %v4521
      %v4523 = vrot.slane %v4521, 4
      %v4525 = vshrl.u32 %v4357, 16
      %v4527 = vrot.slane %v4525, 6
      %v4528 = vshll.u32 %v4357, 16
      %v4530 = vrot.slane %v4528, 7
      %v4531 = vor.u32 %v4527, %v4530
      %v4532 = vsel %vm1036, %v4523, %v4531
      %v4533 = vrot.slane %v4531, 4
      %v4535 = vshrl.u32 %v4358, 16
      %v4537 = vrot.slane %v4535, 6
      %v4538 = vshll.u32 %v4358, 16
      %v4540 = vrot.slane %v4538, 7
      %v4541 = vor.u32 %v4537, %v4540
      %v4542 = vsel %vm1036, %v4533, %v4541
      %v4543 = vrot.slane %v4541, 4
      %v4545 = vshrl.u32 %v4359, 16
      %v4547 = vrot.slane %v4545, 6
      %v4548 = vshll.u32 %v4359, 16
      %v4550 = vrot.slane %v4548, 7
      %v4551 = vor.u32 %v4547, %v4550
      %v4552 = vsel %vm1036, %v4543, %v4551
      %v4553 = vrot.slane %v4551, 4
      %v4555 = vshrl.u32 %v4360, 16
      %v4557 = vrot.slane %v4555, 6
      %v4558 = vshll.u32 %v4360, 16
      %v4560 = vrot.slane %v4558, 7
      %v4561 = vor.u32 %v4557, %v4560
      %v4562 = vsel %vm1036, %v4553, %v4561
      %v4563 = vrot.slane %v4561, 4
      %v4565 = vshrl.u32 %v4361, 16
      %v4567 = vrot.slane %v4565, 6
      %v4568 = vshll.u32 %v4361, 16
      %v4570 = vrot.slane %v4568, 7
      %v4571 = vor.u32 %v4567, %v4570
      %v4572 = vsel %vm1036, %v4563, %v4571
      %v4573 = vrot.slane %v4571, 4
      %v4575 = vshrl.u32 %v4362, 16
      %v4577 = vrot.slane %v4575, 6
      %v4578 = vshll.u32 %v4362, 16
      %v4580 = vrot.slane %v4578, 7
      %v4581 = vor.u32 %v4577, %v4580
      %v4582 = vsel %vm1036, %v4573, %v4581
      %v4583 = vrot.slane %v4581, 4
      %v4585 = vshrl.u32 %v4363, 16
      %v4587 = vrot.slane %v4585, 6
      %v4588 = vshll.u32 %v4363, 16
      %v4590 = vrot.slane %v4588, 7
      %v4591 = vor.u32 %v4587, %v4590
      %v4592 = vsel %vm1036, %v4583, %v4591
      %v4593 = vrot.slane %v4591, 4
      %v4595 = vshrl.u32 %v4364, 16
      %v4597 = vrot.slane %v4595, 6
      %v4598 = vshll.u32 %v4364, 16
      %v4600 = vrot.slane %v4598, 7
      %v4601 = vor.u32 %v4597, %v4600
      %v4602 = vsel %vm1036, %v4593, %v4601
      %v4603 = vrot.slane %v4601, 4
      %v4605 = vshrl.u32 %v4365, 16
      %v4607 = vrot.slane %v4605, 6
      %v4608 = vshll.u32 %v4365, 16
      %v4610 = vrot.slane %v4608, 7
      %v4611 = vor.u32 %v4607, %v4610
      %v4612 = vsel %vm1036, %v4603, %v4611
      %v4613 = vrot.slane %v4611, 4
      %v4615 = vshrl.u32 %v4366, 16
      %v4617 = vrot.slane %v4615, 6
      %v4618 = vshll.u32 %v4366, 16
      %v4620 = vrot.slane %v4618, 7
      %v4621 = vor.u32 %v4617, %v4620
      %v4622 = vsel %vm1036, %v4613, %v4621
      %v4623 = vrot.slane %v4621, 4
      %v4625 = vshrl.u32 %v4367, 16
      %v4627 = vrot.slane %v4625, 6
      %v4628 = vshll.u32 %v4367, 16
      %v4630 = vrot.slane %v4628, 7
      %v4631 = vor.u32 %v4627, %v4630
      %v4632 = vsel %vm1036, %v4623, %v4631
      %v4633 = vrot.slane %v4631, 4
      %v4635 = vshrl.u32 %v4368, 16
      %v4637 = vrot.slane %v4635, 6
      %v4638 = vshll.u32 %v4368, 16
      %v4640 = vrot.slane %v4638, 7
      %v4641 = vor.u32 %v4637, %v4640
      %v4642 = vsel %vm1036, %v4633, %v4641
      %v4643 = vrot.slane %v4641, 4
      %v4645 = vshrl.u32 %v4369, 16
      %v4647 = vrot.slane %v4645, 6
      %v4648 = vshll.u32 %v4369, 16
      %v4650 = vrot.slane %v4648, 7
      %v4651 = vor.u32 %v4647, %v4650
      %v4652 = vsel %vm1036, %v4643, %v4651
      %v4653 = vrot.slane %v4651, 4
      %v4655 = vshrl.u32 %v4370, 16
      %v4657 = vrot.slane %v4655, 6
      %v4658 = vshll.u32 %v4370, 16
      %v4660 = vrot.slane %v4658, 7
      %v4661 = vor.u32 %v4657, %v4660
      %v4662 = vsel %vm1036, %v4653, %v4661
      %v4663 = vrot.slane %v4661, 4
      %v4665 = vshrl.u32 %v4371, 16
      %v4667 = vrot.slane %v4665, 6
      %v4668 = vshll.u32 %v4371, 16
      %v4670 = vrot.slane %v4668, 7
      %v4671 = vor.u32 %v4667, %v4670
      %v4672 = vsel %vm1036, %v4663, %v4671
      %v4673 = vrot.slane %v4671, 4
      %v4675 = vshrl.u32 %v4372, 16
      %v4677 = vrot.slane %v4675, 6
      %v4678 = vshll.u32 %v4372, 16
      %v4680 = vrot.slane %v4678, 7
      %v4681 = vor.u32 %v4677, %v4680
      %v4682 = vsel %vm1036, %v4673, %v4681
      %v4683 = vrot.slane %v4681, 4
      %v4685 = vshrl.u32 %v4373, 16
      %v4687 = vrot.slane %v4685, 6
      %v4688 = vshll.u32 %v4373, 16
      %v4690 = vrot.slane %v4688, 7
      %v4691 = vor.u32 %v4687, %v4690
      %v4692 = vsel %vm1036, %v4683, %v4691
      %v4693 = vrot.slane %v4691, 4
      %v4695 = vshrl.u32 %v4374, 16
      %v4697 = vrot.slane %v4695, 6
      %v4698 = vshll.u32 %v4374, 16
      %v4700 = vrot.slane %v4698, 7
      %v4701 = vor.u32 %v4697, %v4700
      %v4702 = vsel %vm1036, %v4693, %v4701
      %v4703 = vrot.slane %v4701, 4
      %v4705 = vshrl.u32 %v4375, 16
      %v4707 = vrot.slane %v4705, 6
      %v4708 = vshll.u32 %v4375, 16
      %v4710 = vrot.slane %v4708, 7
      %v4711 = vor.u32 %v4707, %v4710
      %v4712 = vsel %vm1036, %v4703, %v4711
      %v4713 = vrot.slane %v4711, 4
      %v4715 = vshrl.u32 %v4376, 16
      %v4717 = vrot.slane %v4715, 6
      %v4718 = vshll.u32 %v4376, 16
      %v4720 = vrot.slane %v4718, 7
      %v4721 = vor.u32 %v4717, %v4720
      %v4722 = vsel %vm1036, %v4713, %v4721
      %v4723 = vrot.slane %v4721, 4
      %v4725 = vshrl.u32 %v4377, 16
      %v4727 = vrot.slane %v4725, 6
      %v4728 = vshll.u32 %v4377, 16
      %v4730 = vrot.slane %v4728, 7
      %v4731 = vor.u32 %v4727, %v4730
      %v4732 = vsel %vm1036, %v4723, %v4731
      %v4733 = vrot.slane %v4731, 4
      %v4735 = vshrl.u32 %v4378, 16
      %v4737 = vrot.slane %v4735, 6
      %v4738 = vshll.u32 %v4378, 16
      %v4740 = vrot.slane %v4738, 7
      %v4741 = vor.u32 %v4737, %v4740
      %v4742 = vsel %vm1036, %v4733, %v4741
      %v4743 = vrot.slane %v4741, 4
      %v4745 = vshrl.u32 %v4379, 16
      %v4747 = vrot.slane %v4745, 6
      %v4748 = vshll.u32 %v4379, 16
      %v4750 = vrot.slane %v4748, 7
      %v4751 = vor.u32 %v4747, %v4750
      %v4752 = vsel %vm1036, %v4743, %v4751
      %v4753 = vrot.slane %v4751, 4
      %v4755 = vshrl.u32 %v4380, 16
      %v4757 = vrot.slane %v4755, 6
      %v4758 = vshll.u32 %v4380, 16
      %v4760 = vrot.slane %v4758, 7
      %v4761 = vor.u32 %v4757, %v4760
      %v4762 = vsel %vm1036, %v4753, %v4761
      %v4763 = vrot.slane %v4761, 4
      %v4765 = vshrl.u32 %v4381, 16
      %v4767 = vrot.slane %v4765, 6
      %v4768 = vshll.u32 %v4381, 16
      %v4770 = vrot.slane %v4768, 7
      %v4771 = vor.u32 %v4767, %v4770
      %v4772 = vsel %vm1036, %v4763, %v4771
      %v4773 = vrot.slane %v4771, 4
      %v4775 = vshrl.u32 %v4382, 16
      %v4777 = vrot.slane %v4775, 6
      %v4778 = vshll.u32 %v4382, 16
      %v4780 = vrot.slane %v4778, 7
      %v4781 = vor.u32 %v4777, %v4780
      %v4782 = vsel %vm1036, %v4773, %v4781
      %v4783 = vrot.slane %v4781, 4
      %v4785 = vshrl.u32 %v4383, 16
      %v4787 = vrot.slane %v4785, 6
      %v4788 = vshll.u32 %v4383, 16
      %v4790 = vrot.slane %v4788, 7
      %v4791 = vor.u32 %v4787, %v4790
      %v4792 = vsel %vm1036, %v4783, %v4791
      %v4793 = vrot.slane %v4791, 4
      %v4795 = vshll.u32 %v4384, 16
      %v4797 = vrot.slane %v4795, 7
      %v4798 = vsel %vm1036, %v4793, %v4797
      %4799 = vrot.lane.b32.xlu0 %v4402, 56
      %v4800 = vpop.permute.xlu0 %4799
      %4801 = vrot.lane.b32.xlu0 %v4412, 56
      %v4802 = vpop.permute.xlu0 %4801
      %4803 = vrot.lane.b32.xlu0 %v4422, 56
      %v4804 = vpop.permute.xlu0 %4803
      %4805 = vrot.lane.b32.xlu0 %v4432, 56
      %v4806 = vpop.permute.xlu0 %4805
      %4807 = vrot.lane.b32.xlu0 %v4442, 56
      %v4808 = vpop.permute.xlu0 %4807
      %4809 = vrot.lane.b32.xlu0 %v4452, 56
      %v4810 = vpop.permute.xlu0 %4809
      %4811 = vrot.lane.b32.xlu0 %v4462, 56
      %v4812 = vpop.permute.xlu0 %4811
      %4813 = vrot.lane.b32.xlu0 %v4472, 56
      %v4814 = vpop.permute.xlu0 %4813
      %4815 = vrot.lane.b32.xlu0 %v4482, 56
      %v4816 = vpop.permute.xlu0 %4815
      %4817 = vrot.lane.b32.xlu0 %v4492, 56
      %v4818 = vpop.permute.xlu0 %4817
      %4819 = vrot.lane.b32.xlu0 %v4502, 56
      %v4820 = vpop.permute.xlu0 %4819
      %4821 = vrot.lane.b32.xlu0 %v4512, 56
      %v4822 = vpop.permute.xlu0 %4821
      %4823 = vrot.lane.b32.xlu0 %v4522, 56
      %v4824 = vpop.permute.xlu0 %4823
      %4825 = vrot.lane.b32.xlu0 %v4532, 56
      %v4826 = vpop.permute.xlu0 %4825
      %4827 = vrot.lane.b32.xlu0 %v4542, 56
      %v4828 = vpop.permute.xlu0 %4827
      %4829 = vrot.lane.b32.xlu0 %v4552, 56
      %v4830 = vpop.permute.xlu0 %4829
      %4831 = vrot.lane.b32.xlu0 %v4562, 56
      %v4832 = vpop.permute.xlu0 %4831
      %4833 = vrot.lane.b32.xlu0 %v4572, 56
      %v4834 = vpop.permute.xlu0 %4833
      %4835 = vrot.lane.b32.xlu0 %v4582, 56
      %v4836 = vpop.permute.xlu0 %4835
      %4837 = vrot.lane.b32.xlu0 %v4592, 56
      %v4838 = vpop.permute.xlu0 %4837
      %4839 = vrot.lane.b32.xlu0 %v4602, 56
      %v4840 = vpop.permute.xlu0 %4839
      %4841 = vrot.lane.b32.xlu0 %v4612, 56
      %v4842 = vpop.permute.xlu0 %4841
      %4843 = vrot.lane.b32.xlu0 %v4622, 56
      %v4844 = vpop.permute.xlu0 %4843
      %4845 = vrot.lane.b32.xlu0 %v4632, 56
      %v4846 = vpop.permute.xlu0 %4845
      %4847 = vrot.lane.b32.xlu0 %v4642, 56
      %v4848 = vpop.permute.xlu0 %4847
      %4849 = vrot.lane.b32.xlu0 %v4652, 56
      %v4850 = vpop.permute.xlu0 %4849
      %4851 = vrot.lane.b32.xlu0 %v4662, 56
      %v4852 = vpop.permute.xlu0 %4851
      %4853 = vrot.lane.b32.xlu0 %v4672, 56
      %v4854 = vpop.permute.xlu0 %4853
      %4855 = vrot.lane.b32.xlu0 %v4682, 56
      %v4856 = vpop.permute.xlu0 %4855
      %4857 = vrot.lane.b32.xlu0 %v4692, 56
      %v4858 = vpop.permute.xlu0 %4857
      %4859 = vrot.lane.b32.xlu0 %v4702, 56
      %v4860 = vpop.permute.xlu0 %4859
      %4861 = vrot.lane.b32.xlu0 %v4712, 56
      %v4862 = vpop.permute.xlu0 %4861
      %4863 = vrot.lane.b32.xlu0 %v4722, 56
      %v4864 = vpop.permute.xlu0 %4863
      %4865 = vrot.lane.b32.xlu0 %v4732, 56
      %v4866 = vpop.permute.xlu0 %4865
      %4867 = vrot.lane.b32.xlu0 %v4742, 56
      %v4868 = vpop.permute.xlu0 %4867
      %4869 = vrot.lane.b32.xlu0 %v4752, 56
      %v4870 = vpop.permute.xlu0 %4869
      %4871 = vrot.lane.b32.xlu0 %v4762, 56
      %v4872 = vpop.permute.xlu0 %4871
      %4873 = vrot.lane.b32.xlu0 %v4772, 56
      %v4874 = vpop.permute.xlu0 %4873
      %4875 = vrot.lane.b32.xlu0 %v4782, 56
      %v4876 = vpop.permute.xlu0 %4875
      %4877 = vrot.lane.b32.xlu0 %v4792, 56
      %v4878 = vpop.permute.xlu0 %4877
      %4879 = vrot.lane.b32.xlu0 %v4798, 56
      %v4880 = vpop.permute.xlu0 %4879
      %vm4922 = vcmask 519616
      %4923 = vst.msk [vmem:[#allocation3] sm:$0xf] %vm4922, %v4800
      %4924 = vst.msk [vmem:[#allocation3 + $0x4] sm:$0xf] %vm4922, %v4802
      %4925 = vst.msk [vmem:[#allocation3 + $0x8] sm:$0xf] %vm4922, %v4804
      %4926 = vst.msk [vmem:[#allocation3 + $0xc] sm:$0xf] %vm4922, %v4806
      %4927 = vst.msk [vmem:[#allocation3 + $0x10] sm:$0xf] %vm4922, %v4808
      %4928 = vst.msk [vmem:[#allocation3 + $0x14] sm:$0xf] %vm4922, %v4810
      %4929 = vst.msk [vmem:[#allocation3 + $0x18] sm:$0xf] %vm4922, %v4812
      %4930 = vst.msk [vmem:[#allocation3 + $0x1c] sm:$0xf] %vm4922, %v4814
      %4931 = vst.msk [vmem:[#allocation3 + $0x20] sm:$0xf] %vm4922, %v4816
      %4932 = vst.msk [vmem:[#allocation3 + $0x24] sm:$0xf] %vm4922, %v4818
      %4933 = vst.msk [vmem:[#allocation3 + $0x28] sm:$0xf] %vm4922, %v4820
      %4934 = vst.msk [vmem:[#allocation3 + $0x2c] sm:$0xf] %vm4922, %v4822
      %4935 = vst.msk [vmem:[#allocation3 + $0x30] sm:$0xf] %vm4922, %v4824
      %4936 = vst.msk [vmem:[#allocation3 + $0x34] sm:$0xf] %vm4922, %v4826
      %4937 = vst.msk [vmem:[#allocation3 + $0x38] sm:$0xf] %vm4922, %v4828
      %4938 = vst.msk [vmem:[#allocation3 + $0x3c] sm:$0xf] %vm4922, %v4830
      %4939 = vst.msk [vmem:[#allocation3 + $0x40] sm:$0xf] %vm4922, %v4832
      %4940 = vst.msk [vmem:[#allocation3 + $0x44] sm:$0xf] %vm4922, %v4834
      %4941 = vst.msk [vmem:[#allocation3 + $0x48] sm:$0xf] %vm4922, %v4836
      %4942 = vst.msk [vmem:[#allocation3 + $0x4c] sm:$0xf] %vm4922, %v4838
      %4943 = vst.msk [vmem:[#allocation3 + $0x50] sm:$0xf] %vm4922, %v4840
      %4944 = vst.msk [vmem:[#allocation3 + $0x54] sm:$0xf] %vm4922, %v4842
      %4945 = vst.msk [vmem:[#allocation3 + $0x58] sm:$0xf] %vm4922, %v4844
      %4946 = vst.msk [vmem:[#allocation3 + $0x5c] sm:$0xf] %vm4922, %v4846
      %4947 = vst.msk [vmem:[#allocation3 + $0x60] sm:$0xf] %vm4922, %v4848
      %4948 = vst.msk [vmem:[#allocation3 + $0x64] sm:$0xf] %vm4922, %v4850
      %4949 = vst.msk [vmem:[#allocation3 + $0x68] sm:$0xf] %vm4922, %v4852
      %4950 = vst.msk [vmem:[#allocation3 + $0x6c] sm:$0xf] %vm4922, %v4854
      %4951 = vst.msk [vmem:[#allocation3 + $0x70] sm:$0xf] %vm4922, %v4856
      %4952 = vst.msk [vmem:[#allocation3 + $0x74] sm:$0xf] %vm4922, %v4858
      %4953 = vst.msk [vmem:[#allocation3 + $0x78] sm:$0xf] %vm4922, %v4860
      %4954 = vst.msk [vmem:[#allocation3 + $0x7c] sm:$0xf] %vm4922, %v4862
      %4955 = vst.msk [vmem:[#allocation3 + $0x80] sm:$0xf] %vm4922, %v4864
      %4956 = vst.msk [vmem:[#allocation3 + $0x84] sm:$0xf] %vm4922, %v4866
      %4957 = vst.msk [vmem:[#allocation3 + $0x88] sm:$0xf] %vm4922, %v4868
      %4958 = vst.msk [vmem:[#allocation3 + $0x8c] sm:$0xf] %vm4922, %v4870
      %4959 = vst.msk [vmem:[#allocation3 + $0x90] sm:$0xf] %vm4922, %v4872
      %4960 = vst.msk [vmem:[#allocation3 + $0x94] sm:$0xf] %vm4922, %v4874
      %4961 = vst.msk [vmem:[#allocation3 + $0x98] sm:$0xf] %vm4922, %v4876
      %4962 = vst.msk [vmem:[#allocation3 + $0x9c] sm:$0xf] %vm4922, %v4878
      %vm4963 = vcmask 517568
      %4964 = vst.msk [vmem:[#allocation3 + $0xa0] sm:$0x3] %vm4963, %v4880
      %v4965 = vld [vmem:[#allocation2 + $0x10] sm:$0x8]
      %v4966 = vld [vmem:[#allocation2 + $0x14] sm:$0xf]
      %v4967 = vld [vmem:[#allocation2 + $0x18] sm:$0xf]
      %v4968 = vld [vmem:[#allocation2 + $0x1c] sm:$0xf]
      %v4969 = vld [vmem:[#allocation2 + $0x20] sm:$0xf]
      %v4970 = vld [vmem:[#allocation2 + $0x24] sm:$0xf]
      %v4971 = vld [vmem:[#allocation2 + $0x28] sm:$0xf]
      %v4972 = vld [vmem:[#allocation2 + $0x2c] sm:$0xf]
      %v4973 = vld [vmem:[#allocation2 + $0x30] sm:$0xf]
      %v4974 = vld [vmem:[#allocation2 + $0x34] sm:$0xf]
      %v4975 = vld [vmem:[#allocation2 + $0x38] sm:$0xf]
      %v4976 = vld [vmem:[#allocation2 + $0x3c] sm:$0xf]
      %v4977 = vld [vmem:[#allocation2 + $0x40] sm:$0xf]
      %v4978 = vld [vmem:[#allocation2 + $0x44] sm:$0xf]
      %v4979 = vld [vmem:[#allocation2 + $0x48] sm:$0xf]
      %v4980 = vld [vmem:[#allocation2 + $0x4c] sm:$0xf]
      %v4981 = vld [vmem:[#allocation2 + $0x50] sm:$0xf]
      %v4982 = vld [vmem:[#allocation2 + $0x54] sm:$0xf]
      %v4983 = vld [vmem:[#allocation2 + $0x58] sm:$0xf]
      %v4984 = vld [vmem:[#allocation2 + $0x5c] sm:$0xf]
      %v4985 = vld [vmem:[#allocation2 + $0x60] sm:$0xf]
      %v4986 = vld [vmem:[#allocation2 + $0x64] sm:$0xf]
      %v4987 = vld [vmem:[#allocation2 + $0x68] sm:$0xf]
      %v4988 = vld [vmem:[#allocation2 + $0x6c] sm:$0xf]
      %v4989 = vld [vmem:[#allocation2 + $0x70] sm:$0xf]
      %v4990 = vld [vmem:[#allocation2 + $0x74] sm:$0xf]
      %v4991 = vld [vmem:[#allocation2 + $0x78] sm:$0xf]
      %v4992 = vld [vmem:[#allocation2 + $0x7c] sm:$0xf]
      %v4993 = vld [vmem:[#allocation2 + $0x80] sm:$0xf]
      %v4994 = vld [vmem:[#allocation2 + $0x84] sm:$0xf]
      %v4995 = vld [vmem:[#allocation2 + $0x88] sm:$0xf]
      %v4996 = vld [vmem:[#allocation2 + $0x8c] sm:$0xf]
      %v4997 = vld [vmem:[#allocation2 + $0x90] sm:$0xf]
      %v4998 = vld [vmem:[#allocation2 + $0x94] sm:$0xf]
      %v4999 = vld [vmem:[#allocation2 + $0x98] sm:$0xf]
      %v5000 = vld [vmem:[#allocation2 + $0x9c] sm:$0xf]
      %v5001 = vld [vmem:[#allocation2 + $0xa0] sm:$0xf]
      %v5002 = vld [vmem:[#allocation2 + $0xa4] sm:$0xf]
      %v5003 = vld [vmem:[#allocation2 + $0xa8] sm:$0xf]
      %v5004 = vld [vmem:[#allocation2 + $0xac] sm:$0xf]
      %v5005 = vld [vmem:[#allocation2 + $0xb0] sm:$0xf]
      %v5006 = vld [vmem:[#allocation2 + $0xb4] sm:$0x1]
      %vm5049 = vcmask 1040384
      %vm5050 = vcmask 1044484
      %vm5051 = vmor %vm5049, %vm5050
      %v5052 = vrot.slane %v4965, 7
      %v5053 = vrot.slane %v5052, 4
      %v5054 = vrot.slane %v4966, 7
      %v5055 = vsel %vm5051, %v5053, %v5054
      %v5056 = vrot.slane %v5054, 4
      %v5057 = vrot.slane %v4967, 7
      %v5058 = vsel %vm5051, %v5056, %v5057
      %v5059 = vrot.slane %v5057, 4
      %v5060 = vrot.slane %v4968, 7
      %v5061 = vsel %vm5051, %v5059, %v5060
      %v5062 = vrot.slane %v5060, 4
      %v5063 = vrot.slane %v4969, 7
      %v5064 = vsel %vm5051, %v5062, %v5063
      %v5065 = vrot.slane %v5063, 4
      %v5066 = vrot.slane %v4970, 7
      %v5067 = vsel %vm5051, %v5065, %v5066
      %v5068 = vrot.slane %v5066, 4
      %v5069 = vrot.slane %v4971, 7
      %v5070 = vsel %vm5051, %v5068, %v5069
      %v5071 = vrot.slane %v5069, 4
      %v5072 = vrot.slane %v4972, 7
      %v5073 = vsel %vm5051, %v5071, %v5072
      %v5074 = vrot.slane %v5072, 4
      %v5075 = vrot.slane %v4973, 7
      %v5076 = vsel %vm5051, %v5074, %v5075
      %v5077 = vrot.slane %v5075, 4
      %v5078 = vrot.slane %v4974, 7
      %v5079 = vsel %vm5051, %v5077, %v5078
      %v5080 = vrot.slane %v5078, 4
      %v5081 = vrot.slane %v4975, 7
      %v5082 = vsel %vm5051, %v5080, %v5081
      %v5083 = vrot.slane %v5081, 4
      %v5084 = vrot.slane %v4976, 7
      %v5085 = vsel %vm5051, %v5083, %v5084
      %v5086 = vrot.slane %v5084, 4
      %v5087 = vrot.slane %v4977, 7
      %v5088 = vsel %vm5051, %v5086, %v5087
      %v5089 = vrot.slane %v5087, 4
      %v5090 = vrot.slane %v4978, 7
      %v5091 = vsel %vm5051, %v5089, %v5090
      %v5092 = vrot.slane %v5090, 4
      %v5093 = vrot.slane %v4979, 7
      %v5094 = vsel %vm5051, %v5092, %v5093
      %v5095 = vrot.slane %v5093, 4
      %v5096 = vrot.slane %v4980, 7
      %v5097 = vsel %vm5051, %v5095, %v5096
      %v5098 = vrot.slane %v5096, 4
      %v5099 = vrot.slane %v4981, 7
      %v5100 = vsel %vm5051, %v5098, %v5099
      %v5101 = vrot.slane %v5099, 4
      %v5102 = vrot.slane %v4982, 7
      %v5103 = vsel %vm5051, %v5101, %v5102
      %v5104 = vrot.slane %v5102, 4
      %v5105 = vrot.slane %v4983, 7
      %v5106 = vsel %vm5051, %v5104, %v5105
      %v5107 = vrot.slane %v5105, 4
      %v5108 = vrot.slane %v4984, 7
      %v5109 = vsel %vm5051, %v5107, %v5108
      %v5110 = vrot.slane %v5108, 4
      %v5111 = vrot.slane %v4985, 7
      %v5112 = vsel %vm5051, %v5110, %v5111
      %v5113 = vrot.slane %v5111, 4
      %v5114 = vrot.slane %v4986, 7
      %v5115 = vsel %vm5051, %v5113, %v5114
      %v5116 = vrot.slane %v5114, 4
      %v5117 = vrot.slane %v4987, 7
      %v5118 = vsel %vm5051, %v5116, %v5117
      %v5119 = vrot.slane %v5117, 4
      %v5120 = vrot.slane %v4988, 7
      %v5121 = vsel %vm5051, %v5119, %v5120
      %v5122 = vrot.slane %v5120, 4
      %v5123 = vrot.slane %v4989, 7
      %v5124 = vsel %vm5051, %v5122, %v5123
      %v5125 = vrot.slane %v5123, 4
      %v5126 = vrot.slane %v4990, 7
      %v5127 = vsel %vm5051, %v5125, %v5126
      %v5128 = vrot.slane %v5126, 4
      %v5129 = vrot.slane %v4991, 7
      %v5130 = vsel %vm5051, %v5128, %v5129
      %v5131 = vrot.slane %v5129, 4
      %v5132 = vrot.slane %v4992, 7
      %v5133 = vsel %vm5051, %v5131, %v5132
      %v5134 = vrot.slane %v5132, 4
      %v5135 = vrot.slane %v4993, 7
      %v5136 = vsel %vm5051, %v5134, %v5135
      %v5137 = vrot.slane %v5135, 4
      %v5138 = vrot.slane %v4994, 7
      %v5139 = vsel %vm5051, %v5137, %v5138
      %v5140 = vrot.slane %v5138, 4
      %v5141 = vrot.slane %v4995, 7
      %v5142 = vsel %vm5051, %v5140, %v5141
      %v5143 = vrot.slane %v5141, 4
      %v5144 = vrot.slane %v4996, 7
      %v5145 = vsel %vm5051, %v5143, %v5144
      %v5146 = vrot.slane %v5144, 4
      %v5147 = vrot.slane %v4997, 7
      %v5148 = vsel %vm5051, %v5146, %v5147
      %v5149 = vrot.slane %v5147, 4
      %v5150 = vrot.slane %v4998, 7
      %v5151 = vsel %vm5051, %v5149, %v5150
      %v5152 = vrot.slane %v5150, 4
      %v5153 = vrot.slane %v4999, 7
      %v5154 = vsel %vm5051, %v5152, %v5153
      %v5155 = vrot.slane %v5153, 4
      %v5156 = vrot.slane %v5000, 7
      %v5157 = vsel %vm5051, %v5155, %v5156
      %v5158 = vrot.slane %v5156, 4
      %v5159 = vrot.slane %v5001, 7
      %v5160 = vsel %vm5051, %v5158, %v5159
      %v5161 = vrot.slane %v5159, 4
      %v5162 = vrot.slane %v5002, 7
      %v5163 = vsel %vm5051, %v5161, %v5162
      %v5164 = vrot.slane %v5162, 4
      %v5165 = vrot.slane %v5003, 7
      %v5166 = vsel %vm5051, %v5164, %v5165
      %v5167 = vrot.slane %v5165, 4
      %v5168 = vrot.slane %v5004, 7
      %v5169 = vsel %vm5051, %v5167, %v5168
      %v5170 = vrot.slane %v5168, 4
      %v5171 = vrot.slane %v5005, 7
      %v5172 = vsel %vm5051, %v5170, %v5171
      %v5173 = vrot.slane %v5171, 4
      %v5174 = vrot.slane %v5006, 7
      %v5175 = vsel %vm5051, %v5173, %v5174
      %5176 = vrot.lane.b32.xlu0 %v5055, 64
      %v5177 = vpop.permute.xlu0 %5176
      %5178 = vrot.lane.b32.xlu0 %v5058, 64
      %v5179 = vpop.permute.xlu0 %5178
      %5180 = vrot.lane.b32.xlu0 %v5061, 64
      %v5181 = vpop.permute.xlu0 %5180
      %5182 = vrot.lane.b32.xlu0 %v5064, 64
      %v5183 = vpop.permute.xlu0 %5182
      %5184 = vrot.lane.b32.xlu0 %v5067, 64
      %v5185 = vpop.permute.xlu0 %5184
      %5186 = vrot.lane.b32.xlu0 %v5070, 64
      %v5187 = vpop.permute.xlu0 %5186
      %5188 = vrot.lane.b32.xlu0 %v5073, 64
      %v5189 = vpop.permute.xlu0 %5188
      %5190 = vrot.lane.b32.xlu0 %v5076, 64
      %v5191 = vpop.permute.xlu0 %5190
      %5192 = vrot.lane.b32.xlu0 %v5079, 64
      %v5193 = vpop.permute.xlu0 %5192
      %5194 = vrot.lane.b32.xlu0 %v5082, 64
      %v5195 = vpop.permute.xlu0 %5194
      %5196 = vrot.lane.b32.xlu0 %v5085, 64
      %v5197 = vpop.permute.xlu0 %5196
      %5198 = vrot.lane.b32.xlu0 %v5088, 64
      %v5199 = vpop.permute.xlu0 %5198
      %5200 = vrot.lane.b32.xlu0 %v5091, 64
      %v5201 = vpop.permute.xlu0 %5200
      %5202 = vrot.lane.b32.xlu0 %v5094, 64
      %v5203 = vpop.permute.xlu0 %5202
      %5204 = vrot.lane.b32.xlu0 %v5097, 64
      %v5205 = vpop.permute.xlu0 %5204
      %5206 = vrot.lane.b32.xlu0 %v5100, 64
      %v5207 = vpop.permute.xlu0 %5206
      %5208 = vrot.lane.b32.xlu0 %v5103, 64
      %v5209 = vpop.permute.xlu0 %5208
      %5210 = vrot.lane.b32.xlu0 %v5106, 64
      %v5211 = vpop.permute.xlu0 %5210
      %5212 = vrot.lane.b32.xlu0 %v5109, 64
      %v5213 = vpop.permute.xlu0 %5212
      %5214 = vrot.lane.b32.xlu0 %v5112, 64
      %v5215 = vpop.permute.xlu0 %5214
      %5216 = vrot.lane.b32.xlu0 %v5115, 64
      %v5217 = vpop.permute.xlu0 %5216
      %5218 = vrot.lane.b32.xlu0 %v5118, 64
      %v5219 = vpop.permute.xlu0 %5218
      %5220 = vrot.lane.b32.xlu0 %v5121, 64
      %v5221 = vpop.permute.xlu0 %5220
      %5222 = vrot.lane.b32.xlu0 %v5124, 64
      %v5223 = vpop.permute.xlu0 %5222
      %5224 = vrot.lane.b32.xlu0 %v5127, 64
      %v5225 = vpop.permute.xlu0 %5224
      %5226 = vrot.lane.b32.xlu0 %v5130, 64
      %v5227 = vpop.permute.xlu0 %5226
      %5228 = vrot.lane.b32.xlu0 %v5133, 64
      %v5229 = vpop.permute.xlu0 %5228
      %5230 = vrot.lane.b32.xlu0 %v5136, 64
      %v5231 = vpop.permute.xlu0 %5230
      %5232 = vrot.lane.b32.xlu0 %v5139, 64
      %v5233 = vpop.permute.xlu0 %5232
      %5234 = vrot.lane.b32.xlu0 %v5142, 64
      %v5235 = vpop.permute.xlu0 %5234
      %5236 = vrot.lane.b32.xlu0 %v5145, 64
      %v5237 = vpop.permute.xlu0 %5236
      %5238 = vrot.lane.b32.xlu0 %v5148, 64
      %v5239 = vpop.permute.xlu0 %5238
      %5240 = vrot.lane.b32.xlu0 %v5151, 64
      %v5241 = vpop.permute.xlu0 %5240
      %5242 = vrot.lane.b32.xlu0 %v5154, 64
      %v5243 = vpop.permute.xlu0 %5242
      %5244 = vrot.lane.b32.xlu0 %v5157, 64
      %v5245 = vpop.permute.xlu0 %5244
      %5246 = vrot.lane.b32.xlu0 %v5160, 64
      %v5247 = vpop.permute.xlu0 %5246
      %5248 = vrot.lane.b32.xlu0 %v5163, 64
      %v5249 = vpop.permute.xlu0 %5248
      %5250 = vrot.lane.b32.xlu0 %v5166, 64
      %v5251 = vpop.permute.xlu0 %5250
      %5252 = vrot.lane.b32.xlu0 %v5169, 64
      %v5253 = vpop.permute.xlu0 %5252
      %5254 = vrot.lane.b32.xlu0 %v5172, 64
      %v5255 = vpop.permute.xlu0 %5254
      %5256 = vrot.lane.b32.xlu0 %v5175, 64
      %v5257 = vpop.permute.xlu0 %5256
      %vm5299 = vcmask 585216
      %5300 = vst.msk [vmem:[#allocation3] sm:$0xf] %vm5299, %v5177
      %5301 = vst.msk [vmem:[#allocation3 + $0x4] sm:$0xf] %vm5299, %v5179
      %5302 = vst.msk [vmem:[#allocation3 + $0x8] sm:$0xf] %vm5299, %v5181
      %5303 = vst.msk [vmem:[#allocation3 + $0xc] sm:$0xf] %vm5299, %v5183
      %5304 = vst.msk [vmem:[#allocation3 + $0x10] sm:$0xf] %vm5299, %v5185
      %5305 = vst.msk [vmem:[#allocation3 + $0x14] sm:$0xf] %vm5299, %v5187
      %5306 = vst.msk [vmem:[#allocation3 + $0x18] sm:$0xf] %vm5299, %v5189
      %5307 = vst.msk [vmem:[#allocation3 + $0x1c] sm:$0xf] %vm5299, %v5191
      %5308 = vst.msk [vmem:[#allocation3 + $0x20] sm:$0xf] %vm5299, %v5193
      %5309 = vst.msk [vmem:[#allocation3 + $0x24] sm:$0xf] %vm5299, %v5195
      %5310 = vst.msk [vmem:[#allocation3 + $0x28] sm:$0xf] %vm5299, %v5197
      %5311 = vst.msk [vmem:[#allocation3 + $0x2c] sm:$0xf] %vm5299, %v5199
      %5312 = vst.msk [vmem:[#allocation3 + $0x30] sm:$0xf] %vm5299, %v5201
      %5313 = vst.msk [vmem:[#allocation3 + $0x34] sm:$0xf] %vm5299, %v5203
      %5314 = vst.msk [vmem:[#allocation3 + $0x38] sm:$0xf] %vm5299, %v5205
      %5315 = vst.msk [vmem:[#allocation3 + $0x3c] sm:$0xf] %vm5299, %v5207
      %5316 = vst.msk [vmem:[#allocation3 + $0x40] sm:$0xf] %vm5299, %v5209
      %5317 = vst.msk [vmem:[#allocation3 + $0x44] sm:$0xf] %vm5299, %v5211
      %5318 = vst.msk [vmem:[#allocation3 + $0x48] sm:$0xf] %vm5299, %v5213
      %5319 = vst.msk [vmem:[#allocation3 + $0x4c] sm:$0xf] %vm5299, %v5215
      %5320 = vst.msk [vmem:[#allocation3 + $0x50] sm:$0xf] %vm5299, %v5217
      %5321 = vst.msk [vmem:[#allocation3 + $0x54] sm:$0xf] %vm5299, %v5219
      %5322 = vst.msk [vmem:[#allocation3 + $0x58] sm:$0xf] %vm5299, %v5221
      %5323 = vst.msk [vmem:[#allocation3 + $0x5c] sm:$0xf] %vm5299, %v5223
      %5324 = vst.msk [vmem:[#allocation3 + $0x60] sm:$0xf] %vm5299, %v5225
      %5325 = vst.msk [vmem:[#allocation3 + $0x64] sm:$0xf] %vm5299, %v5227
      %5326 = vst.msk [vmem:[#allocation3 + $0x68] sm:$0xf] %vm5299, %v5229
      %5327 = vst.msk [vmem:[#allocation3 + $0x6c] sm:$0xf] %vm5299, %v5231
      %5328 = vst.msk [vmem:[#allocation3 + $0x70] sm:$0xf] %vm5299, %v5233
      %5329 = vst.msk [vmem:[#allocation3 + $0x74] sm:$0xf] %vm5299, %v5235
      %5330 = vst.msk [vmem:[#allocation3 + $0x78] sm:$0xf] %vm5299, %v5237
      %5331 = vst.msk [vmem:[#allocation3 + $0x7c] sm:$0xf] %vm5299, %v5239
      %5332 = vst.msk [vmem:[#allocation3 + $0x80] sm:$0xf] %vm5299, %v5241
      %5333 = vst.msk [vmem:[#allocation3 + $0x84] sm:$0xf] %vm5299, %v5243
      %5334 = vst.msk [vmem:[#allocation3 + $0x88] sm:$0xf] %vm5299, %v5245
      %5335 = vst.msk [vmem:[#allocation3 + $0x8c] sm:$0xf] %vm5299, %v5247
      %5336 = vst.msk [vmem:[#allocation3 + $0x90] sm:$0xf] %vm5299, %v5249
      %5337 = vst.msk [vmem:[#allocation3 + $0x94] sm:$0xf] %vm5299, %v5251
      %5338 = vst.msk [vmem:[#allocation3 + $0x98] sm:$0xf] %vm5299, %v5253
      %5339 = vst.msk [vmem:[#allocation3 + $0x9c] sm:$0xf] %vm5299, %v5255
      %vm5340 = vcmask 583168
      %5341 = vst.msk [vmem:[#allocation3 + $0xa0] sm:$0x3] %vm5340, %v5257
      %v5342 = vld [vmem:[#allocation3] sm:$0xf]
      %v5343 = vld [vmem:[#allocation3 + $0x4] sm:$0xf]
      %v5344 = vld [vmem:[#allocation3 + $0x8] sm:$0xf]
      %v5345 = vld [vmem:[#allocation3 + $0xc] sm:$0xf]
      %v5346 = vld [vmem:[#allocation3 + $0x10] sm:$0xf]
      %v5347 = vld [vmem:[#allocation3 + $0x14] sm:$0xf]
      %v5348 = vld [vmem:[#allocation3 + $0x18] sm:$0xf]
      %v5349 = vld [vmem:[#allocation3 + $0x1c] sm:$0xf]
      %v5350 = vld [vmem:[#allocation3 + $0x20] sm:$0xf]
      %v5351 = vld [vmem:[#allocation3 + $0x24] sm:$0xf]
      %v5352 = vld [vmem:[#allocation3 + $0x28] sm:$0xf]
      %v5353 = vld [vmem:[#allocation3 + $0x2c] sm:$0xf]
      %v5354 = vld [vmem:[#allocation3 + $0x30] sm:$0xf]
      %v5355 = vld [vmem:[#allocation3 + $0x34] sm:$0xf]
      %v5356 = vld [vmem:[#allocation3 + $0x38] sm:$0xf]
      %v5357 = vld [vmem:[#allocation3 + $0x3c] sm:$0xf]
      %v5358 = vld [vmem:[#allocation3 + $0x40] sm:$0xf]
      %v5359 = vld [vmem:[#allocation3 + $0x44] sm:$0xf]
      %v5360 = vld [vmem:[#allocation3 + $0x48] sm:$0xf]
      %v5361 = vld [vmem:[#allocation3 + $0x4c] sm:$0xf]
      %v5362 = vld [vmem:[#allocation3 + $0x50] sm:$0xf]
      %v5363 = vld [vmem:[#allocation3 + $0x54] sm:$0xf]
      %v5364 = vld [vmem:[#allocation3 + $0x58] sm:$0xf]
      %v5365 = vld [vmem:[#allocation3 + $0x5c] sm:$0xf]
      %v5366 = vld [vmem:[#allocation3 + $0x60] sm:$0xf]
      %v5367 = vld [vmem:[#allocation3 + $0x64] sm:$0xf]
      %v5368 = vld [vmem:[#allocation3 + $0x68] sm:$0xf]
      %v5369 = vld [vmem:[#allocation3 + $0x6c] sm:$0xf]
      %v5370 = vld [vmem:[#allocation3 + $0x70] sm:$0xf]
      %v5371 = vld [vmem:[#allocation3 + $0x74] sm:$0xf]
      %v5372 = vld [vmem:[#allocation3 + $0x78] sm:$0xf]
      %v5373 = vld [vmem:[#allocation3 + $0x7c] sm:$0xf]
      %v5374 = vld [vmem:[#allocation3 + $0x80] sm:$0xf]
      %v5375 = vld [vmem:[#allocation3 + $0x84] sm:$0xf]
      %v5376 = vld [vmem:[#allocation3 + $0x88] sm:$0xf]
      %v5377 = vld [vmem:[#allocation3 + $0x8c] sm:$0xf]
      %v5378 = vld [vmem:[#allocation3 + $0x90] sm:$0xf]
      %v5379 = vld [vmem:[#allocation3 + $0x94] sm:$0xf]
      %v5380 = vld [vmem:[#allocation3 + $0x98] sm:$0xf]
      %v5381 = vld [vmem:[#allocation3 + $0x9c] sm:$0xf]
      %v5382 = vld [vmem:[#allocation3 + $0xa0] sm:$0x3]
      %v5383 = vld [vmem:[%s4] sm:$0xf]
      %v5384 = vld [vmem:[%s4 + $0x4] sm:$0xf]
      %v5385 = vld [vmem:[%s4 + $0x8] sm:$0xf]
      %v5386 = vld [vmem:[%s4 + $0xc] sm:$0xf]
      %v5387 = vld [vmem:[%s4 + $0x10] sm:$0xf]
      %v5388 = vld [vmem:[%s4 + $0x14] sm:$0xf]
      %v5389 = vld [vmem:[%s4 + $0x18] sm:$0xf]
      %v5390 = vld [vmem:[%s4 + $0x1c] sm:$0xf]
      %v5391 = vld [vmem:[%s4 + $0x20] sm:$0xf]
      %v5392 = vld [vmem:[%s5] sm:$0x1]
      %v5394 = vperm.slane %v5392, 0
      %v5437 = vunpack.c.l.b16 %v5342
      %v5438 = vunpack.c.l.b16 %v5343
      %v5439 = vunpack.c.l.b16 %v5344
      %v5440 = vunpack.c.l.b16 %v5345
      %v5441 = vunpack.c.l.b16 %v5346
      %v5442 = vunpack.c.l.b16 %v5347
      %v5443 = vunpack.c.l.b16 %v5348
      %v5444 = vunpack.c.l.b16 %v5349
      %v5445 = vunpack.c.l.b16 %v5350
      %v5446 = vunpack.c.l.b16 %v5351
      %v5447 = vunpack.c.l.b16 %v5352
      %v5448 = vunpack.c.l.b16 %v5353
      %v5449 = vunpack.c.l.b16 %v5354
      %v5450 = vunpack.c.l.b16 %v5355
      %v5451 = vunpack.c.l.b16 %v5356
      %v5452 = vunpack.c.l.b16 %v5357
      %v5453 = vunpack.c.l.b16 %v5358
      %v5454 = vunpack.c.l.b16 %v5359
      %v5455 = vunpack.c.l.b16 %v5360
      %v5456 = vunpack.c.l.b16 %v5361
      %v5457 = vunpack.c.l.b16 %v5362
      %v5458 = vunpack.c.l.b16 %v5363
      %v5459 = vunpack.c.l.b16 %v5364
      %v5460 = vunpack.c.l.b16 %v5365
      %v5461 = vunpack.c.l.b16 %v5366
      %v5462 = vunpack.c.l.b16 %v5367
      %v5463 = vunpack.c.l.b16 %v5368
      %v5464 = vunpack.c.l.b16 %v5369
      %v5465 = vunpack.c.l.b16 %v5370
      %v5466 = vunpack.c.l.b16 %v5371
      %v5467 = vunpack.c.l.b16 %v5372
      %v5468 = vunpack.c.l.b16 %v5373
      %v5469 = vunpack.c.l.b16 %v5374
      %v5470 = vunpack.c.l.b16 %v5375
      %v5471 = vunpack.c.l.b16 %v5376
      %v5472 = vunpack.c.l.b16 %v5377
      %v5473 = vunpack.c.l.b16 %v5378
      %v5474 = vunpack.c.l.b16 %v5379
      %v5475 = vunpack.c.l.b16 %v5380
      %v5476 = vunpack.c.l.b16 %v5381
      %v5477 = vunpack.c.l.b16 %v5382
      %v5478 = vpack.c.b16 %v5438, %v5437
      %v5479 = vpack.c.b16 %v5440, %v5439
      %v5480 = vpack.c.b16 %v5442, %v5441
      %v5481 = vpack.c.b16 %v5444, %v5443
      %v5482 = vpack.c.b16 %v5446, %v5445
      %v5483 = vpack.c.b16 %v5448, %v5447
      %v5484 = vpack.c.b16 %v5450, %v5449
      %v5485 = vpack.c.b16 %v5452, %v5451
      %v5486 = vpack.c.b16 %v5454, %v5453
      %v5487 = vpack.c.b16 %v5456, %v5455
      %v5488 = vpack.c.b16 %v5458, %v5457
      %v5489 = vpack.c.b16 %v5460, %v5459
      %v5490 = vpack.c.b16 %v5462, %v5461
      %v5491 = vpack.c.b16 %v5464, %v5463
      %v5492 = vpack.c.b16 %v5466, %v5465
      %v5493 = vpack.c.b16 %v5468, %v5467
      %v5494 = vpack.c.b16 %v5470, %v5469
      %v5495 = vpack.c.b16 %v5472, %v5471
      %v5496 = vpack.c.b16 %v5474, %v5473
      %v5497 = vpack.c.b16 %v5476, %v5475
      %v5498 = vpack.c.b16 %v5477, %v5477
      %v5508 = vunpack.c.l.b16 %v5383
      %v5509 = vunpack.c.l.b16 %v5384
      %v5510 = vunpack.c.l.b16 %v5385
      %v5511 = vunpack.c.l.b16 %v5386
      %v5512 = vunpack.c.l.b16 %v5387
      %v5513 = vunpack.c.l.b16 %v5388
      %v5514 = vunpack.c.l.b16 %v5389
      %v5515 = vunpack.c.l.b16 %v5390
      %v5516 = vunpack.c.l.b16 %v5391
      %v5517 = vpack.c.b16 %v5509, %v5508
      %v5518 = vpack.c.b16 %v5511, %v5510
      %v5519 = vpack.c.b16 %v5513, %v5512
      %v5520 = vpack.c.b16 %v5515, %v5514
      %v5521 = vpack.c.b16 %v5516, %v5516
      %vm5526 = vcmask 588800
      %v5528 = vsel %vm5526, %v5478, 0
      %v5531 = vsel %vm5526, %v5479, 0
      %v5534 = vsel %vm5526, %v5480, 0
      %v5537 = vsel %vm5526, %v5481, 0
      %v5540 = vsel %vm5526, %v5482, 0
      %v5543 = vsel %vm5526, %v5483, 0
      %v5546 = vsel %vm5526, %v5484, 0
      %v5549 = vsel %vm5526, %v5485, 0
      %v5552 = vsel %vm5526, %v5486, 0
      %v5555 = vsel %vm5526, %v5487, 0
      %v5558 = vsel %vm5526, %v5488, 0
      %v5561 = vsel %vm5526, %v5489, 0
      %v5564 = vsel %vm5526, %v5490, 0
      %v5567 = vsel %vm5526, %v5491, 0
      %v5570 = vsel %vm5526, %v5492, 0
      %v5573 = vsel %vm5526, %v5493, 0
      %v5576 = vsel %vm5526, %v5494, 0
      %v5579 = vsel %vm5526, %v5495, 0
      %v5582 = vsel %vm5526, %v5496, 0
      %v5585 = vsel %vm5526, %v5497, 0
      %v5588 = vsel %vm5526, %v5498, 0
      %vm5590 = vcmask 1043456
      %v5592 = vsel %vm5590, %v5521, 0
      %5594 = vmatpush.bf16.msra.mxu0 0
      %5595 = vmatpush.bf16.msra.mxu0 0
      %5596 = vmatpush.bf16.msra.mxu0 0
      %5597 = vmatpush.bf16.msra.mxu0 %v5592
      %5598 = vmatpush.bf16.msra.mxu0 %v5520
      %5599 = vmatpush.bf16.msra.mxu0 %v5519
      %5600 = vmatpush.bf16.msra.mxu0 %v5518
      %5601 = vmatpush.bf16.msra.mxu0 %v5517
      %5602 = vmatmul.bf16.gmra.mxu0 %v5528
      %v5603 = vpop.f32.mrf.mxu0
      %v5604 = vadd.f32 %v5394, %v5603
      %v5605 = vpop.f32.mrf.mxu0
      %v5606 = vadd.f32 %v5394, %v5605
      %5607 = vmatmul.bf16.gmra.mxu0 %v5531
      %v5608 = vpop.f32.mrf.mxu0
      %v5609 = vadd.f32 %v5394, %v5608
      %v5610 = vpop.f32.mrf.mxu0
      %v5611 = vadd.f32 %v5394, %v5610
      %5612 = vmatmul.bf16.gmra.mxu0 %v5534
      %v5613 = vpop.f32.mrf.mxu0
      %v5614 = vadd.f32 %v5394, %v5613
      %v5615 = vpop.f32.mrf.mxu0
      %v5616 = vadd.f32 %v5394, %v5615
      %5617 = vmatmul.bf16.gmra.mxu0 %v5537
      %v5618 = vpop.f32.mrf.mxu0
      %v5619 = vadd.f32 %v5394, %v5618
      %v5620 = vpop.f32.mrf.mxu0
      %v5621 = vadd.f32 %v5394, %v5620
      %5622 = vmatmul.bf16.gmra.mxu0 %v5540
      %v5623 = vpop.f32.mrf.mxu0
      %v5624 = vadd.f32 %v5394, %v5623
      %v5625 = vpop.f32.mrf.mxu0
      %v5626 = vadd.f32 %v5394, %v5625
      %5627 = vmatmul.bf16.gmra.mxu0 %v5543
      %v5628 = vpop.f32.mrf.mxu0
      %v5629 = vadd.f32 %v5394, %v5628
      %v5630 = vpop.f32.mrf.mxu0
      %v5631 = vadd.f32 %v5394, %v5630
      %5632 = vmatmul.bf16.gmra.mxu0 %v5546
      %v5633 = vpop.f32.mrf.mxu0
      %v5634 = vadd.f32 %v5394, %v5633
      %v5635 = vpop.f32.mrf.mxu0
      %v5636 = vadd.f32 %v5394, %v5635
      %5637 = vmatmul.bf16.gmra.mxu0 %v5549
      %v5638 = vpop.f32.mrf.mxu0
      %v5639 = vadd.f32 %v5394, %v5638
      %v5640 = vpop.f32.mrf.mxu0
      %v5641 = vadd.f32 %v5394, %v5640
      %5642 = vmatmul.bf16.gmra.mxu0 %v5552
      %v5643 = vpop.f32.mrf.mxu0
      %v5644 = vadd.f32 %v5394, %v5643
      %v5645 = vpop.f32.mrf.mxu0
      %v5646 = vadd.f32 %v5394, %v5645
      %5647 = vmatmul.bf16.gmra.mxu0 %v5555
      %v5648 = vpop.f32.mrf.mxu0
      %v5649 = vadd.f32 %v5394, %v5648
      %v5650 = vpop.f32.mrf.mxu0
      %v5651 = vadd.f32 %v5394, %v5650
      %5652 = vmatmul.bf16.gmra.mxu0 %v5558
      %v5653 = vpop.f32.mrf.mxu0
      %v5654 = vadd.f32 %v5394, %v5653
      %v5655 = vpop.f32.mrf.mxu0
      %v5656 = vadd.f32 %v5394, %v5655
      %5657 = vmatmul.bf16.gmra.mxu0 %v5561
      %v5658 = vpop.f32.mrf.mxu0
      %v5659 = vadd.f32 %v5394, %v5658
      %v5660 = vpop.f32.mrf.mxu0
      %v5661 = vadd.f32 %v5394, %v5660
      %5662 = vmatmul.bf16.gmra.mxu0 %v5564
      %v5663 = vpop.f32.mrf.mxu0
      %v5664 = vadd.f32 %v5394, %v5663
      %v5665 = vpop.f32.mrf.mxu0
      %v5666 = vadd.f32 %v5394, %v5665
      %5667 = vmatmul.bf16.gmra.mxu0 %v5567
      %v5668 = vpop.f32.mrf.mxu0
      %v5669 = vadd.f32 %v5394, %v5668
      %v5670 = vpop.f32.mrf.mxu0
      %v5671 = vadd.f32 %v5394, %v5670
      %5672 = vmatmul.bf16.gmra.mxu0 %v5570
      %v5673 = vpop.f32.mrf.mxu0
      %v5674 = vadd.f32 %v5394, %v5673
      %v5675 = vpop.f32.mrf.mxu0
      %v5676 = vadd.f32 %v5394, %v5675
      %5677 = vmatmul.bf16.gmra.mxu0 %v5573
      %v5678 = vpop.f32.mrf.mxu0
      %v5679 = vadd.f32 %v5394, %v5678
      %v5680 = vpop.f32.mrf.mxu0
      %v5681 = vadd.f32 %v5394, %v5680
      %5682 = vmatmul.bf16.gmra.mxu0 %v5576
      %v5683 = vpop.f32.mrf.mxu0
      %v5684 = vadd.f32 %v5394, %v5683
      %v5685 = vpop.f32.mrf.mxu0
      %v5686 = vadd.f32 %v5394, %v5685
      %5687 = vmatmul.bf16.gmra.mxu0 %v5579
      %v5688 = vpop.f32.mrf.mxu0
      %v5689 = vadd.f32 %v5394, %v5688
      %v5690 = vpop.f32.mrf.mxu0
      %v5691 = vadd.f32 %v5394, %v5690
      %5692 = vmatmul.bf16.gmra.mxu0 %v5582
      %v5693 = vpop.f32.mrf.mxu0
      %v5694 = vadd.f32 %v5394, %v5693
      %v5695 = vpop.f32.mrf.mxu0
      %v5696 = vadd.f32 %v5394, %v5695
      %5697 = vmatmul.bf16.gmra.mxu0 %v5585
      %v5698 = vpop.f32.mrf.mxu0
      %v5699 = vadd.f32 %v5394, %v5698
      %v5700 = vpop.f32.mrf.mxu0
      %v5701 = vadd.f32 %v5394, %v5700
      %5702 = vmatmul.bf16.gmra.mxu0 %v5588
      %v5703 = vpop.f32.mrf.mxu0
      %v5704 = vadd.f32 %v5394, %v5703
      %v5705 = vpop.f32.mrf.mxu0
      %5706 = vdwg.mxu0
      %v5707 = vmax.f32 %v5604, 0.0
      %v5708 = vmax.f32 %v5606, 0.0
      %v5709 = vmax.f32 %v5609, 0.0
      %v5710 = vmax.f32 %v5611, 0.0
      %v5711 = vmax.f32 %v5614, 0.0
      %v5712 = vmax.f32 %v5616, 0.0
      %v5713 = vmax.f32 %v5619, 0.0
      %v5714 = vmax.f32 %v5621, 0.0
      %v5715 = vmax.f32 %v5624, 0.0
      %v5716 = vmax.f32 %v5626, 0.0
      %v5717 = vmax.f32 %v5629, 0.0
      %v5718 = vmax.f32 %v5631, 0.0
      %v5719 = vmax.f32 %v5634, 0.0
      %v5720 = vmax.f32 %v5636, 0.0
      %v5721 = vmax.f32 %v5639, 0.0
      %v5722 = vmax.f32 %v5641, 0.0
      %v5723 = vmax.f32 %v5644, 0.0
      %v5724 = vmax.f32 %v5646, 0.0
      %v5725 = vmax.f32 %v5649, 0.0
      %v5726 = vmax.f32 %v5651, 0.0
      %v5727 = vmax.f32 %v5654, 0.0
      %v5728 = vmax.f32 %v5656, 0.0
      %v5729 = vmax.f32 %v5659, 0.0
      %v5730 = vmax.f32 %v5661, 0.0
      %v5731 = vmax.f32 %v5664, 0.0
      %v5732 = vmax.f32 %v5666, 0.0
      %v5733 = vmax.f32 %v5669, 0.0
      %v5734 = vmax.f32 %v5671, 0.0
      %v5735 = vmax.f32 %v5674, 0.0
      %v5736 = vmax.f32 %v5676, 0.0
      %v5737 = vmax.f32 %v5679, 0.0
      %v5738 = vmax.f32 %v5681, 0.0
      %v5739 = vmax.f32 %v5684, 0.0
      %v5740 = vmax.f32 %v5686, 0.0
      %v5741 = vmax.f32 %v5689, 0.0
      %v5742 = vmax.f32 %v5691, 0.0
      %v5743 = vmax.f32 %v5694, 0.0
      %v5744 = vmax.f32 %v5696, 0.0
      %v5745 = vmax.f32 %v5699, 0.0
      %v5746 = vmax.f32 %v5701, 0.0
      %v5747 = vmax.f32 %v5704, 0.0
      %v5748 = vpack.c.bf16 %v5708, %v5707
      %v5749 = vpack.c.bf16 %v5710, %v5709
      %v5750 = vpack.c.bf16 %v5712, %v5711
      %v5751 = vpack.c.bf16 %v5714, %v5713
      %v5752 = vpack.c.bf16 %v5716, %v5715
      %v5753 = vpack.c.bf16 %v5718, %v5717
      %v5754 = vpack.c.bf16 %v5720, %v5719
      %v5755 = vpack.c.bf16 %v5722, %v5721
      %v5756 = vpack.c.bf16 %v5724, %v5723
      %v5757 = vpack.c.bf16 %v5726, %v5725
      %v5758 = vpack.c.bf16 %v5728, %v5727
      %v5759 = vpack.c.bf16 %v5730, %v5729
      %v5760 = vpack.c.bf16 %v5732, %v5731
      %v5761 = vpack.c.bf16 %v5734, %v5733
      %v5762 = vpack.c.bf16 %v5736, %v5735
      %v5763 = vpack.c.bf16 %v5738, %v5737
      %v5764 = vpack.c.bf16 %v5740, %v5739
      %v5765 = vpack.c.bf16 %v5742, %v5741
      %v5766 = vpack.c.bf16 %v5744, %v5743
      %v5767 = vpack.c.bf16 %v5746, %v5745
      %v5768 = vpack.c.bf16 %v5747, %v5747
      %v5769 = vld [vmem:[%s6] sm:$0xf]
      %v5770 = vld [vmem:[%s7] sm:$0x1]
      %v5772 = vperm.slane %v5770, 0
      %vm5774 = vcmask 64512
      %v5776 = vsel %vm5774, %v5748, 0
      %v5779 = vsel %vm5774, %v5749, 0
      %v5782 = vsel %vm5774, %v5750, 0
      %v5785 = vsel %vm5774, %v5751, 0
      %v5788 = vsel %vm5774, %v5752, 0
      %v5791 = vsel %vm5774, %v5753, 0
      %v5794 = vsel %vm5774, %v5754, 0
      %v5797 = vsel %vm5774, %v5755, 0
      %v5800 = vsel %vm5774, %v5756, 0
      %v5803 = vsel %vm5774, %v5757, 0
      %v5806 = vsel %vm5774, %v5758, 0
      %v5809 = vsel %vm5774, %v5759, 0
      %v5812 = vsel %vm5774, %v5760, 0
      %v5815 = vsel %vm5774, %v5761, 0
      %v5818 = vsel %vm5774, %v5762, 0
      %v5821 = vsel %vm5774, %v5763, 0
      %v5824 = vsel %vm5774, %v5764, 0
      %v5827 = vsel %vm5774, %v5765, 0
      %v5830 = vsel %vm5774, %v5766, 0
      %v5833 = vsel %vm5774, %v5767, 0
      %v5836 = vsel %vm5774, %v5768, 0
      %v5839 = vsel %vm5590, %v5769, 0
      %5841 = vmatpush.bf16.msra.mxu0 0
      %5842 = vmatpush.bf16.msra.mxu0 0
      %5843 = vmatpush.bf16.msra.mxu0 0
      %5844 = vmatpush.bf16.msra.mxu0 0
      %5845 = vmatpush.bf16.msra.mxu0 0
      %5846 = vmatpush.bf16.msra.mxu0 0
      %5847 = vmatpush.bf16.msra.mxu0 0
      %5848 = vmatpush.bf16.msra.mxu0 %v5839
      %5849 = vmatmul.bf16.gmra.mxu0 %v5776
      %v5850 = vpop.f32.mrf.mxu0
      %v5851 = vadd.f32 %v5772, %v5850
      %v5852 = vpop.f32.mrf.mxu0
      %v5853 = vadd.f32 %v5772, %v5852
      %5854 = vmatmul.bf16.gmra.mxu0 %v5779
      %v5855 = vpop.f32.mrf.mxu0
      %v5856 = vadd.f32 %v5772, %v5855
      %v5857 = vpop.f32.mrf.mxu0
      %v5858 = vadd.f32 %v5772, %v5857
      %5859 = vmatmul.bf16.gmra.mxu0 %v5782
      %v5860 = vpop.f32.mrf.mxu0
      %v5861 = vadd.f32 %v5772, %v5860
      %v5862 = vpop.f32.mrf.mxu0
      %v5863 = vadd.f32 %v5772, %v5862
      %5864 = vmatmul.bf16.gmra.mxu0 %v5785
      %v5865 = vpop.f32.mrf.mxu0
      %v5866 = vadd.f32 %v5772, %v5865
      %v5867 = vpop.f32.mrf.mxu0
      %v5868 = vadd.f32 %v5772, %v5867
      %5869 = vmatmul.bf16.gmra.mxu0 %v5788
      %v5870 = vpop.f32.mrf.mxu0
      %v5871 = vadd.f32 %v5772, %v5870
      %v5872 = vpop.f32.mrf.mxu0
      %v5873 = vadd.f32 %v5772, %v5872
      %5874 = vmatmul.bf16.gmra.mxu0 %v5791
      %v5875 = vpop.f32.mrf.mxu0
      %v5876 = vadd.f32 %v5772, %v5875
      %v5877 = vpop.f32.mrf.mxu0
      %v5878 = vadd.f32 %v5772, %v5877
      %5879 = vmatmul.bf16.gmra.mxu0 %v5794
      %v5880 = vpop.f32.mrf.mxu0
      %v5881 = vadd.f32 %v5772, %v5880
      %v5882 = vpop.f32.mrf.mxu0
      %v5883 = vadd.f32 %v5772, %v5882
      %5884 = vmatmul.bf16.gmra.mxu0 %v5797
      %v5885 = vpop.f32.mrf.mxu0
      %v5886 = vadd.f32 %v5772, %v5885
      %v5887 = vpop.f32.mrf.mxu0
      %v5888 = vadd.f32 %v5772, %v5887
      %5889 = vmatmul.bf16.gmra.mxu0 %v5800
      %v5890 = vpop.f32.mrf.mxu0
      %v5891 = vadd.f32 %v5772, %v5890
      %v5892 = vpop.f32.mrf.mxu0
      %v5893 = vadd.f32 %v5772, %v5892
      %5894 = vmatmul.bf16.gmra.mxu0 %v5803
      %v5895 = vpop.f32.mrf.mxu0
      %v5896 = vadd.f32 %v5772, %v5895
      %v5897 = vpop.f32.mrf.mxu0
      %v5898 = vadd.f32 %v5772, %v5897
      %5899 = vmatmul.bf16.gmra.mxu0 %v5806
      %v5900 = vpop.f32.mrf.mxu0
      %v5901 = vadd.f32 %v5772, %v5900
      %v5902 = vpop.f32.mrf.mxu0
      %v5903 = vadd.f32 %v5772, %v5902
      %5904 = vmatmul.bf16.gmra.mxu0 %v5809
      %v5905 = vpop.f32.mrf.mxu0
      %v5906 = vadd.f32 %v5772, %v5905
      %v5907 = vpop.f32.mrf.mxu0
      %v5908 = vadd.f32 %v5772, %v5907
      %5909 = vmatmul.bf16.gmra.mxu0 %v5812
      %v5910 = vpop.f32.mrf.mxu0
      %v5911 = vadd.f32 %v5772, %v5910
      %v5912 = vpop.f32.mrf.mxu0
      %v5913 = vadd.f32 %v5772, %v5912
      %5914 = vmatmul.bf16.gmra.mxu0 %v5815
      %v5915 = vpop.f32.mrf.mxu0
      %v5916 = vadd.f32 %v5772, %v5915
      %v5917 = vpop.f32.mrf.mxu0
      %v5918 = vadd.f32 %v5772, %v5917
      %5919 = vmatmul.bf16.gmra.mxu0 %v5818
      %v5920 = vpop.f32.mrf.mxu0
      %v5921 = vadd.f32 %v5772, %v5920
      %v5922 = vpop.f32.mrf.mxu0
      %v5923 = vadd.f32 %v5772, %v5922
      %5924 = vmatmul.bf16.gmra.mxu0 %v5821
      %v5925 = vpop.f32.mrf.mxu0
      %v5926 = vadd.f32 %v5772, %v5925
      %v5927 = vpop.f32.mrf.mxu0
      %v5928 = vadd.f32 %v5772, %v5927
      %5929 = vmatmul.bf16.gmra.mxu0 %v5824
      %v5930 = vpop.f32.mrf.mxu0
      %v5931 = vadd.f32 %v5772, %v5930
      %v5932 = vpop.f32.mrf.mxu0
      %v5933 = vadd.f32 %v5772, %v5932
      %5934 = vmatmul.bf16.gmra.mxu0 %v5827
      %v5935 = vpop.f32.mrf.mxu0
      %v5936 = vadd.f32 %v5772, %v5935
      %v5937 = vpop.f32.mrf.mxu0
      %v5938 = vadd.f32 %v5772, %v5937
      %5939 = vmatmul.bf16.gmra.mxu0 %v5830
      %v5940 = vpop.f32.mrf.mxu0
      %v5941 = vadd.f32 %v5772, %v5940
      %v5942 = vpop.f32.mrf.mxu0
      %v5943 = vadd.f32 %v5772, %v5942
      %5944 = vmatmul.bf16.gmra.mxu0 %v5833
      %v5945 = vpop.f32.mrf.mxu0
      %v5946 = vadd.f32 %v5772, %v5945
      %v5947 = vpop.f32.mrf.mxu0
      %v5948 = vadd.f32 %v5772, %v5947
      %5949 = vmatmul.bf16.gmra.mxu0 %v5836
      %v5950 = vpop.f32.mrf.mxu0
      %v5951 = vadd.f32 %v5772, %v5950
      %v5952 = vpop.f32.mrf.mxu0
      %5953 = vdwg.mxu0
      %v5954 = vunpack.c.l.bf16 %v307
      %v5955 = vunpack.c.l.bf16 %v308
      %v5956 = vunpack.c.l.bf16 %v309
      %v5957 = vunpack.c.l.bf16 %v310
      %v5958 = vunpack.c.l.bf16 %v311
      %v5959 = vunpack.c.l.bf16 %v312
      %v5960 = vunpack.c.l.bf16 %v313
      %v5961 = vunpack.c.l.bf16 %v314
      %v5962 = vunpack.c.l.bf16 %v315
      %v5963 = vunpack.c.l.bf16 %v316
      %v5964 = vunpack.c.l.bf16 %v317
      %v5965 = vunpack.c.l.bf16 %v318
      %v5966 = vunpack.c.l.bf16 %v319
      %v5967 = vunpack.c.l.bf16 %v320
      %v5968 = vunpack.c.l.bf16 %v321
      %v5969 = vunpack.c.l.bf16 %v322
      %v5970 = vunpack.c.l.bf16 %v323
      %v5971 = vunpack.c.l.bf16 %v324
      %v5972 = vunpack.c.l.bf16 %v325
      %v5973 = vunpack.c.l.bf16 %v326
      %v5974 = vunpack.c.l.bf16 %v327
      %v5975 = vunpack.c.l.bf16 %v328
      %v5976 = vunpack.c.l.bf16 %v329
      %v5977 = vunpack.c.l.bf16 %v330
      %v5978 = vunpack.c.l.bf16 %v331
      %v5979 = vunpack.c.l.bf16 %v332
      %v5980 = vunpack.c.l.bf16 %v333
      %v5981 = vunpack.c.l.bf16 %v334
      %v5982 = vunpack.c.l.bf16 %v335
      %v5983 = vunpack.c.l.bf16 %v336
      %v5984 = vunpack.c.l.bf16 %v337
      %v5985 = vunpack.c.l.bf16 %v338
      %v5986 = vunpack.c.l.bf16 %v339
      %v5987 = vunpack.c.l.bf16 %v340
      %v5988 = vunpack.c.l.bf16 %v341
      %v5989 = vunpack.c.l.bf16 %v342
      %v5990 = vunpack.c.l.bf16 %v343
      %v5991 = vunpack.c.l.bf16 %v344
      %v5992 = vunpack.c.l.bf16 %v345
      %v5993 = vunpack.c.l.bf16 %v346
      %v5994 = vunpack.c.l.bf16 %v347
      %v5995 = vadd.f32 %v5851, %v5954
      %v5996 = vadd.f32 %v5853, %v5955
      %v5997 = vadd.f32 %v5856, %v5956
      %v5998 = vadd.f32 %v5858, %v5957
      %v5999 = vadd.f32 %v5861, %v5958
      %v6000 = vadd.f32 %v5863, %v5959
      %v6001 = vadd.f32 %v5866, %v5960
      %v6002 = vadd.f32 %v5868, %v5961
      %v6003 = vadd.f32 %v5871, %v5962
      %v6004 = vadd.f32 %v5873, %v5963
      %v6005 = vadd.f32 %v5876, %v5964
      %v6006 = vadd.f32 %v5878, %v5965
      %v6007 = vadd.f32 %v5881, %v5966
      %v6008 = vadd.f32 %v5883, %v5967
      %v6009 = vadd.f32 %v5886, %v5968
      %v6010 = vadd.f32 %v5888, %v5969
      %v6011 = vadd.f32 %v5891, %v5970
      %v6012 = vadd.f32 %v5893, %v5971
      %v6013 = vadd.f32 %v5896, %v5972
      %v6014 = vadd.f32 %v5898, %v5973
      %v6015 = vadd.f32 %v5901, %v5974
      %v6016 = vadd.f32 %v5903, %v5975
      %v6017 = vadd.f32 %v5906, %v5976
      %v6018 = vadd.f32 %v5908, %v5977
      %v6019 = vadd.f32 %v5911, %v5978
      %v6020 = vadd.f32 %v5913, %v5979
      %v6021 = vadd.f32 %v5916, %v5980
      %v6022 = vadd.f32 %v5918, %v5981
      %v6023 = vadd.f32 %v5921, %v5982
      %v6024 = vadd.f32 %v5923, %v5983
      %v6025 = vadd.f32 %v5926, %v5984
      %v6026 = vadd.f32 %v5928, %v5985
      %v6027 = vadd.f32 %v5931, %v5986
      %v6028 = vadd.f32 %v5933, %v5987
      %v6029 = vadd.f32 %v5936, %v5988
      %v6030 = vadd.f32 %v5938, %v5989
      %v6031 = vadd.f32 %v5941, %v5990
      %v6032 = vadd.f32 %v5943, %v5991
      %v6033 = vadd.f32 %v5946, %v5992
      %v6034 = vadd.f32 %v5948, %v5993
      %v6035 = vadd.f32 %v5951, %v5994
      %v6036 = vmax.f32 %v5995, 0.0
      %v6037 = vmax.f32 %v5996, 0.0
      %v6038 = vmax.f32 %v5997, 0.0
      %v6039 = vmax.f32 %v5998, 0.0
      %v6040 = vmax.f32 %v5999, 0.0
      %v6041 = vmax.f32 %v6000, 0.0
      %v6042 = vmax.f32 %v6001, 0.0
      %v6043 = vmax.f32 %v6002, 0.0
      %v6044 = vmax.f32 %v6003, 0.0
      %v6045 = vmax.f32 %v6004, 0.0
      %v6046 = vmax.f32 %v6005, 0.0
      %v6047 = vmax.f32 %v6006, 0.0
      %v6048 = vmax.f32 %v6007, 0.0
      %v6049 = vmax.f32 %v6008, 0.0
      %v6050 = vmax.f32 %v6009, 0.0
      %v6051 = vmax.f32 %v6010, 0.0
      %v6052 = vmax.f32 %v6011, 0.0
      %v6053 = vmax.f32 %v6012, 0.0
      %v6054 = vmax.f32 %v6013, 0.0
      %v6055 = vmax.f32 %v6014, 0.0
      %v6056 = vmax.f32 %v6015, 0.0
      %v6057 = vmax.f32 %v6016, 0.0
      %v6058 = vmax.f32 %v6017, 0.0
      %v6059 = vmax.f32 %v6018, 0.0
      %v6060 = vmax.f32 %v6019, 0.0
      %v6061 = vmax.f32 %v6020, 0.0
      %v6062 = vmax.f32 %v6021, 0.0
      %v6063 = vmax.f32 %v6022, 0.0
      %v6064 = vmax.f32 %v6023, 0.0
      %v6065 = vmax.f32 %v6024, 0.0
      %v6066 = vmax.f32 %v6025, 0.0
      %v6067 = vmax.f32 %v6026, 0.0
      %v6068 = vmax.f32 %v6027, 0.0
      %v6069 = vmax.f32 %v6028, 0.0
      %v6070 = vmax.f32 %v6029, 0.0
      %v6071 = vmax.f32 %v6030, 0.0
      %v6072 = vmax.f32 %v6031, 0.0
      %v6073 = vmax.f32 %v6032, 0.0
      %v6074 = vmax.f32 %v6033, 0.0
      %v6075 = vmax.f32 %v6034, 0.0
      %v6076 = vmax.f32 %v6035, 0.0
      %v6077 = vpack.c.bf16 %v6036, %v6036
      %v6078 = vpack.c.bf16 %v6037, %v6037
      %v6079 = vpack.c.bf16 %v6038, %v6038
      %v6080 = vpack.c.bf16 %v6039, %v6039
      %v6081 = vpack.c.bf16 %v6040, %v6040
      %v6082 = vpack.c.bf16 %v6041, %v6041
      %v6083 = vpack.c.bf16 %v6042, %v6042
      %v6084 = vpack.c.bf16 %v6043, %v6043
      %v6085 = vpack.c.bf16 %v6044, %v6044
      %v6086 = vpack.c.bf16 %v6045, %v6045
      %v6087 = vpack.c.bf16 %v6046, %v6046
      %v6088 = vpack.c.bf16 %v6047, %v6047
      %v6089 = vpack.c.bf16 %v6048, %v6048
      %v6090 = vpack.c.bf16 %v6049, %v6049
      %v6091 = vpack.c.bf16 %v6050, %v6050
      %v6092 = vpack.c.bf16 %v6051, %v6051
      %v6093 = vpack.c.bf16 %v6052, %v6052
      %v6094 = vpack.c.bf16 %v6053, %v6053
      %v6095 = vpack.c.bf16 %v6054, %v6054
      %v6096 = vpack.c.bf16 %v6055, %v6055
      %v6097 = vpack.c.bf16 %v6056, %v6056
      %v6098 = vpack.c.bf16 %v6057, %v6057
      %v6099 = vpack.c.bf16 %v6058, %v6058
      %v6100 = vpack.c.bf16 %v6059, %v6059
      %v6101 = vpack.c.bf16 %v6060, %v6060
      %v6102 = vpack.c.bf16 %v6061, %v6061
      %v6103 = vpack.c.bf16 %v6062, %v6062
      %v6104 = vpack.c.bf16 %v6063, %v6063
      %v6105 = vpack.c.bf16 %v6064, %v6064
      %v6106 = vpack.c.bf16 %v6065, %v6065
      %v6107 = vpack.c.bf16 %v6066, %v6066
      %v6108 = vpack.c.bf16 %v6067, %v6067
      %v6109 = vpack.c.bf16 %v6068, %v6068
      %v6110 = vpack.c.bf16 %v6069, %v6069
      %v6111 = vpack.c.bf16 %v6070, %v6070
      %v6112 = vpack.c.bf16 %v6071, %v6071
      %v6113 = vpack.c.bf16 %v6072, %v6072
      %v6114 = vpack.c.bf16 %v6073, %v6073
      %v6115 = vpack.c.bf16 %v6074, %v6074
      %v6116 = vpack.c.bf16 %v6075, %v6075
      %v6117 = vpack.c.bf16 %v6076, %v6076
      %vm6118 = vcmask 257024
      %6119 = vst.msk [vmem:[%s305] sm:$0xf] %vm6118, %v6077
      %6120 = vst.msk [vmem:[%s305 + $0x4] sm:$0xf] %vm6118, %v6078
      %6121 = vst.msk [vmem:[%s305 + $0x8] sm:$0xf] %vm6118, %v6079
      %6122 = vst.msk [vmem:[%s305 + $0xc] sm:$0xf] %vm6118, %v6080
      %6123 = vst.msk [vmem:[%s305 + $0x10] sm:$0xf] %vm6118, %v6081
      %6124 = vst.msk [vmem:[%s305 + $0x14] sm:$0xf] %vm6118, %v6082
      %6125 = vst.msk [vmem:[%s305 + $0x18] sm:$0xf] %vm6118, %v6083
      %6126 = vst.msk [vmem:[%s305 + $0x1c] sm:$0xf] %vm6118, %v6084
      %6127 = vst.msk [vmem:[%s305 + $0x20] sm:$0xf] %vm6118, %v6085
      %6128 = vst.msk [vmem:[%s305 + $0x24] sm:$0xf] %vm6118, %v6086
      %6129 = vst.msk [vmem:[%s305 + $0x28] sm:$0xf] %vm6118, %v6087
      %6130 = vst.msk [vmem:[%s305 + $0x2c] sm:$0xf] %vm6118, %v6088
      %6131 = vst.msk [vmem:[%s305 + $0x30] sm:$0xf] %vm6118, %v6089
      %6132 = vst.msk [vmem:[%s305 + $0x34] sm:$0xf] %vm6118, %v6090
      %6133 = vst.msk [vmem:[%s305 + $0x38] sm:$0xf] %vm6118, %v6091
      %6134 = vst.msk [vmem:[%s305 + $0x3c] sm:$0xf] %vm6118, %v6092
      %6135 = vst.msk [vmem:[%s305 + $0x40] sm:$0xf] %vm6118, %v6093
      %6136 = vst.msk [vmem:[%s305 + $0x44] sm:$0xf] %vm6118, %v6094
      %6137 = vst.msk [vmem:[%s305 + $0x48] sm:$0xf] %vm6118, %v6095
      %6138 = vst.msk [vmem:[%s305 + $0x4c] sm:$0xf] %vm6118, %v6096
      %6139 = vst.msk [vmem:[%s305 + $0x50] sm:$0xf] %vm6118, %v6097
      %6140 = vst.msk [vmem:[%s305 + $0x54] sm:$0xf] %vm6118, %v6098
      %6141 = vst.msk [vmem:[%s305 + $0x58] sm:$0xf] %vm6118, %v6099
      %6142 = vst.msk [vmem:[%s305 + $0x5c] sm:$0xf] %vm6118, %v6100
      %6143 = vst.msk [vmem:[%s305 + $0x60] sm:$0xf] %vm6118, %v6101
      %6144 = vst.msk [vmem:[%s305 + $0x64] sm:$0xf] %vm6118, %v6102
      %6145 = vst.msk [vmem:[%s305 + $0x68] sm:$0xf] %vm6118, %v6103
      %6146 = vst.msk [vmem:[%s305 + $0x6c] sm:$0xf] %vm6118, %v6104
      %6147 = vst.msk [vmem:[%s305 + $0x70] sm:$0xf] %vm6118, %v6105
      %6148 = vst.msk [vmem:[%s305 + $0x74] sm:$0xf] %vm6118, %v6106
      %6149 = vst.msk [vmem:[%s305 + $0x78] sm:$0xf] %vm6118, %v6107
      %6150 = vst.msk [vmem:[%s305 + $0x7c] sm:$0xf] %vm6118, %v6108
      %6151 = vst.msk [vmem:[%s305 + $0x80] sm:$0xf] %vm6118, %v6109
      %6152 = vst.msk [vmem:[%s305 + $0x84] sm:$0xf] %vm6118, %v6110
      %6153 = vst.msk [vmem:[%s305 + $0x88] sm:$0xf] %vm6118, %v6111
      %6154 = vst.msk [vmem:[%s305 + $0x8c] sm:$0xf] %vm6118, %v6112
      %6155 = vst.msk [vmem:[%s305 + $0x90] sm:$0xf] %vm6118, %v6113
      %6156 = vst.msk [vmem:[%s305 + $0x94] sm:$0xf] %vm6118, %v6114
      %6157 = vst.msk [vmem:[%s305 + $0x98] sm:$0xf] %vm6118, %v6115
      %6158 = vst.msk [vmem:[%s305 + $0x9c] sm:$0xf] %vm6118, %v6116
      %vm6159 = vcmask 254976
      %6160 = vst.msk [vmem:[%s305 + $0xa0] sm:$0x3] %vm6159, %v6117
      %p6161 = scmp.lt.s32.totalorder %s19, 1
      %s6162 = scalar_select %p6161, %s19, 1
      %s6163 = smul.addr %s6162, 41
      %s6164 = smul.addr %s6163, 4
      %s6165 = scalar_lea.vmem %s8, %s6164
      // Predicated region
      $region53: #{tpu_custom_call.1} parent=51 // pred_check
        %p6166 = pneg %p210
      $region54: #{tpu_custom_call.1} parent=51 // pred_check_branch
        %6168 = sbr.rel (%p6166) target = $region56
      $region55: #{tpu_custom_call.1} parent=51 // pred_region
        _
      $region56: #{tpu_custom_call.1} parent=51 // pred_fallthru
        _
    $region52: #{tpu_custom_call.1} parent=5 // pred_fallthru
      _
    %p6169 = scmp.le.s32.totalorder 2, %s14
    // Predicated region
    $region57: #{tpu_custom_call.1} parent=5 // pred_check
      %p6170 = pneg %p6169
    $region58: #{tpu_custom_call.1} parent=5 // pred_check_branch
      %6172 = sbr.rel (%p6170) target = $region60
    $region59: #{tpu_custom_call.1} parent=5 // pred_region
      %s6173 = ssub.s32 %s14, 2
      // Predicated region
      $region61: #{tpu_custom_call.1} parent=59 // pred_check
        %p6174 = pneg %p216
      $region62: #{tpu_custom_call.1} parent=59 // pred_check_branch
        %6176 = sbr.rel (%p6174) target = $region64
      $region63: #{tpu_custom_call.1} parent=59 // pred_region
        %p6177 = scmp.lt.s32.totalorder %s20, 1
        %s6178 = scalar_select %p6177, %s20, 1
        %s6179 = smul.addr %s6178, 41
        %s6180 = smul.addr %s6179, 4
        %s6181 = scalar_lea.vmem %s8, %s6180
      $region64: #{tpu_custom_call.1} parent=59 // pred_fallthru
        _
    $region60: #{tpu_custom_call.1} parent=5 // pred_fallthru
      _
  $region6: #{tpu_custom_call.1} parent=0 // loop_footer
    %s18 = sadd.s32 1, %s14
  $region7: #{tpu_custom_call.1} parent=0 // loop_footer_branch
    %13 = sbr.rel target = $region3
  $region8: #{tpu_custom_call.1} parent=0 // loop_exit
    _

</llo_original>
